<compile_context>
chip_gen: v7x
topology: tpu7x:2x2x1
jax: 0.10.0
libtpu: 0.0.40
codegen_flags: <defaults>
</compile_context>

<pallas_src>
import functools

import jax
import jax.numpy as jnp
from jax.experimental import pallas as pl
from jax.experimental.pallas import tpu as pltpu


def _round_up(v, m):
    return (v + m - 1) // m * m


def _vmem_ceiling_bytes():
    """Generation-aware scoped-VMEM ceiling (~3/4 of physical per-core VMEM)."""
    try:
        phys = int(pltpu.get_tpu_info().vmem_capacity_bytes)
    except Exception:  # unknown chip / interpret mode -> conservative (v7x-like)
        phys = 64 << 20
    return int(min(max(phys * 3 // 4, 16 << 20), 100 << 20))


def _vmem_estimate_bytes(tile_n, d_pad, tile_c):
    return (2 * tile_n * d_pad * 2        # bf16 x tiles (double-buffered)
            + tile_n * d_pad * 2          # bf16 normalized-x scratch
            + 2 * d_pad * tile_c * 2      # bf16 W tiles (double-buffered stream)
            + 2 * tile_n * 4              # label tiles
            + 3 * tile_n * 128 * 4        # m / l / target scratch (lane-padded)
            + 2 * 2 * 8 * 128 * 4         # partial-sum output blocks
            + 8 * tile_n * tile_c * 4     # logits + f32 temporaries / spills
            + (2 << 20))                  # slack


def _pick_tile_n(n, d_pad, tile_c, ceiling):
    # Prefer 256-multiples (matches the 2x256x256 MXU on v6e/v7x) and the
    # largest tile that fits the VMEM ceiling; never pad the batch far beyond
    # what the data needs.
    n_cap = max(_round_up(n, 128), 128)
    for cand in (1024, 512, 256, 128):
        if cand <= n_cap and _vmem_estimate_bytes(cand, d_pad, tile_c) <= ceiling:
            return cand
    return 128


def _am_softmax_kernel(x_ref, wn_ref, lbl_ref, loss_ref, corr_ref,
                       xn_scr, m_scr, l_scr, t_scr, *,
                       margin, scale, n_real, n_pad, c_real, c_pad, tile_c):
    i = pl.program_id(0)          # batch tile   ("parallel")
    j = pl.program_id(1)          # class tile   ("arbitrary", streaming LSE)
    tile_n = x_ref.shape[0]

    # --- class tile 0: normalize this batch tile of x once, init LSE state. ---
    @pl.when(j == 0)
    def _init():
        x = x_ref[...].astype(jnp.float32)
        # rsqrt of the squared norm clamped at 1e-24 == 1/max(||x||, 1e-12).
        inv_x = jax.lax.rsqrt(jnp.maximum(jnp.sum(x * x, axis=1, keepdims=True), 1e-24))
        xn_scr[...] = (x * inv_x).astype(jnp.bfloat16)
        m_scr[...] = jnp.full_like(m_scr, -1e30)
        l_scr[...] = jnp.zeros_like(l_scr)
        t_scr[...] = jnp.full_like(t_scr, -1e30)

    lbl = lbl_ref[...]                                                  # (tile_n, 1)
    cls_idx = j * tile_c + jax.lax.broadcasted_iota(jnp.int32, (tile_n, tile_c), 1)
    is_target = cls_idx == lbl                                          # bool, no f32 one-hot

    # Cosine similarity on the MXU: bf16 inputs, f32 accumulation.
    costh = jnp.dot(xn_scr[...], wn_ref[...], preferred_element_type=jnp.float32)
    logits = scale * jnp.where(is_target, costh - margin, costh)

    # Mask zero-padded class columns (finite -1e30 keeps everything NaN-free).
    if c_real < c_pad:
        logits = jnp.where(cls_idx < c_real, logits, -1e30)

    # Online log-sum-exp across class tiles.
    m_prev = m_scr[...]
    m_new = jnp.maximum(m_prev, jnp.max(logits, axis=1, keepdims=True))
    l_scr[...] = (l_scr[...] * jnp.exp(m_prev - m_new)
                  + jnp.sum(jnp.exp(logits - m_new), axis=1, keepdims=True))
    m_scr[...] = m_new
    # Target logit lives in exactly one class tile; masked row-max extracts it.
    t_scr[...] = jnp.maximum(
        t_scr[...],
        jnp.max(jnp.where(is_target, logits, -1e30), axis=1, keepdims=True))

    # --- last class tile: finalize loss / top-1 and emit lane-dense partials. ---
    @pl.when(j == pl.num_programs(1) - 1)
    def _finalize():
        lse = m_scr[...] + jnp.log(l_scr[...])
        row_loss = lse - t_scr[...]                                     # (tile_n, 1)
        # Top-1 "correct" == target logit attains the row max.  (Exact-tie
        # first-index semantics of torch.argmax are not reproduced.)
        row_correct = (t_scr[...] >= m_scr[...]).astype(jnp.float32)
        if n_pad > n_real:   # mask zero-padded batch rows out of the partials
            row_idx = i * tile_n + jax.lax.broadcasted_iota(jnp.int32, (tile_n, 1), 0)
            valid = (row_idx < n_real).astype(jnp.float32)
            row_loss = row_loss * valid
            row_correct = row_correct * valid
        # Lane-dense (1, 8, 128) partial outputs -> unmasked stores.
        loss_ref[...] = jnp.full(loss_ref.shape, jnp.sum(row_loss), dtype=loss_ref.dtype)
        corr_ref[...] = jnp.full(corr_ref.shape, jnp.sum(row_correct), dtype=corr_ref.dtype)


@functools.partial(jax.jit, static_argnames=(
    "margin", "scale", "tile_n", "tile_c", "d_pad", "c_pad", "n_pad", "vmem_limit"))
def _am_softmax_padded(x, w, label, margin, scale, tile_n, tile_c,
                       d_pad, c_pad, n_pad, vmem_limit):
    n, d = x.shape
    _, c = w.shape

    # Column-wise L2 normalization of W once, in plain XLA (fused for free at
    # small sizes, streamed by XLA for huge C), emitted MXU-native bf16.
    w32 = w.astype(jnp.float32)
    inv_w = jax.lax.rsqrt(jnp.maximum(jnp.sum(w32 * w32, axis=0, keepdims=True), 1e-24))
    w_n = jnp.pad((w32 * inv_w).astype(jnp.bfloat16),
                  ((0, d_pad - d), (0, c_pad - c)))

    # x ships to the kernel as bf16 (halves the dominant per-tile DMA).
    x_p = jnp.pad(x.astype(jnp.bfloat16), ((0, n_pad - n), (0, d_pad - d)))
    lbl_p = jnp.pad(label.astype(jnp.int32).reshape(n, 1), ((0, n_pad - n), (0, 0)))

    num_n_tiles = n_pad // tile_n
    num_c_tiles = c_pad // tile_c

    kernel = functools.partial(
        _am_softmax_kernel,
        margin=margin, scale=scale,
        n_real=n, n_pad=n_pad, c_real=c, c_pad=c_pad, tile_c=tile_c)

    loss_parts, corr_parts = pl.pallas_call(
        kernel,
        out_shape=(
            jax.ShapeDtypeStruct((num_n_tiles, 8, 128), jnp.float32),
            jax.ShapeDtypeStruct((num_n_tiles, 8, 128), jnp.float32),
        ),
        grid=(num_n_tiles, num_c_tiles),
        in_specs=[
            pl.BlockSpec((tile_n, d_pad), lambda i, j: (i, 0)),   # x tile (same across j)
            pl.BlockSpec((d_pad, tile_c), lambda i, j: (0, j)),   # streamed W class tile
            pl.BlockSpec((tile_n, 1), lambda i, j: (i, 0)),       # labels
        ],
        out_specs=(
            pl.BlockSpec((1, 8, 128), lambda i, j: (i, 0, 0)),    # resident across j
            pl.BlockSpec((1, 8, 128), lambda i, j: (i, 0, 0)),
        ),
        scratch_shapes=[
            pltpu.VMEM((tile_n, d_pad), jnp.bfloat16),   # normalized x (per batch tile)
            pltpu.VMEM((tile_n, 1), jnp.float32),        # running max m
            pltpu.VMEM((tile_n, 1), jnp.float32),        # running sum-of-exp l
            pltpu.VMEM((tile_n, 1), jnp.float32),        # target logit
        ],
        compiler_params=pltpu.CompilerParams(
            dimension_semantics=("parallel", "arbitrary"),
            vmem_limit_bytes=vmem_limit,
        ),
    )(x_p, w_n, lbl_p)

    loss = jnp.sum(loss_parts[:, 0, 0]) / n
    prec1 = jnp.sum(corr_parts[:, 0, 0]) * (100.0 / n)
    return loss, prec1


def am_softmax_forward(x, w, label, margin=0.3, scale=15.0, tile_n=None, tile_c=None):
    """AMsoftmax forward: returns (mean CE loss, top-1 precision in %)."""
    n, d = x.shape
    d2, c = w.shape
    assert d == d2 and label.shape == (n,)

    d_pad = _round_up(d, 128)
    if tile_c is None:
        tile_c = min(_round_up(c, 128), 2048)   # bounds VMEM independent of C
    assert tile_c % 128 == 0
    c_pad = _round_up(c, tile_c)

    ceiling = _vmem_ceiling_bytes()
    if tile_n is None:
        tile_n = _pick_tile_n(n, d_pad, tile_c, ceiling)
    assert tile_n % 128 == 0
    n_pad = _round_up(n, tile_n)

    vmem_limit = int(min(max(_vmem_estimate_bytes(tile_n, d_pad, tile_c), 16 << 20),
                         ceiling))

    return _am_softmax_padded(x, w, label, float(margin), float(scale),
                              int(tile_n), int(tile_c),
                              int(d_pad), int(c_pad), int(n_pad), vmem_limit)


if __name__ == "__main__":
    # Small config consistent with AMsoftmax(nOut, nClasses); exercises
    # feature/class/batch padding and (in run 2) multi-tile batch and class grids.
    n_out, n_classes = 64, 300
    batch = 200
    margin, scale = 0.3, 15.0

    key = jax.random.PRNGKey(0)
    kx, kw, kl = jax.random.split(key, 3)

    # xavier_normal_ init of W (nOut, nClasses), gain=1.
    xavier_std = (2.0 / (n_out + n_classes)) ** 0.5
    W = jax.random.normal(kw, (n_out, n_classes), dtype=jnp.float32) * xavier_std
    x = jax.random.normal(kx, (batch, n_out), dtype=jnp.float32)
    label = jax.random.randint(kl, (batch,), 0, n_classes, dtype=jnp.int32)

    # Reference 1: mirrors kernel numerics (bf16 x in HBM, rsqrt norms, bf16 MXU
    # inputs, f32 accumulation) -> tight check of the Pallas translation.
    xf = x.astype(jnp.bfloat16).astype(jnp.float32)
    x_n = (xf * jax.lax.rsqrt(jnp.maximum(jnp.sum(xf * xf, 1, keepdims=True), 1e-24))
           ).astype(jnp.bfloat16)
    w_n = (W * jax.lax.rsqrt(jnp.maximum(jnp.sum(W * W, 0, keepdims=True), 1e-24))
           ).astype(jnp.bfloat16)
    costh = jnp.dot(x_n, w_n, preferred_element_type=jnp.float32)
    onehot = jax.nn.one_hot(label, n_classes, dtype=jnp.float32)
    logits = scale * (costh - margin * onehot)
    ref_loss = float(jnp.mean(jax.nn.logsumexp(logits, axis=1)
                              - jnp.sum(logits * onehot, axis=1)))
    ref_prec = float(jnp.mean((jnp.argmax(logits, axis=1) == label).astype(jnp.float32)) * 100.0)

    # Reference 2: full-f32 PyTorch-faithful math (loose sanity check; the only
    # intended difference is the bf16 cast of x and the bf16 MXU inputs).
    costh32 = (x / jnp.maximum(jnp.linalg.norm(x, axis=1, keepdims=True), 1e-12)) @ \
              (W / jnp.maximum(jnp.linalg.norm(W, axis=0, keepdims=True), 1e-12))
    logits32 = scale * (costh32 - margin * onehot)
    ref32_loss = float(jnp.mean(jax.nn.logsumexp(logits32, axis=1)
                                - jnp.sum(logits32 * onehot, axis=1)))

    # Run 1: auto tiling (single batch tile, single class tile at this size).
    loss, prec1 = am_softmax_forward(x, W, label, margin=margin, scale=scale)
    jax.block_until_ready((loss, prec1))
    assert abs(float(loss) - ref_loss) < 1e-3, (float(loss), ref_loss)
    assert abs(float(prec1) - ref_prec) < 1e-3, (float(prec1), ref_prec)
    assert abs(float(loss) - ref32_loss) < 0.25, (float(loss), ref32_loss)

    # Run 2: forced small tiles -> 2 batch tiles x 3 class tiles, exercising the
    # online-LSE class streaming and the multi-tile partial reduction.
    loss2, prec2 = am_softmax_forward(x, W, label, margin=margin, scale=scale,
                                      tile_n=128, tile_c=128)
    jax.block_until_ready((loss2, prec2))
    assert abs(float(loss2) - ref_loss) < 1e-3, (float(loss2), ref_loss)
    assert abs(float(prec2) - ref_prec) < 1e-3, (float(prec2), ref_prec)

    print("KERNEL_OK")
</pallas_src>

<mosaic_0001>
module attributes {stable_mosaic.version = 11 : i64} {
  func.func @_am_softmax_kernel(%arg0: i32, %arg1: i32, %arg2: memref<256x128xbf16, #tpu.memory_space<vmem>>, %arg3: memref<128x384xbf16, #tpu.memory_space<vmem>>, %arg4: memref<256x1xi32, #tpu.memory_space<vmem>>, %arg5: memref<1x8x128xf32, #tpu.memory_space<vmem>>, %arg6: memref<1x8x128xf32, #tpu.memory_space<vmem>>, %arg7: memref<256x128xbf16, #tpu.memory_space<vmem>>, %arg8: memref<256x1xf32, #tpu.memory_space<vmem>>, %arg9: memref<256x1xf32, #tpu.memory_space<vmem>>, %arg10: memref<256x1xf32, #tpu.memory_space<vmem>>) attributes {dimension_semantics = [#tpu.dimension_semantics<parallel>, #tpu.dimension_semantics<arbitrary>], iteration_bounds = array<i64: 1, 1>, scalar_prefetch = 0 : i64, scratch_operands = 4 : i64, tpu.core_type = #tpu.core_type<tc>, window_params = [{transform_indices = @transform_0, window_bounds = array<i64: 256, 128>}, {transform_indices = @transform_1, window_bounds = array<i64: 128, 384>}, {transform_indices = @transform_2, window_bounds = array<i64: 256, 1>}, {transform_indices = @transform_3, window_bounds = array<i64: 1, 8, 128>}, {transform_indices = @transform_4, window_bounds = array<i64: 1, 8, 128>}]} {
    %c0_i32 = arith.constant 0 : i32
    %0 = arith.cmpi eq, %arg1, %c0_i32 : i32
    %1 = arith.extui %0 : i1 to i32
    %c0_i32_0 = arith.constant 0 : i32
    %2 = arith.cmpi ne, %1, %c0_i32_0 : i32
    scf.if %2 {
      %c0_27 = arith.constant 0 : index
      %c0_28 = arith.constant 0 : index
      %48 = vector.load %arg2[%c0_27, %c0_28] : memref<256x128xbf16, #tpu.memory_space<vmem>>, vector<256x128xbf16>
      %49 = arith.extf %48 : vector<256x128xbf16> to vector<256x128xf32>
      %50 = arith.mulf %49, %49 : vector<256x128xf32>
      %cst_29 = arith.constant dense<0.000000e+00> : vector<256xf32>
      %51 = vector.multi_reduction <add>, %50, %cst_29 [1] : vector<256x128xf32> to vector<256xf32>
      %52 = vector.shape_cast %51 : vector<256xf32> to vector<256x1xf32>
      %cst_30 = arith.constant 1.000000e-24 : f32
      %53 = vector.broadcast %cst_30 : f32 to vector<256x1xf32>
      %54 = arith.maximumf %52, %53 : vector<256x1xf32>
      %55 = math.rsqrt %54 : vector<256x1xf32>
      %56 = vector.broadcast %55 : vector<256x1xf32> to vector<256x128xf32>
      %57 = arith.mulf %49, %56 : vector<256x128xf32>
      %58 = arith.truncf %57 : vector<256x128xf32> to vector<256x128xbf16>
      %c0_31 = arith.constant 0 : index
      %c0_32 = arith.constant 0 : index
      %59 = vector.load %arg7[%c0_31, %c0_32] : memref<256x128xbf16, #tpu.memory_space<vmem>>, vector<256x128xbf16>
      tpu.vector_store %arg7[%c0_31, %c0_32], %58 {strides = array<i32>} : memref<256x128xbf16, #tpu.memory_space<vmem>>, vector<256x128xbf16>,
      %cst_33 = arith.constant -1.000000e+30 : f32
      %60 = vector.broadcast %cst_33 : f32 to vector<256x1xf32>
      %c0_34 = arith.constant 0 : index
      %c0_35 = arith.constant 0 : index
      %61 = vector.load %arg8[%c0_34, %c0_35] : memref<256x1xf32, #tpu.memory_space<vmem>>, vector<256x1xf32>
      tpu.vector_store %arg8[%c0_34, %c0_35], %60 {strides = array<i32>} : memref<256x1xf32, #tpu.memory_space<vmem>>, vector<256x1xf32>,
      %cst_36 = arith.constant 0.000000e+00 : f32
      %62 = vector.broadcast %cst_36 : f32 to vector<256x1xf32>
      %c0_37 = arith.constant 0 : index
      %c0_38 = arith.constant 0 : index
      %63 = vector.load %arg9[%c0_37, %c0_38] : memref<256x1xf32, #tpu.memory_space<vmem>>, vector<256x1xf32>
      tpu.vector_store %arg9[%c0_37, %c0_38], %62 {strides = array<i32>} : memref<256x1xf32, #tpu.memory_space<vmem>>, vector<256x1xf32>,
      %cst_39 = arith.constant -1.000000e+30 : f32
      %64 = vector.broadcast %cst_39 : f32 to vector<256x1xf32>
      %c0_40 = arith.constant 0 : index
      %c0_41 = arith.constant 0 : index
      %65 = vector.load %arg10[%c0_40, %c0_41] : memref<256x1xf32, #tpu.memory_space<vmem>>, vector<256x1xf32>
      tpu.vector_store %arg10[%c0_40, %c0_41], %64 {strides = array<i32>} : memref<256x1xf32, #tpu.memory_space<vmem>>, vector<256x1xf32>,
    } else {
    }
    %c0 = arith.constant 0 : index
    %c0_1 = arith.constant 0 : index
    %3 = vector.load %arg4[%c0, %c0_1] : memref<256x1xi32, #tpu.memory_space<vmem>>, vector<256x1xi32>
    %c384_i32 = arith.constant 384 : i32
    %4 = arith.muli %arg1, %c384_i32 : i32
    %5 = tpu.iota {dimensions = array<i32: 1>} : vector<256x384xi32>
    %6 = vector.broadcast %4 : i32 to vector<256x384xi32>
    %7 = arith.addi %6, %5 : vector<256x384xi32>
    %8 = vector.broadcast %3 : vector<256x1xi32> to vector<256x384xi32>
    %9 = arith.cmpi eq, %7, %8 : vector<256x384xi32>
    %c0_2 = arith.constant 0 : index
    %c0_3 = arith.constant 0 : index
    %10 = vector.load %arg7[%c0_2, %c0_3] : memref<256x128xbf16, #tpu.memory_space<vmem>>, vector<256x128xbf16>
    %c0_4 = arith.constant 0 : index
    %c0_5 = arith.constant 0 : index
    %11 = vector.load %arg3[%c0_4, %c0_5] : memref<128x384xbf16, #tpu.memory_space<vmem>>, vector<128x384xbf16>
    %cst = arith.constant dense<0.000000e+00> : vector<256x384xf32>
    %12 = tpu.matmul %10, %11, %cst {dimension_numbers = #tpu.dot_dimension_numbers<[1], [0], [0], [1], [0, 0, 1, 1], [], []>} : vector<256x128xbf16>, vector<128x384xbf16>, vector<256x384xf32> -> vector<256x384xf32>
    %cst_6 = arith.constant 3.000000e-01 : f32
    %13 = vector.broadcast %cst_6 : f32 to vector<256x384xf32>
    %14 = arith.subf %12, %13 : vector<256x384xf32>
    %15 = arith.select %9, %14, %12 : vector<256x384xi1>, vector<256x384xf32>
    %cst_7 = arith.constant 1.500000e+01 : f32
    %16 = vector.broadcast %cst_7 : f32 to vector<256x384xf32>
    %17 = arith.mulf %16, %15 : vector<256x384xf32>
    %c300_i32 = arith.constant 300 : i32
    %18 = vector.broadcast %c300_i32 : i32 to vector<256x384xi32>
    %19 = arith.cmpi slt, %7, %18 : vector<256x384xi32>
    %cst_8 = arith.constant -1.000000e+30 : f32
    %20 = vector.broadcast %cst_8 : f32 to vector<256x384xf32>
    %21 = arith.select %19, %17, %20 : vector<256x384xi1>, vector<256x384xf32>
    %c0_9 = arith.constant 0 : index
    %c0_10 = arith.constant 0 : index
    %22 = vector.load %arg8[%c0_9, %c0_10] : memref<256x1xf32, #tpu.memory_space<vmem>>, vector<256x1xf32>
    %cst_11 = arith.constant dense<0xFF800000> : vector<256xf32>
    %23 = vector.multi_reduction <maximumf>, %21, %cst_11 [1] : vector<256x384xf32> to vector<256xf32>
    %24 = vector.shape_cast %23 : vector<256xf32> to vector<256x1xf32>
    %25 = arith.maximumf %22, %24 : vector<256x1xf32>
    %c0_12 = arith.constant 0 : index
    %c0_13 = arith.constant 0 : index
    %26 = vector.load %arg9[%c0_12, %c0_13] : memref<256x1xf32, #tpu.memory_space<vmem>>, vector<256x1xf32>
    %27 = arith.subf %22, %25 : vector<256x1xf32>
    %28 = math.exp %27 : vector<256x1xf32>
    %29 = arith.mulf %26, %28 : vector<256x1xf32>
    %30 = vector.broadcast %25 : vector<256x1xf32> to vector<256x384xf32>
    %31 = arith.subf %21, %30 : vector<256x384xf32>
    %32 = math.exp %31 : vector<256x384xf32>
    %cst_14 = arith.constant dense<0.000000e+00> : vector<256xf32>
    %33 = vector.multi_reduction <add>, %32, %cst_14 [1] : vector<256x384xf32> to vector<256xf32>
    %34 = vector.shape_cast %33 : vector<256xf32> to vector<256x1xf32>
    %35 = arith.addf %29, %34 : vector<256x1xf32>
    %c0_15 = arith.constant 0 : index
    %c0_16 = arith.constant 0 : index
    %36 = vector.load %arg9[%c0_15, %c0_16] : memref<256x1xf32, #tpu.memory_space<vmem>>, vector<256x1xf32>
    tpu.vector_store %arg9[%c0_15, %c0_16], %35 {strides = array<i32>} : memref<256x1xf32, #tpu.memory_space<vmem>>, vector<256x1xf32>,
    %c0_17 = arith.constant 0 : index
    %c0_18 = arith.constant 0 : index
    %37 = vector.load %arg8[%c0_17, %c0_18] : memref<256x1xf32, #tpu.memory_space<vmem>>, vector<256x1xf32>
    tpu.vector_store %arg8[%c0_17, %c0_18], %25 {strides = array<i32>} : memref<256x1xf32, #tpu.memory_space<vmem>>, vector<256x1xf32>,
    %c0_19 = arith.constant 0 : index
    %c0_20 = arith.constant 0 : index
    %38 = vector.load %arg10[%c0_19, %c0_20] : memref<256x1xf32, #tpu.memory_space<vmem>>, vector<256x1xf32>
    %cst_21 = arith.constant -1.000000e+30 : f32
    %39 = vector.broadcast %cst_21 : f32 to vector<256x384xf32>
    %40 = arith.select %9, %21, %39 : vector<256x384xi1>, vector<256x384xf32>
    %cst_22 = arith.constant dense<0xFF800000> : vector<256xf32>
    %41 = vector.multi_reduction <maximumf>, %40, %cst_22 [1] : vector<256x384xf32> to vector<256xf32>
    %42 = vector.shape_cast %41 : vector<256xf32> to vector<256x1xf32>
    %43 = arith.maximumf %38, %42 : vector<256x1xf32>
    %c0_23 = arith.constant 0 : index
    %c0_24 = arith.constant 0 : index
    %44 = vector.load %arg10[%c0_23, %c0_24] : memref<256x1xf32, #tpu.memory_space<vmem>>, vector<256x1xf32>
    tpu.vector_store %arg10[%c0_23, %c0_24], %43 {strides = array<i32>} : memref<256x1xf32, #tpu.memory_space<vmem>>, vector<256x1xf32>,
    %c0_i32_25 = arith.constant 0 : i32
    %45 = arith.cmpi eq, %arg1, %c0_i32_25 : i32
    %46 = arith.extui %45 : i1 to i32
    %c0_i32_26 = arith.constant 0 : i32
    %47 = arith.cmpi ne, %46, %c0_i32_26 : i32
    scf.if %47 {
      %c0_27 = arith.constant 0 : index
      %c0_28 = arith.constant 0 : index
      %48 = vector.load %arg8[%c0_27, %c0_28] : memref<256x1xf32, #tpu.memory_space<vmem>>, vector<256x1xf32>
      %c0_29 = arith.constant 0 : index
      %c0_30 = arith.constant 0 : index
      %49 = vector.load %arg9[%c0_29, %c0_30] : memref<256x1xf32, #tpu.memory_space<vmem>>, vector<256x1xf32>
      %50 = math.log %49 : vector<256x1xf32>
      %51 = arith.addf %48, %50 : vector<256x1xf32>
      %c0_31 = arith.constant 0 : index
      %c0_32 = arith.constant 0 : index
      %52 = vector.load %arg10[%c0_31, %c0_32] : memref<256x1xf32, #tpu.memory_space<vmem>>, vector<256x1xf32>
      %53 = arith.subf %51, %52 : vector<256x1xf32>
      %c0_33 = arith.constant 0 : index
      %c0_34 = arith.constant 0 : index
      %54 = vector.load %arg10[%c0_33, %c0_34] : memref<256x1xf32, #tpu.memory_space<vmem>>, vector<256x1xf32>
      %c0_35 = arith.constant 0 : index
      %c0_36 = arith.constant 0 : index
      %55 = vector.load %arg8[%c0_35, %c0_36] : memref<256x1xf32, #tpu.memory_space<vmem>>, vector<256x1xf32>
      %56 = arith.cmpf oge, %54, %55 : vector<256x1xf32>
      %57 = arith.extui %56 : vector<256x1xi1> to vector<256x1xi32>
      %58 = arith.sitofp %57 : vector<256x1xi32> to vector<256x1xf32>
      %c256_i32 = arith.constant 256 : i32
      %59 = arith.muli %arg0, %c256_i32 : i32
      %60 = tpu.iota {dimensions = array<i32: 0>} : vector<256x1xi32>
      %61 = vector.broadcast %59 : i32 to vector<256x1xi32>
      %62 = arith.addi %61, %60 : vector<256x1xi32>
      %c200_i32 = arith.constant 200 : i32
      %63 = vector.broadcast %c200_i32 : i32 to vector<256x1xi32>
      %64 = arith.cmpi slt, %62, %63 : vector<256x1xi32>
      %65 = arith.extui %64 : vector<256x1xi1> to vector<256x1xi32>
      %66 = arith.sitofp %65 : vector<256x1xi32> to vector<256x1xf32>
      %67 = arith.mulf %53, %66 : vector<256x1xf32>
      %68 = arith.mulf %58, %66 : vector<256x1xf32>
      %69 = vector.shape_cast %67 : vector<256x1xf32> to vector<1x256x1xf32>
      %cst_37 = arith.constant dense<0.000000e+00> : vector<1xf32>
      %70 = vector.multi_reduction <add>, %69, %cst_37 [1, 2] : vector<1x256x1xf32> to vector<1xf32>
      %71 = vector.shape_cast %70 : vector<1xf32> to vector<1x1x1xf32>
      %72 = vector.extract %71[0, 0, 0] : f32 from vector<1x1x1xf32>
      %73 = vector.broadcast %72 : f32 to vector<1x8x128xf32>
      %c0_38 = arith.constant 0 : index
      %c0_39 = arith.constant 0 : index
      %c0_40 = arith.constant 0 : index
      %74 = vector.load %arg5[%c0_38, %c0_39, %c0_40] : memref<1x8x128xf32, #tpu.memory_space<vmem>>, vector<1x8x128xf32>
      tpu.vector_store %arg5[%c0_38, %c0_39, %c0_40], %73 {strides = array<i32>} : memref<1x8x128xf32, #tpu.memory_space<vmem>>, vector<1x8x128xf32>,
      %75 = vector.shape_cast %68 : vector<256x1xf32> to vector<1x256x1xf32>
      %cst_41 = arith.constant dense<0.000000e+00> : vector<1xf32>
      %76 = vector.multi_reduction <add>, %75, %cst_41 [1, 2] : vector<1x256x1xf32> to vector<1xf32>
      %77 = vector.shape_cast %76 : vector<1xf32> to vector<1x1x1xf32>
      %78 = vector.extract %77[0, 0, 0] : f32 from vector<1x1x1xf32>
      %79 = vector.broadcast %78 : f32 to vector<1x8x128xf32>
      %c0_42 = arith.constant 0 : index
      %c0_43 = arith.constant 0 : index
      %c0_44 = arith.constant 0 : index
      %80 = vector.load %arg6[%c0_42, %c0_43, %c0_44] : memref<1x8x128xf32, #tpu.memory_space<vmem>>, vector<1x8x128xf32>
      tpu.vector_store %arg6[%c0_42, %c0_43, %c0_44], %79 {strides = array<i32>} : memref<1x8x128xf32, #tpu.memory_space<vmem>>, vector<1x8x128xf32>,
    } else {
    }
    return
  }
  func.func @transform_0(%arg0: i32, %arg1: i32) -> (i32, i32) {
    %c0_i32 = arith.constant 0 : i32
    %c0_i32_0 = arith.constant 0 : i32
    return %arg0, %c0_i32 : i32, i32
  }
  func.func @transform_1(%arg0: i32, %arg1: i32) -> (i32, i32) {
    %c0_i32 = arith.constant 0 : i32
    %c0_i32_0 = arith.constant 0 : i32
    return %c0_i32, %arg1 : i32, i32
  }
  func.func @transform_2(%arg0: i32, %arg1: i32) -> (i32, i32) {
    %c0_i32 = arith.constant 0 : i32
    %c0_i32_0 = arith.constant 0 : i32
    return %arg0, %c0_i32 : i32, i32
  }
  func.func @transform_3(%arg0: i32, %arg1: i32) -> (i32, i32, i32) {
    %c0_i32 = arith.constant 0 : i32
    %c0_i32_0 = arith.constant 0 : i32
    %c0_i32_1 = arith.constant 0 : i32
    return %arg0, %c0_i32, %c0_i32_0 : i32, i32, i32
  }
  func.func @transform_4(%arg0: i32, %arg1: i32) -> (i32, i32, i32) {
    %c0_i32 = arith.constant 0 : i32
    %c0_i32_0 = arith.constant 0 : i32
    %c0_i32_1 = arith.constant 0 : i32
    return %arg0, %c0_i32, %c0_i32_0 : i32, i32, i32
  }
}

</mosaic_0001>

<llo_original>
// kernel: _am_softmax_padded.1
$region0: #{_am_softmax_padded.1}
  #allocation0 [shape = 'u32[]', space=smem, size = 0x4, offset = 0x4, fixed_abs, tag = 'smem constant byte address 0x4 - core index']
  #allocation1 [shape = 'u32[144,128]{1,0:T(1,128)}', space=vmem, size = 0x12000, scoped, tag = 'internal scratch']
  #allocation2 [shape = 'bf16[256,128]{1,0:T(16,128)(2,1)}', space=vmem, size = 0x10000, scoped, tag = 'scratch operand']
  #allocation3 [shape = 'f32[256,1]{1,0:T(8,128)}', space=vmem, size = 0x20000, scoped, tag = 'scratch operand']
  #allocation4 [shape = 'f32[256,1]{1,0:T(8,128)}', space=vmem, size = 0x20000, scoped, tag = 'scratch operand']
  #allocation5 [shape = 'f32[256,1]{1,0:T(8,128)}', space=vmem, size = 0x20000, scoped, tag = 'scratch operand']
  %s0 = inlined_call_operand.vmem [shape: bf16[256,128], index: 0, kind: input, shape index: {}]
  %s1 = inlined_call_operand.vmem [shape: bf16[128,384], index: 1, kind: input, shape index: {}]
  %s2 = inlined_call_operand.vmem [shape: s32[256,1], index: 2, kind: input, shape index: {}]
  %s3 = inlined_call_operand.vmem [shape: f32[1,8,128], index: 3, kind: output, shape index: {0}]
  %s4 = inlined_call_operand.vmem [shape: f32[1,8,128], index: 4, kind: output, shape index: {1}]
  %5 = xla_tuple %s3, %s4
  %s6 = sld [smem:[#allocation0]]
  $region38: #{_am_softmax_padded.1} parent=0
    _
  %s8 = ssub.s32 1, %s6
  %s9 = scalar_select 0, %s8, %s6
  // Predicated region
  $region2: #{_am_softmax_padded.1} parent=0 // pred_check
    _
  $region3: #{_am_softmax_padded.1} parent=0 // pred_check_branch
    %11 = sbr.rel (0) target = $region5
  $region4: #{_am_softmax_padded.1} parent=0 // pred_region
    _
  $region5: #{_am_softmax_padded.1} parent=0 // pred_fallthru
    _
  // Predicated region
  $region6: #{_am_softmax_padded.1} parent=0 // pred_check
    _
  $region7: #{_am_softmax_padded.1} parent=0 // pred_check_branch
    %13 = sbr.rel (0) target = $region9
  $region8: #{_am_softmax_padded.1} parent=0 // pred_region
    _
  $region9: #{_am_softmax_padded.1} parent=0 // pred_fallthru
    _
  // Predicated region
  $region10: #{_am_softmax_padded.1} parent=0 // pred_check
    _
  $region11: #{_am_softmax_padded.1} parent=0 // pred_check_branch
    %15 = sbr.rel (0) target = $region13
  $region12: #{_am_softmax_padded.1} parent=0 // pred_region
    _
  $region13: #{_am_softmax_padded.1} parent=0 // pred_fallthru
    _
  %p17 = scmp.eq.s32.totalorder 0, 0
  // Predicated region
  $region14: #{_am_softmax_padded.1} parent=0 // pred_check
    %p18 = pneg %p17
  $region15: #{_am_softmax_padded.1} parent=0 // pred_check_branch
    %20 = sbr.rel (%p18) target = $region17
  $region16: #{_am_softmax_padded.1} parent=0 // pred_region
    %v21 = vld [vmem:[%s0] sm:$0xf]
    %v22 = vld [vmem:[%s0 + $0x4] sm:$0xf]
    %v23 = vld [vmem:[%s0 + $0x8] sm:$0xf]
    %v24 = vld [vmem:[%s0 + $0xc] sm:$0xf]
    %v25 = vld [vmem:[%s0 + $0x10] sm:$0xf]
    %v26 = vld [vmem:[%s0 + $0x14] sm:$0xf]
    %v27 = vld [vmem:[%s0 + $0x18] sm:$0xf]
    %v28 = vld [vmem:[%s0 + $0x1c] sm:$0xf]
    %v29 = vld [vmem:[%s0 + $0x20] sm:$0xf]
    %v30 = vld [vmem:[%s0 + $0x24] sm:$0xf]
    %v31 = vld [vmem:[%s0 + $0x28] sm:$0xf]
    %v32 = vld [vmem:[%s0 + $0x2c] sm:$0xf]
    %v33 = vld [vmem:[%s0 + $0x30] sm:$0xf]
    %v34 = vld [vmem:[%s0 + $0x34] sm:$0xf]
    %v35 = vld [vmem:[%s0 + $0x38] sm:$0xf]
    %v36 = vld [vmem:[%s0 + $0x3c] sm:$0xf]
    %v37 = vld [vmem:[%s0 + $0x40] sm:$0xf]
    %v38 = vld [vmem:[%s0 + $0x44] sm:$0xf]
    %v39 = vld [vmem:[%s0 + $0x48] sm:$0xf]
    %v40 = vld [vmem:[%s0 + $0x4c] sm:$0xf]
    %v41 = vld [vmem:[%s0 + $0x50] sm:$0xf]
    %v42 = vld [vmem:[%s0 + $0x54] sm:$0xf]
    %v43 = vld [vmem:[%s0 + $0x58] sm:$0xf]
    %v44 = vld [vmem:[%s0 + $0x5c] sm:$0xf]
    %v45 = vld [vmem:[%s0 + $0x60] sm:$0xf]
    %v46 = vld [vmem:[%s0 + $0x64] sm:$0xf]
    %v47 = vld [vmem:[%s0 + $0x68] sm:$0xf]
    %v48 = vld [vmem:[%s0 + $0x6c] sm:$0xf]
    %v49 = vld [vmem:[%s0 + $0x70] sm:$0xf]
    %v50 = vld [vmem:[%s0 + $0x74] sm:$0xf]
    %v51 = vld [vmem:[%s0 + $0x78] sm:$0xf]
    %v52 = vld [vmem:[%s0 + $0x7c] sm:$0xf]
    %v53 = vunpack.c.l.bf16 %v21
    %v54 = vunpack.c.l.bf16 %v22
    %v55 = vunpack.c.l.bf16 %v23
    %v56 = vunpack.c.l.bf16 %v24
    %v57 = vunpack.c.l.bf16 %v25
    %v58 = vunpack.c.l.bf16 %v26
    %v59 = vunpack.c.l.bf16 %v27
    %v60 = vunpack.c.l.bf16 %v28
    %v61 = vunpack.c.l.bf16 %v29
    %v62 = vunpack.c.l.bf16 %v30
    %v63 = vunpack.c.l.bf16 %v31
    %v64 = vunpack.c.l.bf16 %v32
    %v65 = vunpack.c.l.bf16 %v33
    %v66 = vunpack.c.l.bf16 %v34
    %v67 = vunpack.c.l.bf16 %v35
    %v68 = vunpack.c.l.bf16 %v36
    %v69 = vunpack.c.l.bf16 %v37
    %v70 = vunpack.c.l.bf16 %v38
    %v71 = vunpack.c.l.bf16 %v39
    %v72 = vunpack.c.l.bf16 %v40
    %v73 = vunpack.c.l.bf16 %v41
    %v74 = vunpack.c.l.bf16 %v42
    %v75 = vunpack.c.l.bf16 %v43
    %v76 = vunpack.c.l.bf16 %v44
    %v77 = vunpack.c.l.bf16 %v45
    %v78 = vunpack.c.l.bf16 %v46
    %v79 = vunpack.c.l.bf16 %v47
    %v80 = vunpack.c.l.bf16 %v48
    %v81 = vunpack.c.l.bf16 %v49
    %v82 = vunpack.c.l.bf16 %v50
    %v83 = vunpack.c.l.bf16 %v51
    %v84 = vunpack.c.l.bf16 %v52
    %v85 = vmul.f32 %v53, %v53
    %v86 = vmul.f32 %v54, %v54
    %v87 = vmul.f32 %v55, %v55
    %v88 = vmul.f32 %v56, %v56
    %v89 = vmul.f32 %v57, %v57
    %v90 = vmul.f32 %v58, %v58
    %v91 = vmul.f32 %v59, %v59
    %v92 = vmul.f32 %v60, %v60
    %v93 = vmul.f32 %v61, %v61
    %v94 = vmul.f32 %v62, %v62
    %v95 = vmul.f32 %v63, %v63
    %v96 = vmul.f32 %v64, %v64
    %v97 = vmul.f32 %v65, %v65
    %v98 = vmul.f32 %v66, %v66
    %v99 = vmul.f32 %v67, %v67
    %v100 = vmul.f32 %v68, %v68
    %v101 = vmul.f32 %v69, %v69
    %v102 = vmul.f32 %v70, %v70
    %v103 = vmul.f32 %v71, %v71
    %v104 = vmul.f32 %v72, %v72
    %v105 = vmul.f32 %v73, %v73
    %v106 = vmul.f32 %v74, %v74
    %v107 = vmul.f32 %v75, %v75
    %v108 = vmul.f32 %v76, %v76
    %v109 = vmul.f32 %v77, %v77
    %v110 = vmul.f32 %v78, %v78
    %v111 = vmul.f32 %v79, %v79
    %v112 = vmul.f32 %v80, %v80
    %v113 = vmul.f32 %v81, %v81
    %v114 = vmul.f32 %v82, %v82
    %v115 = vmul.f32 %v83, %v83
    %v116 = vmul.f32 %v84, %v84
    %117 = vadd.xlane.f32.xlu0 %v85
    %v118 = vpop.xlane.xlu0 %117
    %119 = vadd.xlane.f32.xlu0 %v86
    %v120 = vpop.xlane.xlu0 %119
    %121 = vadd.xlane.f32.xlu0 %v87
    %v122 = vpop.xlane.xlu0 %121
    %123 = vadd.xlane.f32.xlu0 %v88
    %v124 = vpop.xlane.xlu0 %123
    %125 = vadd.xlane.f32.xlu0 %v89
    %v126 = vpop.xlane.xlu0 %125
    %127 = vadd.xlane.f32.xlu0 %v90
    %v128 = vpop.xlane.xlu0 %127
    %129 = vadd.xlane.f32.xlu0 %v91
    %v130 = vpop.xlane.xlu0 %129
    %131 = vadd.xlane.f32.xlu0 %v92
    %v132 = vpop.xlane.xlu0 %131
    %133 = vadd.xlane.f32.xlu0 %v93
    %v134 = vpop.xlane.xlu0 %133
    %135 = vadd.xlane.f32.xlu0 %v94
    %v136 = vpop.xlane.xlu0 %135
    %137 = vadd.xlane.f32.xlu0 %v95
    %v138 = vpop.xlane.xlu0 %137
    %139 = vadd.xlane.f32.xlu0 %v96
    %v140 = vpop.xlane.xlu0 %139
    %141 = vadd.xlane.f32.xlu0 %v97
    %v142 = vpop.xlane.xlu0 %141
    %143 = vadd.xlane.f32.xlu0 %v98
    %v144 = vpop.xlane.xlu0 %143
    %145 = vadd.xlane.f32.xlu0 %v99
    %v146 = vpop.xlane.xlu0 %145
    %147 = vadd.xlane.f32.xlu0 %v100
    %v148 = vpop.xlane.xlu0 %147
    %149 = vadd.xlane.f32.xlu0 %v101
    %v150 = vpop.xlane.xlu0 %149
    %151 = vadd.xlane.f32.xlu0 %v102
    %v152 = vpop.xlane.xlu0 %151
    %153 = vadd.xlane.f32.xlu0 %v103
    %v154 = vpop.xlane.xlu0 %153
    %155 = vadd.xlane.f32.xlu0 %v104
    %v156 = vpop.xlane.xlu0 %155
    %157 = vadd.xlane.f32.xlu0 %v105
    %v158 = vpop.xlane.xlu0 %157
    %159 = vadd.xlane.f32.xlu0 %v106
    %v160 = vpop.xlane.xlu0 %159
    %161 = vadd.xlane.f32.xlu0 %v107
    %v162 = vpop.xlane.xlu0 %161
    %163 = vadd.xlane.f32.xlu0 %v108
    %v164 = vpop.xlane.xlu0 %163
    %165 = vadd.xlane.f32.xlu0 %v109
    %v166 = vpop.xlane.xlu0 %165
    %167 = vadd.xlane.f32.xlu0 %v110
    %v168 = vpop.xlane.xlu0 %167
    %169 = vadd.xlane.f32.xlu0 %v111
    %v170 = vpop.xlane.xlu0 %169
    %171 = vadd.xlane.f32.xlu0 %v112
    %v172 = vpop.xlane.xlu0 %171
    %173 = vadd.xlane.f32.xlu0 %v113
    %v174 = vpop.xlane.xlu0 %173
    %175 = vadd.xlane.f32.xlu0 %v114
    %v176 = vpop.xlane.xlu0 %175
    %177 = vadd.xlane.f32.xlu0 %v115
    %v178 = vpop.xlane.xlu0 %177
    %179 = vadd.xlane.f32.xlu0 %v116
    %v180 = vpop.xlane.xlu0 %179
    %v181 = vmax.f32 %v118, 1e-24
    %v182 = vmax.f32 %v120, 1e-24
    %v183 = vmax.f32 %v122, 1e-24
    %v184 = vmax.f32 %v124, 1e-24
    %v185 = vmax.f32 %v126, 1e-24
    %v186 = vmax.f32 %v128, 1e-24
    %v187 = vmax.f32 %v130, 1e-24
    %v188 = vmax.f32 %v132, 1e-24
    %v189 = vmax.f32 %v134, 1e-24
    %v190 = vmax.f32 %v136, 1e-24
    %v191 = vmax.f32 %v138, 1e-24
    %v192 = vmax.f32 %v140, 1e-24
    %v193 = vmax.f32 %v142, 1e-24
    %v194 = vmax.f32 %v144, 1e-24
    %v195 = vmax.f32 %v146, 1e-24
    %v196 = vmax.f32 %v148, 1e-24
    %v197 = vmax.f32 %v150, 1e-24
    %v198 = vmax.f32 %v152, 1e-24
    %v199 = vmax.f32 %v154, 1e-24
    %v200 = vmax.f32 %v156, 1e-24
    %v201 = vmax.f32 %v158, 1e-24
    %v202 = vmax.f32 %v160, 1e-24
    %v203 = vmax.f32 %v162, 1e-24
    %v204 = vmax.f32 %v164, 1e-24
    %v205 = vmax.f32 %v166, 1e-24
    %v206 = vmax.f32 %v168, 1e-24
    %v207 = vmax.f32 %v170, 1e-24
    %v208 = vmax.f32 %v172, 1e-24
    %v209 = vmax.f32 %v174, 1e-24
    %v210 = vmax.f32 %v176, 1e-24
    %v211 = vmax.f32 %v178, 1e-24
    %v212 = vmax.f32 %v180, 1e-24
    %v213 = vrsqrt.pop %v181
    %v214 = vrsqrt.pop %v182
    %v215 = vrsqrt.pop %v183
    %v216 = vrsqrt.pop %v184
    %v217 = vrsqrt.pop %v185
    %v218 = vrsqrt.pop %v186
    %v219 = vrsqrt.pop %v187
    %v220 = vrsqrt.pop %v188
    %v221 = vrsqrt.pop %v189
    %v222 = vrsqrt.pop %v190
    %v223 = vrsqrt.pop %v191
    %v224 = vrsqrt.pop %v192
    %v225 = vrsqrt.pop %v193
    %v226 = vrsqrt.pop %v194
    %v227 = vrsqrt.pop %v195
    %v228 = vrsqrt.pop %v196
    %v229 = vrsqrt.pop %v197
    %v230 = vrsqrt.pop %v198
    %v231 = vrsqrt.pop %v199
    %v232 = vrsqrt.pop %v200
    %v233 = vrsqrt.pop %v201
    %v234 = vrsqrt.pop %v202
    %v235 = vrsqrt.pop %v203
    %v236 = vrsqrt.pop %v204
    %v237 = vrsqrt.pop %v205
    %v238 = vrsqrt.pop %v206
    %v239 = vrsqrt.pop %v207
    %v240 = vrsqrt.pop %v208
    %v241 = vrsqrt.pop %v209
    %v242 = vrsqrt.pop %v210
    %v243 = vrsqrt.pop %v211
    %v244 = vrsqrt.pop %v212
    %v245 = vmul.f32 %v53, %v213
    %v246 = vmul.f32 %v54, %v214
    %v247 = vmul.f32 %v55, %v215
    %v248 = vmul.f32 %v56, %v216
    %v249 = vmul.f32 %v57, %v217
    %v250 = vmul.f32 %v58, %v218
    %v251 = vmul.f32 %v59, %v219
    %v252 = vmul.f32 %v60, %v220
    %v253 = vmul.f32 %v61, %v221
    %v254 = vmul.f32 %v62, %v222
    %v255 = vmul.f32 %v63, %v223
    %v256 = vmul.f32 %v64, %v224
    %v257 = vmul.f32 %v65, %v225
    %v258 = vmul.f32 %v66, %v226
    %v259 = vmul.f32 %v67, %v227
    %v260 = vmul.f32 %v68, %v228
    %v261 = vmul.f32 %v69, %v229
    %v262 = vmul.f32 %v70, %v230
    %v263 = vmul.f32 %v71, %v231
    %v264 = vmul.f32 %v72, %v232
    %v265 = vmul.f32 %v73, %v233
    %v266 = vmul.f32 %v74, %v234
    %v267 = vmul.f32 %v75, %v235
    %v268 = vmul.f32 %v76, %v236
    %v269 = vmul.f32 %v77, %v237
    %v270 = vmul.f32 %v78, %v238
    %v271 = vmul.f32 %v79, %v239
    %v272 = vmul.f32 %v80, %v240
    %v273 = vmul.f32 %v81, %v241
    %v274 = vmul.f32 %v82, %v242
    %v275 = vmul.f32 %v83, %v243
    %v276 = vmul.f32 %v84, %v244
    %v277 = vpack.c.bf16 %v246, %v245
    %v278 = vpack.c.bf16 %v248, %v247
    %v279 = vpack.c.bf16 %v250, %v249
    %v280 = vpack.c.bf16 %v252, %v251
    %v281 = vpack.c.bf16 %v254, %v253
    %v282 = vpack.c.bf16 %v256, %v255
    %v283 = vpack.c.bf16 %v258, %v257
    %v284 = vpack.c.bf16 %v260, %v259
    %v285 = vpack.c.bf16 %v262, %v261
    %v286 = vpack.c.bf16 %v264, %v263
    %v287 = vpack.c.bf16 %v266, %v265
    %v288 = vpack.c.bf16 %v268, %v267
    %v289 = vpack.c.bf16 %v270, %v269
    %v290 = vpack.c.bf16 %v272, %v271
    %v291 = vpack.c.bf16 %v274, %v273
    %v292 = vpack.c.bf16 %v276, %v275
    %293 = vst [vmem:[#allocation2] sm:$0xff] %v277
    %294 = vst [vmem:[#allocation2 + $0x8] sm:$0xff] %v278
    %295 = vst [vmem:[#allocation2 + $0x10] sm:$0xff] %v279
    %296 = vst [vmem:[#allocation2 + $0x18] sm:$0xff] %v280
    %297 = vst [vmem:[#allocation2 + $0x20] sm:$0xff] %v281
    %298 = vst [vmem:[#allocation2 + $0x28] sm:$0xff] %v282
    %299 = vst [vmem:[#allocation2 + $0x30] sm:$0xff] %v283
    %300 = vst [vmem:[#allocation2 + $0x38] sm:$0xff] %v284
    %301 = vst [vmem:[#allocation2 + $0x40] sm:$0xff] %v285
    %302 = vst [vmem:[#allocation2 + $0x48] sm:$0xff] %v286
    %303 = vst [vmem:[#allocation2 + $0x50] sm:$0xff] %v287
    %304 = vst [vmem:[#allocation2 + $0x58] sm:$0xff] %v288
    %305 = vst [vmem:[#allocation2 + $0x60] sm:$0xff] %v289
    %306 = vst [vmem:[#allocation2 + $0x68] sm:$0xff] %v290
    %307 = vst [vmem:[#allocation2 + $0x70] sm:$0xff] %v291
    %308 = vst [vmem:[#allocation2 + $0x78] sm:$0xff] %v292
    %vm309 = vcmask 7168
    %310 = vst.msk [vmem:[#allocation3] sm:$0xff] %vm309, -1e+30
    %311 = vst.msk [vmem:[#allocation3 + $0x8] sm:$0xff] %vm309, -1e+30
    %312 = vst.msk [vmem:[#allocation3 + $0x10] sm:$0xff] %vm309, -1e+30
    %313 = vst.msk [vmem:[#allocation3 + $0x18] sm:$0xff] %vm309, -1e+30
    %314 = vst.msk [vmem:[#allocation3 + $0x20] sm:$0xff] %vm309, -1e+30
    %315 = vst.msk [vmem:[#allocation3 + $0x28] sm:$0xff] %vm309, -1e+30
    %316 = vst.msk [vmem:[#allocation3 + $0x30] sm:$0xff] %vm309, -1e+30
    %317 = vst.msk [vmem:[#allocation3 + $0x38] sm:$0xff] %vm309, -1e+30
    %318 = vst.msk [vmem:[#allocation3 + $0x40] sm:$0xff] %vm309, -1e+30
    %319 = vst.msk [vmem:[#allocation3 + $0x48] sm:$0xff] %vm309, -1e+30
    %320 = vst.msk [vmem:[#allocation3 + $0x50] sm:$0xff] %vm309, -1e+30
    %321 = vst.msk [vmem:[#allocation3 + $0x58] sm:$0xff] %vm309, -1e+30
    %322 = vst.msk [vmem:[#allocation3 + $0x60] sm:$0xff] %vm309, -1e+30
    %323 = vst.msk [vmem:[#allocation3 + $0x68] sm:$0xff] %vm309, -1e+30
    %324 = vst.msk [vmem:[#allocation3 + $0x70] sm:$0xff] %vm309, -1e+30
    %325 = vst.msk [vmem:[#allocation3 + $0x78] sm:$0xff] %vm309, -1e+30
    %326 = vst.msk [vmem:[#allocation3 + $0x80] sm:$0xff] %vm309, -1e+30
    %327 = vst.msk [vmem:[#allocation3 + $0x88] sm:$0xff] %vm309, -1e+30
    %328 = vst.msk [vmem:[#allocation3 + $0x90] sm:$0xff] %vm309, -1e+30
    %329 = vst.msk [vmem:[#allocation3 + $0x98] sm:$0xff] %vm309, -1e+30
    %330 = vst.msk [vmem:[#allocation3 + $0xa0] sm:$0xff] %vm309, -1e+30
    %331 = vst.msk [vmem:[#allocation3 + $0xa8] sm:$0xff] %vm309, -1e+30
    %332 = vst.msk [vmem:[#allocation3 + $0xb0] sm:$0xff] %vm309, -1e+30
    %333 = vst.msk [vmem:[#allocation3 + $0xb8] sm:$0xff] %vm309, -1e+30
    %334 = vst.msk [vmem:[#allocation3 + $0xc0] sm:$0xff] %vm309, -1e+30
    %335 = vst.msk [vmem:[#allocation3 + $0xc8] sm:$0xff] %vm309, -1e+30
    %336 = vst.msk [vmem:[#allocation3 + $0xd0] sm:$0xff] %vm309, -1e+30
    %337 = vst.msk [vmem:[#allocation3 + $0xd8] sm:$0xff] %vm309, -1e+30
    %338 = vst.msk [vmem:[#allocation3 + $0xe0] sm:$0xff] %vm309, -1e+30
    %339 = vst.msk [vmem:[#allocation3 + $0xe8] sm:$0xff] %vm309, -1e+30
    %340 = vst.msk [vmem:[#allocation3 + $0xf0] sm:$0xff] %vm309, -1e+30
    %341 = vst.msk [vmem:[#allocation3 + $0xf8] sm:$0xff] %vm309, -1e+30
    %342 = vst.msk [vmem:[#allocation4] sm:$0xff] %vm309, 0.0
    %343 = vst.msk [vmem:[#allocation4 + $0x8] sm:$0xff] %vm309, 0.0
    %344 = vst.msk [vmem:[#allocation4 + $0x10] sm:$0xff] %vm309, 0.0
    %345 = vst.msk [vmem:[#allocation4 + $0x18] sm:$0xff] %vm309, 0.0
    %346 = vst.msk [vmem:[#allocation4 + $0x20] sm:$0xff] %vm309, 0.0
    %347 = vst.msk [vmem:[#allocation4 + $0x28] sm:$0xff] %vm309, 0.0
    %348 = vst.msk [vmem:[#allocation4 + $0x30] sm:$0xff] %vm309, 0.0
    %349 = vst.msk [vmem:[#allocation4 + $0x38] sm:$0xff] %vm309, 0.0
    %350 = vst.msk [vmem:[#allocation4 + $0x40] sm:$0xff] %vm309, 0.0
    %351 = vst.msk [vmem:[#allocation4 + $0x48] sm:$0xff] %vm309, 0.0
    %352 = vst.msk [vmem:[#allocation4 + $0x50] sm:$0xff] %vm309, 0.0
    %353 = vst.msk [vmem:[#allocation4 + $0x58] sm:$0xff] %vm309, 0.0
    %354 = vst.msk [vmem:[#allocation4 + $0x60] sm:$0xff] %vm309, 0.0
    %355 = vst.msk [vmem:[#allocation4 + $0x68] sm:$0xff] %vm309, 0.0
    %356 = vst.msk [vmem:[#allocation4 + $0x70] sm:$0xff] %vm309, 0.0
    %357 = vst.msk [vmem:[#allocation4 + $0x78] sm:$0xff] %vm309, 0.0
    %358 = vst.msk [vmem:[#allocation4 + $0x80] sm:$0xff] %vm309, 0.0
    %359 = vst.msk [vmem:[#allocation4 + $0x88] sm:$0xff] %vm309, 0.0
    %360 = vst.msk [vmem:[#allocation4 + $0x90] sm:$0xff] %vm309, 0.0
    %361 = vst.msk [vmem:[#allocation4 + $0x98] sm:$0xff] %vm309, 0.0
    %362 = vst.msk [vmem:[#allocation4 + $0xa0] sm:$0xff] %vm309, 0.0
    %363 = vst.msk [vmem:[#allocation4 + $0xa8] sm:$0xff] %vm309, 0.0
    %364 = vst.msk [vmem:[#allocation4 + $0xb0] sm:$0xff] %vm309, 0.0
    %365 = vst.msk [vmem:[#allocation4 + $0xb8] sm:$0xff] %vm309, 0.0
    %366 = vst.msk [vmem:[#allocation4 + $0xc0] sm:$0xff] %vm309, 0.0
    %367 = vst.msk [vmem:[#allocation4 + $0xc8] sm:$0xff] %vm309, 0.0
    %368 = vst.msk [vmem:[#allocation4 + $0xd0] sm:$0xff] %vm309, 0.0
    %369 = vst.msk [vmem:[#allocation4 + $0xd8] sm:$0xff] %vm309, 0.0
    %370 = vst.msk [vmem:[#allocation4 + $0xe0] sm:$0xff] %vm309, 0.0
    %371 = vst.msk [vmem:[#allocation4 + $0xe8] sm:$0xff] %vm309, 0.0
    %372 = vst.msk [vmem:[#allocation4 + $0xf0] sm:$0xff] %vm309, 0.0
    %373 = vst.msk [vmem:[#allocation4 + $0xf8] sm:$0xff] %vm309, 0.0
    %374 = vst.msk [vmem:[#allocation5] sm:$0xff] %vm309, -1e+30
    %375 = vst.msk [vmem:[#allocation5 + $0x8] sm:$0xff] %vm309, -1e+30
    %376 = vst.msk [vmem:[#allocation5 + $0x10] sm:$0xff] %vm309, -1e+30
    %377 = vst.msk [vmem:[#allocation5 + $0x18] sm:$0xff] %vm309, -1e+30
    %378 = vst.msk [vmem:[#allocation5 + $0x20] sm:$0xff] %vm309, -1e+30
    %379 = vst.msk [vmem:[#allocation5 + $0x28] sm:$0xff] %vm309, -1e+30
    %380 = vst.msk [vmem:[#allocation5 + $0x30] sm:$0xff] %vm309, -1e+30
    %381 = vst.msk [vmem:[#allocation5 + $0x38] sm:$0xff] %vm309, -1e+30
    %382 = vst.msk [vmem:[#allocation5 + $0x40] sm:$0xff] %vm309, -1e+30
    %383 = vst.msk [vmem:[#allocation5 + $0x48] sm:$0xff] %vm309, -1e+30
    %384 = vst.msk [vmem:[#allocation5 + $0x50] sm:$0xff] %vm309, -1e+30
    %385 = vst.msk [vmem:[#allocation5 + $0x58] sm:$0xff] %vm309, -1e+30
    %386 = vst.msk [vmem:[#allocation5 + $0x60] sm:$0xff] %vm309, -1e+30
    %387 = vst.msk [vmem:[#allocation5 + $0x68] sm:$0xff] %vm309, -1e+30
    %388 = vst.msk [vmem:[#allocation5 + $0x70] sm:$0xff] %vm309, -1e+30
    %389 = vst.msk [vmem:[#allocation5 + $0x78] sm:$0xff] %vm309, -1e+30
    %390 = vst.msk [vmem:[#allocation5 + $0x80] sm:$0xff] %vm309, -1e+30
    %391 = vst.msk [vmem:[#allocation5 + $0x88] sm:$0xff] %vm309, -1e+30
    %392 = vst.msk [vmem:[#allocation5 + $0x90] sm:$0xff] %vm309, -1e+30
    %393 = vst.msk [vmem:[#allocation5 + $0x98] sm:$0xff] %vm309, -1e+30
    %394 = vst.msk [vmem:[#allocation5 + $0xa0] sm:$0xff] %vm309, -1e+30
    %395 = vst.msk [vmem:[#allocation5 + $0xa8] sm:$0xff] %vm309, -1e+30
    %396 = vst.msk [vmem:[#allocation5 + $0xb0] sm:$0xff] %vm309, -1e+30
    %397 = vst.msk [vmem:[#allocation5 + $0xb8] sm:$0xff] %vm309, -1e+30
    %398 = vst.msk [vmem:[#allocation5 + $0xc0] sm:$0xff] %vm309, -1e+30
    %399 = vst.msk [vmem:[#allocation5 + $0xc8] sm:$0xff] %vm309, -1e+30
    %400 = vst.msk [vmem:[#allocation5 + $0xd0] sm:$0xff] %vm309, -1e+30
    %401 = vst.msk [vmem:[#allocation5 + $0xd8] sm:$0xff] %vm309, -1e+30
    %402 = vst.msk [vmem:[#allocation5 + $0xe0] sm:$0xff] %vm309, -1e+30
    %403 = vst.msk [vmem:[#allocation5 + $0xe8] sm:$0xff] %vm309, -1e+30
    %404 = vst.msk [vmem:[#allocation5 + $0xf0] sm:$0xff] %vm309, -1e+30
    %405 = vst.msk [vmem:[#allocation5 + $0xf8] sm:$0xff] %vm309, -1e+30
  $region17: #{_am_softmax_padded.1} parent=0 // pred_fallthru
    _
  %v406 = vld [vmem:[%s2] sm:$0xff]
  %v407 = vld [vmem:[%s2 + $0x8] sm:$0xff]
  %v408 = vld [vmem:[%s2 + $0x10] sm:$0xff]
  %v409 = vld [vmem:[%s2 + $0x18] sm:$0xff]
  %v410 = vld [vmem:[%s2 + $0x20] sm:$0xff]
  %v411 = vld [vmem:[%s2 + $0x28] sm:$0xff]
  %v412 = vld [vmem:[%s2 + $0x30] sm:$0xff]
  %v413 = vld [vmem:[%s2 + $0x38] sm:$0xff]
  %v414 = vld [vmem:[%s2 + $0x40] sm:$0xff]
  %v415 = vld [vmem:[%s2 + $0x48] sm:$0xff]
  %v416 = vld [vmem:[%s2 + $0x50] sm:$0xff]
  %v417 = vld [vmem:[%s2 + $0x58] sm:$0xff]
  %v418 = vld [vmem:[%s2 + $0x60] sm:$0xff]
  %v419 = vld [vmem:[%s2 + $0x68] sm:$0xff]
  %v420 = vld [vmem:[%s2 + $0x70] sm:$0xff]
  %v421 = vld [vmem:[%s2 + $0x78] sm:$0xff]
  %v422 = vld [vmem:[%s2 + $0x80] sm:$0xff]
  %v423 = vld [vmem:[%s2 + $0x88] sm:$0xff]
  %v424 = vld [vmem:[%s2 + $0x90] sm:$0xff]
  %v425 = vld [vmem:[%s2 + $0x98] sm:$0xff]
  %v426 = vld [vmem:[%s2 + $0xa0] sm:$0xff]
  %v427 = vld [vmem:[%s2 + $0xa8] sm:$0xff]
  %v428 = vld [vmem:[%s2 + $0xb0] sm:$0xff]
  %v429 = vld [vmem:[%s2 + $0xb8] sm:$0xff]
  %v430 = vld [vmem:[%s2 + $0xc0] sm:$0xff]
  %v431 = vld [vmem:[%s2 + $0xc8] sm:$0xff]
  %v432 = vld [vmem:[%s2 + $0xd0] sm:$0xff]
  %v433 = vld [vmem:[%s2 + $0xd8] sm:$0xff]
  %v434 = vld [vmem:[%s2 + $0xe0] sm:$0xff]
  %v435 = vld [vmem:[%s2 + $0xe8] sm:$0xff]
  %v436 = vld [vmem:[%s2 + $0xf0] sm:$0xff]
  %v437 = vld [vmem:[%s2 + $0xf8] sm:$0xff]
  %s438 = smul.u32 0, 384
  %v439 = vlaneseq
  %v440 = vand.u32 %v439, 127
  %v441 = vadd.s32 %v440, 128
  %v442 = vadd.s32 %v440, 256
  %v443 = vstv %s438
  %v444 = vadd.s32 %v443, %v440
  %v445 = vadd.s32 %v443, %v441
  %v446 = vadd.s32 %v443, %v442
  %447 = vset.pattern.permute.xlu0 0
  %448 = vperm.xlu0 %447, %v406
  %v449 = vpop.permute.xlu0 %448
  %450 = vset.pattern.permute.xlu0 0
  %451 = vperm.xlu0 %450, %v407
  %v452 = vpop.permute.xlu0 %451
  %453 = vset.pattern.permute.xlu0 0
  %454 = vperm.xlu0 %453, %v408
  %v455 = vpop.permute.xlu0 %454
  %456 = vset.pattern.permute.xlu0 0
  %457 = vperm.xlu0 %456, %v409
  %v458 = vpop.permute.xlu0 %457
  %459 = vset.pattern.permute.xlu0 0
  %460 = vperm.xlu0 %459, %v410
  %v461 = vpop.permute.xlu0 %460
  %462 = vset.pattern.permute.xlu0 0
  %463 = vperm.xlu0 %462, %v411
  %v464 = vpop.permute.xlu0 %463
  %465 = vset.pattern.permute.xlu0 0
  %466 = vperm.xlu0 %465, %v412
  %v467 = vpop.permute.xlu0 %466
  %468 = vset.pattern.permute.xlu0 0
  %469 = vperm.xlu0 %468, %v413
  %v470 = vpop.permute.xlu0 %469
  %471 = vset.pattern.permute.xlu0 0
  %472 = vperm.xlu0 %471, %v414
  %v473 = vpop.permute.xlu0 %472
  %474 = vset.pattern.permute.xlu0 0
  %475 = vperm.xlu0 %474, %v415
  %v476 = vpop.permute.xlu0 %475
  %477 = vset.pattern.permute.xlu0 0
  %478 = vperm.xlu0 %477, %v416
  %v479 = vpop.permute.xlu0 %478
  %480 = vset.pattern.permute.xlu0 0
  %481 = vperm.xlu0 %480, %v417
  %v482 = vpop.permute.xlu0 %481
  %483 = vset.pattern.permute.xlu0 0
  %484 = vperm.xlu0 %483, %v418
  %v485 = vpop.permute.xlu0 %484
  %486 = vset.pattern.permute.xlu0 0
  %487 = vperm.xlu0 %486, %v419
  %v488 = vpop.permute.xlu0 %487
  %489 = vset.pattern.permute.xlu0 0
  %490 = vperm.xlu0 %489, %v420
  %v491 = vpop.permute.xlu0 %490
  %492 = vset.pattern.permute.xlu0 0
  %493 = vperm.xlu0 %492, %v421
  %v494 = vpop.permute.xlu0 %493
  %495 = vset.pattern.permute.xlu0 0
  %496 = vperm.xlu0 %495, %v422
  %v497 = vpop.permute.xlu0 %496
  %498 = vset.pattern.permute.xlu0 0
  %499 = vperm.xlu0 %498, %v423
  %v500 = vpop.permute.xlu0 %499
  %501 = vset.pattern.permute.xlu0 0
  %502 = vperm.xlu0 %501, %v424
  %v503 = vpop.permute.xlu0 %502
  %504 = vset.pattern.permute.xlu0 0
  %505 = vperm.xlu0 %504, %v425
  %v506 = vpop.permute.xlu0 %505
  %507 = vset.pattern.permute.xlu0 0
  %508 = vperm.xlu0 %507, %v426
  %v509 = vpop.permute.xlu0 %508
  %510 = vset.pattern.permute.xlu0 0
  %511 = vperm.xlu0 %510, %v427
  %v512 = vpop.permute.xlu0 %511
  %513 = vset.pattern.permute.xlu0 0
  %514 = vperm.xlu0 %513, %v428
  %v515 = vpop.permute.xlu0 %514
  %516 = vset.pattern.permute.xlu0 0
  %517 = vperm.xlu0 %516, %v429
  %v518 = vpop.permute.xlu0 %517
  %519 = vset.pattern.permute.xlu0 0
  %520 = vperm.xlu0 %519, %v430
  %v521 = vpop.permute.xlu0 %520
  %522 = vset.pattern.permute.xlu0 0
  %523 = vperm.xlu0 %522, %v431
  %v524 = vpop.permute.xlu0 %523
  %525 = vset.pattern.permute.xlu0 0
  %526 = vperm.xlu0 %525, %v432
  %v527 = vpop.permute.xlu0 %526
  %528 = vset.pattern.permute.xlu0 0
  %529 = vperm.xlu0 %528, %v433
  %v530 = vpop.permute.xlu0 %529
  %531 = vset.pattern.permute.xlu0 0
  %532 = vperm.xlu0 %531, %v434
  %v533 = vpop.permute.xlu0 %532
  %534 = vset.pattern.permute.xlu0 0
  %535 = vperm.xlu0 %534, %v435
  %v536 = vpop.permute.xlu0 %535
  %537 = vset.pattern.permute.xlu0 0
  %538 = vperm.xlu0 %537, %v436
  %v539 = vpop.permute.xlu0 %538
  %540 = vset.pattern.permute.xlu0 0
  %541 = vperm.xlu0 %540, %v437
  %v542 = vpop.permute.xlu0 %541
  %vm543 = vcmp.eq.s32.totalorder %v444, %v449
  %vm544 = vcmp.eq.s32.totalorder %v445, %v449
  %vm545 = vcmp.eq.s32.totalorder %v446, %v449
  %vm546 = vcmp.eq.s32.totalorder %v444, %v452
  %vm547 = vcmp.eq.s32.totalorder %v445, %v452
  %vm548 = vcmp.eq.s32.totalorder %v446, %v452
  %vm549 = vcmp.eq.s32.totalorder %v444, %v455
  %vm550 = vcmp.eq.s32.totalorder %v445, %v455
  %vm551 = vcmp.eq.s32.totalorder %v446, %v455
  %vm552 = vcmp.eq.s32.totalorder %v444, %v458
  %vm553 = vcmp.eq.s32.totalorder %v445, %v458
  %vm554 = vcmp.eq.s32.totalorder %v446, %v458
  %vm555 = vcmp.eq.s32.totalorder %v444, %v461
  %vm556 = vcmp.eq.s32.totalorder %v445, %v461
  %vm557 = vcmp.eq.s32.totalorder %v446, %v461
  %vm558 = vcmp.eq.s32.totalorder %v444, %v464
  %vm559 = vcmp.eq.s32.totalorder %v445, %v464
  %vm560 = vcmp.eq.s32.totalorder %v446, %v464
  %vm561 = vcmp.eq.s32.totalorder %v444, %v467
  %vm562 = vcmp.eq.s32.totalorder %v445, %v467
  %vm563 = vcmp.eq.s32.totalorder %v446, %v467
  %vm564 = vcmp.eq.s32.totalorder %v444, %v470
  %vm565 = vcmp.eq.s32.totalorder %v445, %v470
  %vm566 = vcmp.eq.s32.totalorder %v446, %v470
  %vm567 = vcmp.eq.s32.totalorder %v444, %v473
  %vm568 = vcmp.eq.s32.totalorder %v445, %v473
  %vm569 = vcmp.eq.s32.totalorder %v446, %v473
  %vm570 = vcmp.eq.s32.totalorder %v444, %v476
  %vm571 = vcmp.eq.s32.totalorder %v445, %v476
  %vm572 = vcmp.eq.s32.totalorder %v446, %v476
  %vm573 = vcmp.eq.s32.totalorder %v444, %v479
  %vm574 = vcmp.eq.s32.totalorder %v445, %v479
  %vm575 = vcmp.eq.s32.totalorder %v446, %v479
  %vm576 = vcmp.eq.s32.totalorder %v444, %v482
  %vm577 = vcmp.eq.s32.totalorder %v445, %v482
  %vm578 = vcmp.eq.s32.totalorder %v446, %v482
  %vm579 = vcmp.eq.s32.totalorder %v444, %v485
  %vm580 = vcmp.eq.s32.totalorder %v445, %v485
  %vm581 = vcmp.eq.s32.totalorder %v446, %v485
  %vm582 = vcmp.eq.s32.totalorder %v444, %v488
  %vm583 = vcmp.eq.s32.totalorder %v445, %v488
  %vm584 = vcmp.eq.s32.totalorder %v446, %v488
  %vm585 = vcmp.eq.s32.totalorder %v444, %v491
  %vm586 = vcmp.eq.s32.totalorder %v445, %v491
  %vm587 = vcmp.eq.s32.totalorder %v446, %v491
  %vm588 = vcmp.eq.s32.totalorder %v444, %v494
  %vm589 = vcmp.eq.s32.totalorder %v445, %v494
  %vm590 = vcmp.eq.s32.totalorder %v446, %v494
  %vm591 = vcmp.eq.s32.totalorder %v444, %v497
  %vm592 = vcmp.eq.s32.totalorder %v445, %v497
  %vm593 = vcmp.eq.s32.totalorder %v446, %v497
  %vm594 = vcmp.eq.s32.totalorder %v444, %v500
  %vm595 = vcmp.eq.s32.totalorder %v445, %v500
  %vm596 = vcmp.eq.s32.totalorder %v446, %v500
  %vm597 = vcmp.eq.s32.totalorder %v444, %v503
  %vm598 = vcmp.eq.s32.totalorder %v445, %v503
  %vm599 = vcmp.eq.s32.totalorder %v446, %v503
  %vm600 = vcmp.eq.s32.totalorder %v444, %v506
  %vm601 = vcmp.eq.s32.totalorder %v445, %v506
  %vm602 = vcmp.eq.s32.totalorder %v446, %v506
  %vm603 = vcmp.eq.s32.totalorder %v444, %v509
  %vm604 = vcmp.eq.s32.totalorder %v445, %v509
  %vm605 = vcmp.eq.s32.totalorder %v446, %v509
  %vm606 = vcmp.eq.s32.totalorder %v444, %v512
  %vm607 = vcmp.eq.s32.totalorder %v445, %v512
  %vm608 = vcmp.eq.s32.totalorder %v446, %v512
  %vm609 = vcmp.eq.s32.totalorder %v444, %v515
  %vm610 = vcmp.eq.s32.totalorder %v445, %v515
  %vm611 = vcmp.eq.s32.totalorder %v446, %v515
  %vm612 = vcmp.eq.s32.totalorder %v444, %v518
  %vm613 = vcmp.eq.s32.totalorder %v445, %v518
  %vm614 = vcmp.eq.s32.totalorder %v446, %v518
  %vm615 = vcmp.eq.s32.totalorder %v444, %v521
  %vm616 = vcmp.eq.s32.totalorder %v445, %v521
  %vm617 = vcmp.eq.s32.totalorder %v446, %v521
  %vm618 = vcmp.eq.s32.totalorder %v444, %v524
  %vm619 = vcmp.eq.s32.totalorder %v445, %v524
  %vm620 = vcmp.eq.s32.totalorder %v446, %v524
  %vm621 = vcmp.eq.s32.totalorder %v444, %v527
  %vm622 = vcmp.eq.s32.totalorder %v445, %v527
  %vm623 = vcmp.eq.s32.totalorder %v446, %v527
  %vm624 = vcmp.eq.s32.totalorder %v444, %v530
  %vm625 = vcmp.eq.s32.totalorder %v445, %v530
  %vm626 = vcmp.eq.s32.totalorder %v446, %v530
  %vm627 = vcmp.eq.s32.totalorder %v444, %v533
  %vm628 = vcmp.eq.s32.totalorder %v445, %v533
  %vm629 = vcmp.eq.s32.totalorder %v446, %v533
  %vm630 = vcmp.eq.s32.totalorder %v444, %v536
  %vm631 = vcmp.eq.s32.totalorder %v445, %v536
  %vm632 = vcmp.eq.s32.totalorder %v446, %v536
  %vm633 = vcmp.eq.s32.totalorder %v444, %v539
  %vm634 = vcmp.eq.s32.totalorder %v445, %v539
  %vm635 = vcmp.eq.s32.totalorder %v446, %v539
  %vm636 = vcmp.eq.s32.totalorder %v444, %v542
  %vm637 = vcmp.eq.s32.totalorder %v445, %v542
  %vm638 = vcmp.eq.s32.totalorder %v446, %v542
  %v639 = vld [vmem:[#allocation2] sm:$0xff]
  %v640 = vld [vmem:[#allocation2 + $0x8] sm:$0xff]
  %v641 = vld [vmem:[#allocation2 + $0x10] sm:$0xff]
  %v642 = vld [vmem:[#allocation2 + $0x18] sm:$0xff]
  %v643 = vld [vmem:[#allocation2 + $0x20] sm:$0xff]
  %v644 = vld [vmem:[#allocation2 + $0x28] sm:$0xff]
  %v645 = vld [vmem:[#allocation2 + $0x30] sm:$0xff]
  %v646 = vld [vmem:[#allocation2 + $0x38] sm:$0xff]
  %v647 = vld [vmem:[#allocation2 + $0x40] sm:$0xff]
  %v648 = vld [vmem:[#allocation2 + $0x48] sm:$0xff]
  %v649 = vld [vmem:[#allocation2 + $0x50] sm:$0xff]
  %v650 = vld [vmem:[#allocation2 + $0x58] sm:$0xff]
  %v651 = vld [vmem:[#allocation2 + $0x60] sm:$0xff]
  %v652 = vld [vmem:[#allocation2 + $0x68] sm:$0xff]
  %v653 = vld [vmem:[#allocation2 + $0x70] sm:$0xff]
  %v654 = vld [vmem:[#allocation2 + $0x78] sm:$0xff]
  %v655 = vld [vmem:[%s1] sm:$0xff]
  %v656 = vld [vmem:[%s1 + $0x8] sm:$0xf]
  %v657 = vld [vmem:[%s1 + $0xc] sm:$0xff]
  %v658 = vld [vmem:[%s1 + $0x14] sm:$0xf]
  %v659 = vld [vmem:[%s1 + $0x18] sm:$0xff]
  %v660 = vld [vmem:[%s1 + $0x20] sm:$0xf]
  %v661 = vld [vmem:[%s1 + $0x24] sm:$0xff]
  %v662 = vld [vmem:[%s1 + $0x2c] sm:$0xf]
  %v663 = vld [vmem:[%s1 + $0x30] sm:$0xff]
  %v664 = vld [vmem:[%s1 + $0x38] sm:$0xf]
  %v665 = vld [vmem:[%s1 + $0x3c] sm:$0xff]
  %v666 = vld [vmem:[%s1 + $0x44] sm:$0xf]
  %v667 = vld [vmem:[%s1 + $0x48] sm:$0xff]
  %v668 = vld [vmem:[%s1 + $0x50] sm:$0xf]
  %v669 = vld [vmem:[%s1 + $0x54] sm:$0xff]
  %v670 = vld [vmem:[%s1 + $0x5c] sm:$0xf]
  %v671 = vld [vmem:[%s1 + $0x60] sm:$0xff]
  %v672 = vld [vmem:[%s1 + $0x68] sm:$0xf]
  %v673 = vld [vmem:[%s1 + $0x6c] sm:$0xff]
  %v674 = vld [vmem:[%s1 + $0x74] sm:$0xf]
  %v675 = vld [vmem:[%s1 + $0x78] sm:$0xff]
  %v676 = vld [vmem:[%s1 + $0x80] sm:$0xf]
  %v677 = vld [vmem:[%s1 + $0x84] sm:$0xff]
  %v678 = vld [vmem:[%s1 + $0x8c] sm:$0xf]
  %v679 = vld [vmem:[%s1 + $0x90] sm:$0xff]
  %v680 = vld [vmem:[%s1 + $0x98] sm:$0xf]
  %v681 = vld [vmem:[%s1 + $0x9c] sm:$0xff]
  %v682 = vld [vmem:[%s1 + $0xa4] sm:$0xf]
  %v683 = vld [vmem:[%s1 + $0xa8] sm:$0xff]
  %v684 = vld [vmem:[%s1 + $0xb0] sm:$0xf]
  %v685 = vld [vmem:[%s1 + $0xb4] sm:$0xff]
  %v686 = vld [vmem:[%s1 + $0xbc] sm:$0xf]
  %v719 = vunpack.c.l.b16 %v655
  %v720 = vunpack.c.h.b16 %v655
  %v721 = vunpack.c.l.b16 %v656
  %v722 = vunpack.c.l.b16 %v657
  %v723 = vunpack.c.h.b16 %v657
  %v724 = vunpack.c.l.b16 %v658
  %v725 = vunpack.c.l.b16 %v659
  %v726 = vunpack.c.h.b16 %v659
  %v727 = vunpack.c.l.b16 %v660
  %v728 = vunpack.c.l.b16 %v661
  %v729 = vunpack.c.h.b16 %v661
  %v730 = vunpack.c.l.b16 %v662
  %v731 = vunpack.c.l.b16 %v663
  %v732 = vunpack.c.h.b16 %v663
  %v733 = vunpack.c.l.b16 %v664
  %v734 = vunpack.c.l.b16 %v665
  %v735 = vunpack.c.h.b16 %v665
  %v736 = vunpack.c.l.b16 %v666
  %v737 = vunpack.c.l.b16 %v667
  %v738 = vunpack.c.h.b16 %v667
  %v739 = vunpack.c.l.b16 %v668
  %v740 = vunpack.c.l.b16 %v669
  %v741 = vunpack.c.h.b16 %v669
  %v742 = vunpack.c.l.b16 %v670
  %v743 = vunpack.c.l.b16 %v671
  %v744 = vunpack.c.h.b16 %v671
  %v745 = vunpack.c.l.b16 %v672
  %v746 = vunpack.c.l.b16 %v673
  %v747 = vunpack.c.h.b16 %v673
  %v748 = vunpack.c.l.b16 %v674
  %v749 = vunpack.c.l.b16 %v675
  %v750 = vunpack.c.h.b16 %v675
  %v751 = vunpack.c.l.b16 %v676
  %v752 = vunpack.c.l.b16 %v677
  %v753 = vunpack.c.h.b16 %v677
  %v754 = vunpack.c.l.b16 %v678
  %v755 = vunpack.c.l.b16 %v679
  %v756 = vunpack.c.h.b16 %v679
  %v757 = vunpack.c.l.b16 %v680
  %v758 = vunpack.c.l.b16 %v681
  %v759 = vunpack.c.h.b16 %v681
  %v760 = vunpack.c.l.b16 %v682
  %v761 = vunpack.c.l.b16 %v683
  %v762 = vunpack.c.h.b16 %v683
  %v763 = vunpack.c.l.b16 %v684
  %v764 = vunpack.c.l.b16 %v685
  %v765 = vunpack.c.h.b16 %v685
  %v766 = vunpack.c.l.b16 %v686
  %v767 = vpack.c.b16 %v722, %v719
  %v768 = vpack.c.b16 %v723, %v720
  %v769 = vpack.c.b16 %v724, %v721
  %v770 = vpack.c.b16 %v728, %v725
  %v771 = vpack.c.b16 %v729, %v726
  %v772 = vpack.c.b16 %v730, %v727
  %v773 = vpack.c.b16 %v734, %v731
  %v774 = vpack.c.b16 %v735, %v732
  %v775 = vpack.c.b16 %v736, %v733
  %v776 = vpack.c.b16 %v740, %v737
  %v777 = vpack.c.b16 %v741, %v738
  %v778 = vpack.c.b16 %v742, %v739
  %v779 = vpack.c.b16 %v746, %v743
  %v780 = vpack.c.b16 %v747, %v744
  %v781 = vpack.c.b16 %v748, %v745
  %v782 = vpack.c.b16 %v752, %v749
  %v783 = vpack.c.b16 %v753, %v750
  %v784 = vpack.c.b16 %v754, %v751
  %v785 = vpack.c.b16 %v758, %v755
  %v786 = vpack.c.b16 %v759, %v756
  %v787 = vpack.c.b16 %v760, %v757
  %v788 = vpack.c.b16 %v764, %v761
  %v789 = vpack.c.b16 %v765, %v762
  %v790 = vpack.c.b16 %v766, %v763
  %815 = vmatprep.subr.bf16.mxu0 %v768
  %816 = vmatpush1.bf16.msra.mxu0 %v767
  %817 = vmatprep.subr.bf16.mxu0 %v771
  %818 = vmatpush1.bf16.msra.mxu0 %v770
  %819 = vmatprep.subr.bf16.mxu0 %v774
  %820 = vmatpush1.bf16.msra.mxu0 %v773
  %821 = vmatprep.subr.bf16.mxu0 %v777
  %822 = vmatpush1.bf16.msra.mxu0 %v776
  %823 = vmatprep.subr.bf16.mxu0 %v780
  %824 = vmatpush1.bf16.msra.mxu0 %v779
  %825 = vmatprep.subr.bf16.mxu0 %v783
  %826 = vmatpush1.bf16.msra.mxu0 %v782
  %827 = vmatprep.subr.bf16.mxu0 %v786
  %828 = vmatpush1.bf16.msra.mxu0 %v785
  %829 = vmatprep.subr.bf16.mxu0 %v789
  %830 = vmatpush1.bf16.msra.mxu0 %v788
  %831 = vmatprep.subr.bf16.mxu0 0
  %832 = vmatpush1.bf16.msra.mxu0 0
  %833 = vmatprep.subr.bf16.mxu0 0
  %834 = vmatpush1.bf16.msra.mxu0 0
  %835 = vmatprep.subr.bf16.mxu0 0
  %836 = vmatpush1.bf16.msra.mxu0 0
  %837 = vmatprep.subr.bf16.mxu0 0
  %838 = vmatpush1.bf16.msra.mxu0 0
  %839 = vmatprep.subr.bf16.mxu0 0
  %840 = vmatpush1.bf16.msra.mxu0 0
  %841 = vmatprep.subr.bf16.mxu0 0
  %842 = vmatpush1.bf16.msra.mxu0 0
  %843 = vmatprep.subr.bf16.mxu0 0
  %844 = vmatpush1.bf16.msra.mxu0 0
  %845 = vmatprep.subr.bf16.mxu0 0
  %846 = vmatpush1.bf16.msra.mxu0 0
  %847 = vmatprep.mubr.bf16.mxu0 0
  %848 = vmatmul.mubr.bf16.gmra.mrb[0].mxu0 %v639
  %v849 = vpop.f32.mrb[0].mxu0
  %v850 = vadd.f32 0.0, %v849
  %v851 = vpop.f32.mrb[0].mxu0
  %v852 = vadd.f32 0.0, %v851
  %v853 = vpop.f32.mrb[0].mxu0
  %v854 = vadd.f32 0.0, %v853
  %v855 = vpop.f32.mrb[0].mxu0
  %v856 = vadd.f32 0.0, %v855
  %857 = vmatprep.mubr.bf16.mxu0 0
  %858 = vmatmul.mubr.bf16.gmra.mrb[0].mxu0 %v640
  %v859 = vpop.f32.mrb[0].mxu0
  %v860 = vadd.f32 0.0, %v859
  %v861 = vpop.f32.mrb[0].mxu0
  %v862 = vadd.f32 0.0, %v861
  %v863 = vpop.f32.mrb[0].mxu0
  %v864 = vadd.f32 0.0, %v863
  %v865 = vpop.f32.mrb[0].mxu0
  %v866 = vadd.f32 0.0, %v865
  %867 = vmatprep.mubr.bf16.mxu0 0
  %868 = vmatmul.mubr.bf16.gmra.mrb[0].mxu0 %v641
  %v869 = vpop.f32.mrb[0].mxu0
  %v870 = vadd.f32 0.0, %v869
  %v871 = vpop.f32.mrb[0].mxu0
  %v872 = vadd.f32 0.0, %v871
  %v873 = vpop.f32.mrb[0].mxu0
  %v874 = vadd.f32 0.0, %v873
  %v875 = vpop.f32.mrb[0].mxu0
  %v876 = vadd.f32 0.0, %v875
  %877 = vmatprep.mubr.bf16.mxu0 0
  %878 = vmatmul.mubr.bf16.gmra.mrb[0].mxu0 %v642
  %v879 = vpop.f32.mrb[0].mxu0
  %v880 = vadd.f32 0.0, %v879
  %v881 = vpop.f32.mrb[0].mxu0
  %v882 = vadd.f32 0.0, %v881
  %v883 = vpop.f32.mrb[0].mxu0
  %v884 = vadd.f32 0.0, %v883
  %v885 = vpop.f32.mrb[0].mxu0
  %v886 = vadd.f32 0.0, %v885
  %887 = vmatprep.mubr.bf16.mxu0 0
  %888 = vmatmul.mubr.bf16.gmra.mrb[0].mxu0 %v643
  %v889 = vpop.f32.mrb[0].mxu0
  %v890 = vadd.f32 0.0, %v889
  %v891 = vpop.f32.mrb[0].mxu0
  %v892 = vadd.f32 0.0, %v891
  %v893 = vpop.f32.mrb[0].mxu0
  %v894 = vadd.f32 0.0, %v893
  %v895 = vpop.f32.mrb[0].mxu0
  %v896 = vadd.f32 0.0, %v895
  %897 = vmatprep.mubr.bf16.mxu0 0
  %898 = vmatmul.mubr.bf16.gmra.mrb[0].mxu0 %v644
  %v899 = vpop.f32.mrb[0].mxu0
  %v900 = vadd.f32 0.0, %v899
  %v901 = vpop.f32.mrb[0].mxu0
  %v902 = vadd.f32 0.0, %v901
  %v903 = vpop.f32.mrb[0].mxu0
  %v904 = vadd.f32 0.0, %v903
  %v905 = vpop.f32.mrb[0].mxu0
  %v906 = vadd.f32 0.0, %v905
  %907 = vmatprep.mubr.bf16.mxu0 0
  %908 = vmatmul.mubr.bf16.gmra.mrb[0].mxu0 %v645
  %v909 = vpop.f32.mrb[0].mxu0
  %v910 = vadd.f32 0.0, %v909
  %v911 = vpop.f32.mrb[0].mxu0
  %v912 = vadd.f32 0.0, %v911
  %v913 = vpop.f32.mrb[0].mxu0
  %v914 = vadd.f32 0.0, %v913
  %v915 = vpop.f32.mrb[0].mxu0
  %v916 = vadd.f32 0.0, %v915
  %917 = vmatprep.mubr.bf16.mxu0 0
  %918 = vmatmul.mubr.bf16.gmra.mrb[0].mxu0 %v646
  %v919 = vpop.f32.mrb[0].mxu0
  %v920 = vadd.f32 0.0, %v919
  %v921 = vpop.f32.mrb[0].mxu0
  %v922 = vadd.f32 0.0, %v921
  %v923 = vpop.f32.mrb[0].mxu0
  %v924 = vadd.f32 0.0, %v923
  %v925 = vpop.f32.mrb[0].mxu0
  %v926 = vadd.f32 0.0, %v925
  %927 = vmatprep.mubr.bf16.mxu0 0
  %928 = vmatmul.mubr.bf16.gmra.mrb[0].mxu0 %v647
  %v929 = vpop.f32.mrb[0].mxu0
  %v930 = vadd.f32 0.0, %v929
  %v931 = vpop.f32.mrb[0].mxu0
  %v932 = vadd.f32 0.0, %v931
  %v933 = vpop.f32.mrb[0].mxu0
  %v934 = vadd.f32 0.0, %v933
  %v935 = vpop.f32.mrb[0].mxu0
  %v936 = vadd.f32 0.0, %v935
  %937 = vmatprep.mubr.bf16.mxu0 0
  %938 = vmatmul.mubr.bf16.gmra.mrb[0].mxu0 %v648
  %v939 = vpop.f32.mrb[0].mxu0
  %v940 = vadd.f32 0.0, %v939
  %v941 = vpop.f32.mrb[0].mxu0
  %v942 = vadd.f32 0.0, %v941
  %v943 = vpop.f32.mrb[0].mxu0
  %v944 = vadd.f32 0.0, %v943
  %v945 = vpop.f32.mrb[0].mxu0
  %v946 = vadd.f32 0.0, %v945
  %947 = vmatprep.mubr.bf16.mxu0 0
  %948 = vmatmul.mubr.bf16.gmra.mrb[0].mxu0 %v649
  %v949 = vpop.f32.mrb[0].mxu0
  %v950 = vadd.f32 0.0, %v949
  %v951 = vpop.f32.mrb[0].mxu0
  %v952 = vadd.f32 0.0, %v951
  %v953 = vpop.f32.mrb[0].mxu0
  %v954 = vadd.f32 0.0, %v953
  %v955 = vpop.f32.mrb[0].mxu0
  %v956 = vadd.f32 0.0, %v955
  %957 = vmatprep.mubr.bf16.mxu0 0
  %958 = vmatmul.mubr.bf16.gmra.mrb[0].mxu0 %v650
  %v959 = vpop.f32.mrb[0].mxu0
  %v960 = vadd.f32 0.0, %v959
  %v961 = vpop.f32.mrb[0].mxu0
  %v962 = vadd.f32 0.0, %v961
  %v963 = vpop.f32.mrb[0].mxu0
  %v964 = vadd.f32 0.0, %v963
  %v965 = vpop.f32.mrb[0].mxu0
  %v966 = vadd.f32 0.0, %v965
  %967 = vmatprep.mubr.bf16.mxu0 0
  %968 = vmatmul.mubr.bf16.gmra.mrb[0].mxu0 %v651
  %v969 = vpop.f32.mrb[0].mxu0
  %v970 = vadd.f32 0.0, %v969
  %v971 = vpop.f32.mrb[0].mxu0
  %v972 = vadd.f32 0.0, %v971
  %v973 = vpop.f32.mrb[0].mxu0
  %v974 = vadd.f32 0.0, %v973
  %v975 = vpop.f32.mrb[0].mxu0
  %v976 = vadd.f32 0.0, %v975
  %977 = vmatprep.mubr.bf16.mxu0 0
  %978 = vmatmul.mubr.bf16.gmra.mrb[0].mxu0 %v652
  %v979 = vpop.f32.mrb[0].mxu0
  %v980 = vadd.f32 0.0, %v979
  %v981 = vpop.f32.mrb[0].mxu0
  %v982 = vadd.f32 0.0, %v981
  %v983 = vpop.f32.mrb[0].mxu0
  %v984 = vadd.f32 0.0, %v983
  %v985 = vpop.f32.mrb[0].mxu0
  %v986 = vadd.f32 0.0, %v985
  %987 = vmatprep.mubr.bf16.mxu0 0
  %988 = vmatmul.mubr.bf16.gmra.mrb[0].mxu0 %v653
  %v989 = vpop.f32.mrb[0].mxu0
  %v990 = vadd.f32 0.0, %v989
  %v991 = vpop.f32.mrb[0].mxu0
  %v992 = vadd.f32 0.0, %v991
  %v993 = vpop.f32.mrb[0].mxu0
  %v994 = vadd.f32 0.0, %v993
  %v995 = vpop.f32.mrb[0].mxu0
  %v996 = vadd.f32 0.0, %v995
  %997 = vmatprep.mubr.bf16.mxu0 0
  %998 = vmatmul.mubr.bf16.gmra.mrb[0].mxu0 %v654
  %v999 = vpop.f32.mrb[0].mxu0
  %v1000 = vadd.f32 0.0, %v999
  %v1001 = vpop.f32.mrb[0].mxu0
  %v1002 = vadd.f32 0.0, %v1001
  %v1003 = vpop.f32.mrb[0].mxu0
  %v1004 = vadd.f32 0.0, %v1003
  %v1005 = vpop.f32.mrb[0].mxu0
  %v1006 = vadd.f32 0.0, %v1005
  %1007 = vdwg.mxu0
  %1008 = vmatprep.subr.bf16.mxu0 0
  %1009 = vmatpush1.bf16.msra.mxu0 %v769
  %1010 = vmatprep.subr.bf16.mxu0 0
  %1011 = vmatpush1.bf16.msra.mxu0 %v772
  %1012 = vmatprep.subr.bf16.mxu0 0
  %1013 = vmatpush1.bf16.msra.mxu0 %v775
  %1014 = vmatprep.subr.bf16.mxu0 0
  %1015 = vmatpush1.bf16.msra.mxu0 %v778
  %1016 = vmatprep.subr.bf16.mxu0 0
  %1017 = vmatpush1.bf16.msra.mxu0 %v781
  %1018 = vmatprep.subr.bf16.mxu0 0
  %1019 = vmatpush1.bf16.msra.mxu0 %v784
  %1020 = vmatprep.subr.bf16.mxu0 0
  %1021 = vmatpush1.bf16.msra.mxu0 %v787
  %1022 = vmatprep.subr.bf16.mxu0 0
  %1023 = vmatpush1.bf16.msra.mxu0 %v790
  %1024 = vmatprep.subr.bf16.mxu0 0
  %1025 = vmatpush1.bf16.msra.mxu0 0
  %1026 = vmatprep.subr.bf16.mxu0 0
  %1027 = vmatpush1.bf16.msra.mxu0 0
  %1028 = vmatprep.subr.bf16.mxu0 0
  %1029 = vmatpush1.bf16.msra.mxu0 0
  %1030 = vmatprep.subr.bf16.mxu0 0
  %1031 = vmatpush1.bf16.msra.mxu0 0
  %1032 = vmatprep.subr.bf16.mxu0 0
  %1033 = vmatpush1.bf16.msra.mxu0 0
  %1034 = vmatprep.subr.bf16.mxu0 0
  %1035 = vmatpush1.bf16.msra.mxu0 0
  %1036 = vmatprep.subr.bf16.mxu0 0
  %1037 = vmatpush1.bf16.msra.mxu0 0
  %1038 = vmatprep.subr.bf16.mxu0 0
  %1039 = vmatpush1.bf16.msra.mxu0 0
  %1040 = vmatprep.mubr.bf16.mxu0 0
  %1041 = vmatmul.mubr.bf16.gmra.mrb[0].mxu0 %v639
  %v1042 = vpop.f32.mrb[0].mxu0
  %v1043 = vadd.f32 0.0, %v1042
  %v1044 = vpop.f32.mrb[0].mxu0
  %v1045 = vpop.f32.mrb[0].mxu0
  %v1046 = vadd.f32 0.0, %v1045
  %v1047 = vpop.f32.mrb[0].mxu0
  %1048 = vmatprep.mubr.bf16.mxu0 0
  %1049 = vmatmul.mubr.bf16.gmra.mrb[0].mxu0 %v640
  %v1050 = vpop.f32.mrb[0].mxu0
  %v1051 = vadd.f32 0.0, %v1050
  %v1052 = vpop.f32.mrb[0].mxu0
  %v1053 = vpop.f32.mrb[0].mxu0
  %v1054 = vadd.f32 0.0, %v1053
  %v1055 = vpop.f32.mrb[0].mxu0
  %1056 = vmatprep.mubr.bf16.mxu0 0
  %1057 = vmatmul.mubr.bf16.gmra.mrb[0].mxu0 %v641
  %v1058 = vpop.f32.mrb[0].mxu0
  %v1059 = vadd.f32 0.0, %v1058
  %v1060 = vpop.f32.mrb[0].mxu0
  %v1061 = vpop.f32.mrb[0].mxu0
  %v1062 = vadd.f32 0.0, %v1061
  %v1063 = vpop.f32.mrb[0].mxu0
  %1064 = vmatprep.mubr.bf16.mxu0 0
  %1065 = vmatmul.mubr.bf16.gmra.mrb[0].mxu0 %v642
  %v1066 = vpop.f32.mrb[0].mxu0
  %v1067 = vadd.f32 0.0, %v1066
  %v1068 = vpop.f32.mrb[0].mxu0
  %v1069 = vpop.f32.mrb[0].mxu0
  %v1070 = vadd.f32 0.0, %v1069
  %v1071 = vpop.f32.mrb[0].mxu0
  %1072 = vmatprep.mubr.bf16.mxu0 0
  %1073 = vmatmul.mubr.bf16.gmra.mrb[0].mxu0 %v643
  %v1074 = vpop.f32.mrb[0].mxu0
  %v1075 = vadd.f32 0.0, %v1074
  %v1076 = vpop.f32.mrb[0].mxu0
  %v1077 = vpop.f32.mrb[0].mxu0
  %v1078 = vadd.f32 0.0, %v1077
  %v1079 = vpop.f32.mrb[0].mxu0
  %1080 = vmatprep.mubr.bf16.mxu0 0
  %1081 = vmatmul.mubr.bf16.gmra.mrb[0].mxu0 %v644
  %v1082 = vpop.f32.mrb[0].mxu0
  %v1083 = vadd.f32 0.0, %v1082
  %v1084 = vpop.f32.mrb[0].mxu0
  %v1085 = vpop.f32.mrb[0].mxu0
  %v1086 = vadd.f32 0.0, %v1085
  %v1087 = vpop.f32.mrb[0].mxu0
  %1088 = vmatprep.mubr.bf16.mxu0 0
  %1089 = vmatmul.mubr.bf16.gmra.mrb[0].mxu0 %v645
  %v1090 = vpop.f32.mrb[0].mxu0
  %v1091 = vadd.f32 0.0, %v1090
  %v1092 = vpop.f32.mrb[0].mxu0
  %v1093 = vpop.f32.mrb[0].mxu0
  %v1094 = vadd.f32 0.0, %v1093
  %v1095 = vpop.f32.mrb[0].mxu0
  %1096 = vmatprep.mubr.bf16.mxu0 0
  %1097 = vmatmul.mubr.bf16.gmra.mrb[0].mxu0 %v646
  %v1098 = vpop.f32.mrb[0].mxu0
  %v1099 = vadd.f32 0.0, %v1098
  %v1100 = vpop.f32.mrb[0].mxu0
  %v1101 = vpop.f32.mrb[0].mxu0
  %v1102 = vadd.f32 0.0, %v1101
  %v1103 = vpop.f32.mrb[0].mxu0
  %1104 = vmatprep.mubr.bf16.mxu0 0
  %1105 = vmatmul.mubr.bf16.gmra.mrb[0].mxu0 %v647
  %v1106 = vpop.f32.mrb[0].mxu0
  %v1107 = vadd.f32 0.0, %v1106
  %v1108 = vpop.f32.mrb[0].mxu0
  %v1109 = vpop.f32.mrb[0].mxu0
  %v1110 = vadd.f32 0.0, %v1109
  %v1111 = vpop.f32.mrb[0].mxu0
  %1112 = vmatprep.mubr.bf16.mxu0 0
  %1113 = vmatmul.mubr.bf16.gmra.mrb[0].mxu0 %v648
  %v1114 = vpop.f32.mrb[0].mxu0
  %v1115 = vadd.f32 0.0, %v1114
  %v1116 = vpop.f32.mrb[0].mxu0
  %v1117 = vpop.f32.mrb[0].mxu0
  %v1118 = vadd.f32 0.0, %v1117
  %v1119 = vpop.f32.mrb[0].mxu0
  %1120 = vmatprep.mubr.bf16.mxu0 0
  %1121 = vmatmul.mubr.bf16.gmra.mrb[0].mxu0 %v649
  %v1122 = vpop.f32.mrb[0].mxu0
  %v1123 = vadd.f32 0.0, %v1122
  %v1124 = vpop.f32.mrb[0].mxu0
  %v1125 = vpop.f32.mrb[0].mxu0
  %v1126 = vadd.f32 0.0, %v1125
  %v1127 = vpop.f32.mrb[0].mxu0
  %1128 = vmatprep.mubr.bf16.mxu0 0
  %1129 = vmatmul.mubr.bf16.gmra.mrb[0].mxu0 %v650
  %v1130 = vpop.f32.mrb[0].mxu0
  %v1131 = vadd.f32 0.0, %v1130
  %v1132 = vpop.f32.mrb[0].mxu0
  %v1133 = vpop.f32.mrb[0].mxu0
  %v1134 = vadd.f32 0.0, %v1133
  %v1135 = vpop.f32.mrb[0].mxu0
  %1136 = vmatprep.mubr.bf16.mxu0 0
  %1137 = vmatmul.mubr.bf16.gmra.mrb[0].mxu0 %v651
  %v1138 = vpop.f32.mrb[0].mxu0
  %v1139 = vadd.f32 0.0, %v1138
  %v1140 = vpop.f32.mrb[0].mxu0
  %v1141 = vpop.f32.mrb[0].mxu0
  %v1142 = vadd.f32 0.0, %v1141
  %v1143 = vpop.f32.mrb[0].mxu0
  %1144 = vmatprep.mubr.bf16.mxu0 0
  %1145 = vmatmul.mubr.bf16.gmra.mrb[0].mxu0 %v652
  %v1146 = vpop.f32.mrb[0].mxu0
  %v1147 = vadd.f32 0.0, %v1146
  %v1148 = vpop.f32.mrb[0].mxu0
  %v1149 = vpop.f32.mrb[0].mxu0
  %v1150 = vadd.f32 0.0, %v1149
  %v1151 = vpop.f32.mrb[0].mxu0
  %1152 = vmatprep.mubr.bf16.mxu0 0
  %1153 = vmatmul.mubr.bf16.gmra.mrb[0].mxu0 %v653
  %v1154 = vpop.f32.mrb[0].mxu0
  %v1155 = vadd.f32 0.0, %v1154
  %v1156 = vpop.f32.mrb[0].mxu0
  %v1157 = vpop.f32.mrb[0].mxu0
  %v1158 = vadd.f32 0.0, %v1157
  %v1159 = vpop.f32.mrb[0].mxu0
  %1160 = vmatprep.mubr.bf16.mxu0 0
  %1161 = vmatmul.mubr.bf16.gmra.mrb[0].mxu0 %v654
  %v1162 = vpop.f32.mrb[0].mxu0
  %v1163 = vadd.f32 0.0, %v1162
  %v1164 = vpop.f32.mrb[0].mxu0
  %v1165 = vpop.f32.mrb[0].mxu0
  %v1166 = vadd.f32 0.0, %v1165
  %v1167 = vpop.f32.mrb[0].mxu0
  %1168 = vdwg.mxu0
  %v1169 = vsub.f32 %v850, 0.3
  %v1170 = vsub.f32 %v852, 0.3
  %v1171 = vsub.f32 %v1043, 0.3
  %v1172 = vsub.f32 %v854, 0.3
  %v1173 = vsub.f32 %v856, 0.3
  %v1174 = vsub.f32 %v1046, 0.3
  %v1175 = vsub.f32 %v860, 0.3
  %v1176 = vsub.f32 %v862, 0.3
  %v1177 = vsub.f32 %v1051, 0.3
  %v1178 = vsub.f32 %v864, 0.3
  %v1179 = vsub.f32 %v866, 0.3
  %v1180 = vsub.f32 %v1054, 0.3
  %v1181 = vsub.f32 %v870, 0.3
  %v1182 = vsub.f32 %v872, 0.3
  %v1183 = vsub.f32 %v1059, 0.3
  %v1184 = vsub.f32 %v874, 0.3
  %v1185 = vsub.f32 %v876, 0.3
  %v1186 = vsub.f32 %v1062, 0.3
  %v1187 = vsub.f32 %v880, 0.3
  %v1188 = vsub.f32 %v882, 0.3
  %v1189 = vsub.f32 %v1067, 0.3
  %v1190 = vsub.f32 %v884, 0.3
  %v1191 = vsub.f32 %v886, 0.3
  %v1192 = vsub.f32 %v1070, 0.3
  %v1193 = vsub.f32 %v890, 0.3
  %v1194 = vsub.f32 %v892, 0.3
  %v1195 = vsub.f32 %v1075, 0.3
  %v1196 = vsub.f32 %v894, 0.3
  %v1197 = vsub.f32 %v896, 0.3
  %v1198 = vsub.f32 %v1078, 0.3
  %v1199 = vsub.f32 %v900, 0.3
  %v1200 = vsub.f32 %v902, 0.3
  %v1201 = vsub.f32 %v1083, 0.3
  %v1202 = vsub.f32 %v904, 0.3
  %v1203 = vsub.f32 %v906, 0.3
  %v1204 = vsub.f32 %v1086, 0.3
  %v1205 = vsub.f32 %v910, 0.3
  %v1206 = vsub.f32 %v912, 0.3
  %v1207 = vsub.f32 %v1091, 0.3
  %v1208 = vsub.f32 %v914, 0.3
  %v1209 = vsub.f32 %v916, 0.3
  %v1210 = vsub.f32 %v1094, 0.3
  %v1211 = vsub.f32 %v920, 0.3
  %v1212 = vsub.f32 %v922, 0.3
  %v1213 = vsub.f32 %v1099, 0.3
  %v1214 = vsub.f32 %v924, 0.3
  %v1215 = vsub.f32 %v926, 0.3
  %v1216 = vsub.f32 %v1102, 0.3
  %v1217 = vsub.f32 %v930, 0.3
  %v1218 = vsub.f32 %v932, 0.3
  %v1219 = vsub.f32 %v1107, 0.3
  %v1220 = vsub.f32 %v934, 0.3
  %v1221 = vsub.f32 %v936, 0.3
  %v1222 = vsub.f32 %v1110, 0.3
  %v1223 = vsub.f32 %v940, 0.3
  %v1224 = vsub.f32 %v942, 0.3
  %v1225 = vsub.f32 %v1115, 0.3
  %v1226 = vsub.f32 %v944, 0.3
  %v1227 = vsub.f32 %v946, 0.3
  %v1228 = vsub.f32 %v1118, 0.3
  %v1229 = vsub.f32 %v950, 0.3
  %v1230 = vsub.f32 %v952, 0.3
  %v1231 = vsub.f32 %v1123, 0.3
  %v1232 = vsub.f32 %v954, 0.3
  %v1233 = vsub.f32 %v956, 0.3
  %v1234 = vsub.f32 %v1126, 0.3
  %v1235 = vsub.f32 %v960, 0.3
  %v1236 = vsub.f32 %v962, 0.3
  %v1237 = vsub.f32 %v1131, 0.3
  %v1238 = vsub.f32 %v964, 0.3
  %v1239 = vsub.f32 %v966, 0.3
  %v1240 = vsub.f32 %v1134, 0.3
  %v1241 = vsub.f32 %v970, 0.3
  %v1242 = vsub.f32 %v972, 0.3
  %v1243 = vsub.f32 %v1139, 0.3
  %v1244 = vsub.f32 %v974, 0.3
  %v1245 = vsub.f32 %v976, 0.3
  %v1246 = vsub.f32 %v1142, 0.3
  %v1247 = vsub.f32 %v980, 0.3
  %v1248 = vsub.f32 %v982, 0.3
  %v1249 = vsub.f32 %v1147, 0.3
  %v1250 = vsub.f32 %v984, 0.3
  %v1251 = vsub.f32 %v986, 0.3
  %v1252 = vsub.f32 %v1150, 0.3
  %v1253 = vsub.f32 %v990, 0.3
  %v1254 = vsub.f32 %v992, 0.3
  %v1255 = vsub.f32 %v1155, 0.3
  %v1256 = vsub.f32 %v994, 0.3
  %v1257 = vsub.f32 %v996, 0.3
  %v1258 = vsub.f32 %v1158, 0.3
  %v1259 = vsub.f32 %v1000, 0.3
  %v1260 = vsub.f32 %v1002, 0.3
  %v1261 = vsub.f32 %v1163, 0.3
  %v1262 = vsub.f32 %v1004, 0.3
  %v1263 = vsub.f32 %v1006, 0.3
  %v1264 = vsub.f32 %v1166, 0.3
  %v1265 = vsel %vm543, %v1169, %v850
  %v1266 = vsel %vm544, %v1170, %v852
  %v1267 = vsel %vm545, %v1171, %v1043
  %v1268 = vsel %vm546, %v1172, %v854
  %v1269 = vsel %vm547, %v1173, %v856
  %v1270 = vsel %vm548, %v1174, %v1046
  %v1271 = vsel %vm549, %v1175, %v860
  %v1272 = vsel %vm550, %v1176, %v862
  %v1273 = vsel %vm551, %v1177, %v1051
  %v1274 = vsel %vm552, %v1178, %v864
  %v1275 = vsel %vm553, %v1179, %v866
  %v1276 = vsel %vm554, %v1180, %v1054
  %v1277 = vsel %vm555, %v1181, %v870
  %v1278 = vsel %vm556, %v1182, %v872
  %v1279 = vsel %vm557, %v1183, %v1059
  %v1280 = vsel %vm558, %v1184, %v874
  %v1281 = vsel %vm559, %v1185, %v876
  %v1282 = vsel %vm560, %v1186, %v1062
  %v1283 = vsel %vm561, %v1187, %v880
  %v1284 = vsel %vm562, %v1188, %v882
  %v1285 = vsel %vm563, %v1189, %v1067
  %v1286 = vsel %vm564, %v1190, %v884
  %v1287 = vsel %vm565, %v1191, %v886
  %v1288 = vsel %vm566, %v1192, %v1070
  %v1289 = vsel %vm567, %v1193, %v890
  %v1290 = vsel %vm568, %v1194, %v892
  %v1291 = vsel %vm569, %v1195, %v1075
  %v1292 = vsel %vm570, %v1196, %v894
  %v1293 = vsel %vm571, %v1197, %v896
  %v1294 = vsel %vm572, %v1198, %v1078
  %v1295 = vsel %vm573, %v1199, %v900
  %v1296 = vsel %vm574, %v1200, %v902
  %v1297 = vsel %vm575, %v1201, %v1083
  %v1298 = vsel %vm576, %v1202, %v904
  %v1299 = vsel %vm577, %v1203, %v906
  %v1300 = vsel %vm578, %v1204, %v1086
  %v1301 = vsel %vm579, %v1205, %v910
  %v1302 = vsel %vm580, %v1206, %v912
  %v1303 = vsel %vm581, %v1207, %v1091
  %v1304 = vsel %vm582, %v1208, %v914
  %v1305 = vsel %vm583, %v1209, %v916
  %v1306 = vsel %vm584, %v1210, %v1094
  %v1307 = vsel %vm585, %v1211, %v920
  %v1308 = vsel %vm586, %v1212, %v922
  %v1309 = vsel %vm587, %v1213, %v1099
  %v1310 = vsel %vm588, %v1214, %v924
  %v1311 = vsel %vm589, %v1215, %v926
  %v1312 = vsel %vm590, %v1216, %v1102
  %v1313 = vsel %vm591, %v1217, %v930
  %v1314 = vsel %vm592, %v1218, %v932
  %v1315 = vsel %vm593, %v1219, %v1107
  %v1316 = vsel %vm594, %v1220, %v934
  %v1317 = vsel %vm595, %v1221, %v936
  %v1318 = vsel %vm596, %v1222, %v1110
  %v1319 = vsel %vm597, %v1223, %v940
  %v1320 = vsel %vm598, %v1224, %v942
  %v1321 = vsel %vm599, %v1225, %v1115
  %v1322 = vsel %vm600, %v1226, %v944
  %v1323 = vsel %vm601, %v1227, %v946
  %v1324 = vsel %vm602, %v1228, %v1118
  %v1325 = vsel %vm603, %v1229, %v950
  %v1326 = vsel %vm604, %v1230, %v952
  %v1327 = vsel %vm605, %v1231, %v1123
  %v1328 = vsel %vm606, %v1232, %v954
  %v1329 = vsel %vm607, %v1233, %v956
  %v1330 = vsel %vm608, %v1234, %v1126
  %v1331 = vsel %vm609, %v1235, %v960
  %v1332 = vsel %vm610, %v1236, %v962
  %v1333 = vsel %vm611, %v1237, %v1131
  %v1334 = vsel %vm612, %v1238, %v964
  %v1335 = vsel %vm613, %v1239, %v966
  %v1336 = vsel %vm614, %v1240, %v1134
  %v1337 = vsel %vm615, %v1241, %v970
  %v1338 = vsel %vm616, %v1242, %v972
  %v1339 = vsel %vm617, %v1243, %v1139
  %v1340 = vsel %vm618, %v1244, %v974
  %v1341 = vsel %vm619, %v1245, %v976
  %v1342 = vsel %vm620, %v1246, %v1142
  %v1343 = vsel %vm621, %v1247, %v980
  %v1344 = vsel %vm622, %v1248, %v982
  %v1345 = vsel %vm623, %v1249, %v1147
  %v1346 = vsel %vm624, %v1250, %v984
  %v1347 = vsel %vm625, %v1251, %v986
  %v1348 = vsel %vm626, %v1252, %v1150
  %v1349 = vsel %vm627, %v1253, %v990
  %v1350 = vsel %vm628, %v1254, %v992
  %v1351 = vsel %vm629, %v1255, %v1155
  %v1352 = vsel %vm630, %v1256, %v994
  %v1353 = vsel %vm631, %v1257, %v996
  %v1354 = vsel %vm632, %v1258, %v1158
  %v1355 = vsel %vm633, %v1259, %v1000
  %v1356 = vsel %vm634, %v1260, %v1002
  %v1357 = vsel %vm635, %v1261, %v1163
  %v1358 = vsel %vm636, %v1262, %v1004
  %v1359 = vsel %vm637, %v1263, %v1006
  %v1360 = vsel %vm638, %v1264, %v1166
  %v1361 = vmul.f32 %v1265, 15.0
  %v1362 = vmul.f32 %v1266, 15.0
  %v1363 = vmul.f32 %v1267, 15.0
  %v1364 = vmul.f32 %v1268, 15.0
  %v1365 = vmul.f32 %v1269, 15.0
  %v1366 = vmul.f32 %v1270, 15.0
  %v1367 = vmul.f32 %v1271, 15.0
  %v1368 = vmul.f32 %v1272, 15.0
  %v1369 = vmul.f32 %v1273, 15.0
  %v1370 = vmul.f32 %v1274, 15.0
  %v1371 = vmul.f32 %v1275, 15.0
  %v1372 = vmul.f32 %v1276, 15.0
  %v1373 = vmul.f32 %v1277, 15.0
  %v1374 = vmul.f32 %v1278, 15.0
  %v1375 = vmul.f32 %v1279, 15.0
  %v1376 = vmul.f32 %v1280, 15.0
  %v1377 = vmul.f32 %v1281, 15.0
  %v1378 = vmul.f32 %v1282, 15.0
  %v1379 = vmul.f32 %v1283, 15.0
  %v1380 = vmul.f32 %v1284, 15.0
  %v1381 = vmul.f32 %v1285, 15.0
  %v1382 = vmul.f32 %v1286, 15.0
  %v1383 = vmul.f32 %v1287, 15.0
  %v1384 = vmul.f32 %v1288, 15.0
  %v1385 = vmul.f32 %v1289, 15.0
  %v1386 = vmul.f32 %v1290, 15.0
  %v1387 = vmul.f32 %v1291, 15.0
  %v1388 = vmul.f32 %v1292, 15.0
  %v1389 = vmul.f32 %v1293, 15.0
  %v1390 = vmul.f32 %v1294, 15.0
  %v1391 = vmul.f32 %v1295, 15.0
  %v1392 = vmul.f32 %v1296, 15.0
  %v1393 = vmul.f32 %v1297, 15.0
  %v1394 = vmul.f32 %v1298, 15.0
  %v1395 = vmul.f32 %v1299, 15.0
  %v1396 = vmul.f32 %v1300, 15.0
  %v1397 = vmul.f32 %v1301, 15.0
  %v1398 = vmul.f32 %v1302, 15.0
  %v1399 = vmul.f32 %v1303, 15.0
  %v1400 = vmul.f32 %v1304, 15.0
  %v1401 = vmul.f32 %v1305, 15.0
  %v1402 = vmul.f32 %v1306, 15.0
  %v1403 = vmul.f32 %v1307, 15.0
  %v1404 = vmul.f32 %v1308, 15.0
  %v1405 = vmul.f32 %v1309, 15.0
  %v1406 = vmul.f32 %v1310, 15.0
  %v1407 = vmul.f32 %v1311, 15.0
  %v1408 = vmul.f32 %v1312, 15.0
  %v1409 = vmul.f32 %v1313, 15.0
  %v1410 = vmul.f32 %v1314, 15.0
  %v1411 = vmul.f32 %v1315, 15.0
  %v1412 = vmul.f32 %v1316, 15.0
  %v1413 = vmul.f32 %v1317, 15.0
  %v1414 = vmul.f32 %v1318, 15.0
  %v1415 = vmul.f32 %v1319, 15.0
  %v1416 = vmul.f32 %v1320, 15.0
  %v1417 = vmul.f32 %v1321, 15.0
  %v1418 = vmul.f32 %v1322, 15.0
  %v1419 = vmul.f32 %v1323, 15.0
  %v1420 = vmul.f32 %v1324, 15.0
  %v1421 = vmul.f32 %v1325, 15.0
  %v1422 = vmul.f32 %v1326, 15.0
  %v1423 = vmul.f32 %v1327, 15.0
  %v1424 = vmul.f32 %v1328, 15.0
  %v1425 = vmul.f32 %v1329, 15.0
  %v1426 = vmul.f32 %v1330, 15.0
  %v1427 = vmul.f32 %v1331, 15.0
  %v1428 = vmul.f32 %v1332, 15.0
  %v1429 = vmul.f32 %v1333, 15.0
  %v1430 = vmul.f32 %v1334, 15.0
  %v1431 = vmul.f32 %v1335, 15.0
  %v1432 = vmul.f32 %v1336, 15.0
  %v1433 = vmul.f32 %v1337, 15.0
  %v1434 = vmul.f32 %v1338, 15.0
  %v1435 = vmul.f32 %v1339, 15.0
  %v1436 = vmul.f32 %v1340, 15.0
  %v1437 = vmul.f32 %v1341, 15.0
  %v1438 = vmul.f32 %v1342, 15.0
  %v1439 = vmul.f32 %v1343, 15.0
  %v1440 = vmul.f32 %v1344, 15.0
  %v1441 = vmul.f32 %v1345, 15.0
  %v1442 = vmul.f32 %v1346, 15.0
  %v1443 = vmul.f32 %v1347, 15.0
  %v1444 = vmul.f32 %v1348, 15.0
  %v1445 = vmul.f32 %v1349, 15.0
  %v1446 = vmul.f32 %v1350, 15.0
  %v1447 = vmul.f32 %v1351, 15.0
  %v1448 = vmul.f32 %v1352, 15.0
  %v1449 = vmul.f32 %v1353, 15.0
  %v1450 = vmul.f32 %v1354, 15.0
  %v1451 = vmul.f32 %v1355, 15.0
  %v1452 = vmul.f32 %v1356, 15.0
  %v1453 = vmul.f32 %v1357, 15.0
  %v1454 = vmul.f32 %v1358, 15.0
  %v1455 = vmul.f32 %v1359, 15.0
  %v1456 = vmul.f32 %v1360, 15.0
  %vm1457 = vcmp.lt.s32.totalorder %v444, 300
  %vm1458 = vcmp.lt.s32.totalorder %v445, 300
  %vm1459 = vcmp.lt.s32.totalorder %v446, 300
  %v1460 = vsel %vm1457, %v1361, -1e+30
  %v1461 = vsel %vm1458, %v1362, -1e+30
  %v1462 = vsel %vm1459, %v1363, -1e+30
  %v1463 = vsel %vm1457, %v1364, -1e+30
  %v1464 = vsel %vm1458, %v1365, -1e+30
  %v1465 = vsel %vm1459, %v1366, -1e+30
  %v1466 = vsel %vm1457, %v1367, -1e+30
  %v1467 = vsel %vm1458, %v1368, -1e+30
  %v1468 = vsel %vm1459, %v1369, -1e+30
  %v1469 = vsel %vm1457, %v1370, -1e+30
  %v1470 = vsel %vm1458, %v1371, -1e+30
  %v1471 = vsel %vm1459, %v1372, -1e+30
  %v1472 = vsel %vm1457, %v1373, -1e+30
  %v1473 = vsel %vm1458, %v1374, -1e+30
  %v1474 = vsel %vm1459, %v1375, -1e+30
  %v1475 = vsel %vm1457, %v1376, -1e+30
  %v1476 = vsel %vm1458, %v1377, -1e+30
  %v1477 = vsel %vm1459, %v1378, -1e+30
  %v1478 = vsel %vm1457, %v1379, -1e+30
  %v1479 = vsel %vm1458, %v1380, -1e+30
  %v1480 = vsel %vm1459, %v1381, -1e+30
  %v1481 = vsel %vm1457, %v1382, -1e+30
  %v1482 = vsel %vm1458, %v1383, -1e+30
  %v1483 = vsel %vm1459, %v1384, -1e+30
  %v1484 = vsel %vm1457, %v1385, -1e+30
  %v1485 = vsel %vm1458, %v1386, -1e+30
  %v1486 = vsel %vm1459, %v1387, -1e+30
  %v1487 = vsel %vm1457, %v1388, -1e+30
  %v1488 = vsel %vm1458, %v1389, -1e+30
  %v1489 = vsel %vm1459, %v1390, -1e+30
  %v1490 = vsel %vm1457, %v1391, -1e+30
  %v1491 = vsel %vm1458, %v1392, -1e+30
  %v1492 = vsel %vm1459, %v1393, -1e+30
  %v1493 = vsel %vm1457, %v1394, -1e+30
  %v1494 = vsel %vm1458, %v1395, -1e+30
  %v1495 = vsel %vm1459, %v1396, -1e+30
  %v1496 = vsel %vm1457, %v1397, -1e+30
  %v1497 = vsel %vm1458, %v1398, -1e+30
  %v1498 = vsel %vm1459, %v1399, -1e+30
  %v1499 = vsel %vm1457, %v1400, -1e+30
  %v1500 = vsel %vm1458, %v1401, -1e+30
  %v1501 = vsel %vm1459, %v1402, -1e+30
  %v1502 = vsel %vm1457, %v1403, -1e+30
  %v1503 = vsel %vm1458, %v1404, -1e+30
  %v1504 = vsel %vm1459, %v1405, -1e+30
  %v1505 = vsel %vm1457, %v1406, -1e+30
  %v1506 = vsel %vm1458, %v1407, -1e+30
  %v1507 = vsel %vm1459, %v1408, -1e+30
  %v1508 = vsel %vm1457, %v1409, -1e+30
  %v1509 = vsel %vm1458, %v1410, -1e+30
  %v1510 = vsel %vm1459, %v1411, -1e+30
  %v1511 = vsel %vm1457, %v1412, -1e+30
  %v1512 = vsel %vm1458, %v1413, -1e+30
  %v1513 = vsel %vm1459, %v1414, -1e+30
  %v1514 = vsel %vm1457, %v1415, -1e+30
  %v1515 = vsel %vm1458, %v1416, -1e+30
  %v1516 = vsel %vm1459, %v1417, -1e+30
  %v1517 = vsel %vm1457, %v1418, -1e+30
  %v1518 = vsel %vm1458, %v1419, -1e+30
  %v1519 = vsel %vm1459, %v1420, -1e+30
  %v1520 = vsel %vm1457, %v1421, -1e+30
  %v1521 = vsel %vm1458, %v1422, -1e+30
  %v1522 = vsel %vm1459, %v1423, -1e+30
  %v1523 = vsel %vm1457, %v1424, -1e+30
  %v1524 = vsel %vm1458, %v1425, -1e+30
  %v1525 = vsel %vm1459, %v1426, -1e+30
  %v1526 = vsel %vm1457, %v1427, -1e+30
  %v1527 = vsel %vm1458, %v1428, -1e+30
  %v1528 = vsel %vm1459, %v1429, -1e+30
  %v1529 = vsel %vm1457, %v1430, -1e+30
  %v1530 = vsel %vm1458, %v1431, -1e+30
  %v1531 = vsel %vm1459, %v1432, -1e+30
  %v1532 = vsel %vm1457, %v1433, -1e+30
  %v1533 = vsel %vm1458, %v1434, -1e+30
  %v1534 = vsel %vm1459, %v1435, -1e+30
  %v1535 = vsel %vm1457, %v1436, -1e+30
  %v1536 = vsel %vm1458, %v1437, -1e+30
  %v1537 = vsel %vm1459, %v1438, -1e+30
  %v1538 = vsel %vm1457, %v1439, -1e+30
  %v1539 = vsel %vm1458, %v1440, -1e+30
  %v1540 = vsel %vm1459, %v1441, -1e+30
  %v1541 = vsel %vm1457, %v1442, -1e+30
  %v1542 = vsel %vm1458, %v1443, -1e+30
  %v1543 = vsel %vm1459, %v1444, -1e+30
  %v1544 = vsel %vm1457, %v1445, -1e+30
  %v1545 = vsel %vm1458, %v1446, -1e+30
  %v1546 = vsel %vm1459, %v1447, -1e+30
  %v1547 = vsel %vm1457, %v1448, -1e+30
  %v1548 = vsel %vm1458, %v1449, -1e+30
  %v1549 = vsel %vm1459, %v1450, -1e+30
  %v1550 = vsel %vm1457, %v1451, -1e+30
  %v1551 = vsel %vm1458, %v1452, -1e+30
  %v1552 = vsel %vm1459, %v1453, -1e+30
  %v1553 = vsel %vm1457, %v1454, -1e+30
  %v1554 = vsel %vm1458, %v1455, -1e+30
  %v1555 = vsel %vm1459, %v1456, -1e+30
  %v1556 = vld [vmem:[#allocation3] sm:$0xff]
  %v1557 = vld [vmem:[#allocation3 + $0x8] sm:$0xff]
  %v1558 = vld [vmem:[#allocation3 + $0x10] sm:$0xff]
  %v1559 = vld [vmem:[#allocation3 + $0x18] sm:$0xff]
  %v1560 = vld [vmem:[#allocation3 + $0x20] sm:$0xff]
  %v1561 = vld [vmem:[#allocation3 + $0x28] sm:$0xff]
  %v1562 = vld [vmem:[#allocation3 + $0x30] sm:$0xff]
  %v1563 = vld [vmem:[#allocation3 + $0x38] sm:$0xff]
  %v1564 = vld [vmem:[#allocation3 + $0x40] sm:$0xff]
  %v1565 = vld [vmem:[#allocation3 + $0x48] sm:$0xff]
  %v1566 = vld [vmem:[#allocation3 + $0x50] sm:$0xff]
  %v1567 = vld [vmem:[#allocation3 + $0x58] sm:$0xff]
  %v1568 = vld [vmem:[#allocation3 + $0x60] sm:$0xff]
  %v1569 = vld [vmem:[#allocation3 + $0x68] sm:$0xff]
  %v1570 = vld [vmem:[#allocation3 + $0x70] sm:$0xff]
  %v1571 = vld [vmem:[#allocation3 + $0x78] sm:$0xff]
  %v1572 = vld [vmem:[#allocation3 + $0x80] sm:$0xff]
  %v1573 = vld [vmem:[#allocation3 + $0x88] sm:$0xff]
  %v1574 = vld [vmem:[#allocation3 + $0x90] sm:$0xff]
  %v1575 = vld [vmem:[#allocation3 + $0x98] sm:$0xff]
  %v1576 = vld [vmem:[#allocation3 + $0xa0] sm:$0xff]
  %v1577 = vld [vmem:[#allocation3 + $0xa8] sm:$0xff]
  %v1578 = vld [vmem:[#allocation3 + $0xb0] sm:$0xff]
  %v1579 = vld [vmem:[#allocation3 + $0xb8] sm:$0xff]
  %v1580 = vld [vmem:[#allocation3 + $0xc0] sm:$0xff]
  %v1581 = vld [vmem:[#allocation3 + $0xc8] sm:$0xff]
  %v1582 = vld [vmem:[#allocation3 + $0xd0] sm:$0xff]
  %v1583 = vld [vmem:[#allocation3 + $0xd8] sm:$0xff]
  %v1584 = vld [vmem:[#allocation3 + $0xe0] sm:$0xff]
  %v1585 = vld [vmem:[#allocation3 + $0xe8] sm:$0xff]
  %v1586 = vld [vmem:[#allocation3 + $0xf0] sm:$0xff]
  %v1587 = vld [vmem:[#allocation3 + $0xf8] sm:$0xff]
  %v1588 = vmax.f32 %v1460, %v1461
  %v1589 = vmax.f32 %v1588, %v1462
  %1590 = vmax.xlane.f32.xlu0 %v1589
  %v1591 = vpop.xlane.xlu0 %1590
  %v1592 = vmax.f32 %v1463, %v1464
  %v1593 = vmax.f32 %v1592, %v1465
  %1594 = vmax.xlane.f32.xlu0 %v1593
  %v1595 = vpop.xlane.xlu0 %1594
  %v1596 = vmax.f32 %v1466, %v1467
  %v1597 = vmax.f32 %v1596, %v1468
  %1598 = vmax.xlane.f32.xlu0 %v1597
  %v1599 = vpop.xlane.xlu0 %1598
  %v1600 = vmax.f32 %v1469, %v1470
  %v1601 = vmax.f32 %v1600, %v1471
  %1602 = vmax.xlane.f32.xlu0 %v1601
  %v1603 = vpop.xlane.xlu0 %1602
  %v1604 = vmax.f32 %v1472, %v1473
  %v1605 = vmax.f32 %v1604, %v1474
  %1606 = vmax.xlane.f32.xlu0 %v1605
  %v1607 = vpop.xlane.xlu0 %1606
  %v1608 = vmax.f32 %v1475, %v1476
  %v1609 = vmax.f32 %v1608, %v1477
  %1610 = vmax.xlane.f32.xlu0 %v1609
  %v1611 = vpop.xlane.xlu0 %1610
  %v1612 = vmax.f32 %v1478, %v1479
  %v1613 = vmax.f32 %v1612, %v1480
  %1614 = vmax.xlane.f32.xlu0 %v1613
  %v1615 = vpop.xlane.xlu0 %1614
  %v1616 = vmax.f32 %v1481, %v1482
  %v1617 = vmax.f32 %v1616, %v1483
  %1618 = vmax.xlane.f32.xlu0 %v1617
  %v1619 = vpop.xlane.xlu0 %1618
  %v1620 = vmax.f32 %v1484, %v1485
  %v1621 = vmax.f32 %v1620, %v1486
  %1622 = vmax.xlane.f32.xlu0 %v1621
  %v1623 = vpop.xlane.xlu0 %1622
  %v1624 = vmax.f32 %v1487, %v1488
  %v1625 = vmax.f32 %v1624, %v1489
  %1626 = vmax.xlane.f32.xlu0 %v1625
  %v1627 = vpop.xlane.xlu0 %1626
  %v1628 = vmax.f32 %v1490, %v1491
  %v1629 = vmax.f32 %v1628, %v1492
  %1630 = vmax.xlane.f32.xlu0 %v1629
  %v1631 = vpop.xlane.xlu0 %1630
  %v1632 = vmax.f32 %v1493, %v1494
  %v1633 = vmax.f32 %v1632, %v1495
  %1634 = vmax.xlane.f32.xlu0 %v1633
  %v1635 = vpop.xlane.xlu0 %1634
  %v1636 = vmax.f32 %v1496, %v1497
  %v1637 = vmax.f32 %v1636, %v1498
  %1638 = vmax.xlane.f32.xlu0 %v1637
  %v1639 = vpop.xlane.xlu0 %1638
  %v1640 = vmax.f32 %v1499, %v1500
  %v1641 = vmax.f32 %v1640, %v1501
  %1642 = vmax.xlane.f32.xlu0 %v1641
  %v1643 = vpop.xlane.xlu0 %1642
  %v1644 = vmax.f32 %v1502, %v1503
  %v1645 = vmax.f32 %v1644, %v1504
  %1646 = vmax.xlane.f32.xlu0 %v1645
  %v1647 = vpop.xlane.xlu0 %1646
  %v1648 = vmax.f32 %v1505, %v1506
  %v1649 = vmax.f32 %v1648, %v1507
  %1650 = vmax.xlane.f32.xlu0 %v1649
  %v1651 = vpop.xlane.xlu0 %1650
  %v1652 = vmax.f32 %v1508, %v1509
  %v1653 = vmax.f32 %v1652, %v1510
  %1654 = vmax.xlane.f32.xlu0 %v1653
  %v1655 = vpop.xlane.xlu0 %1654
  %v1656 = vmax.f32 %v1511, %v1512
  %v1657 = vmax.f32 %v1656, %v1513
  %1658 = vmax.xlane.f32.xlu0 %v1657
  %v1659 = vpop.xlane.xlu0 %1658
  %v1660 = vmax.f32 %v1514, %v1515
  %v1661 = vmax.f32 %v1660, %v1516
  %1662 = vmax.xlane.f32.xlu0 %v1661
  %v1663 = vpop.xlane.xlu0 %1662
  %v1664 = vmax.f32 %v1517, %v1518
  %v1665 = vmax.f32 %v1664, %v1519
  %1666 = vmax.xlane.f32.xlu0 %v1665
  %v1667 = vpop.xlane.xlu0 %1666
  %v1668 = vmax.f32 %v1520, %v1521
  %v1669 = vmax.f32 %v1668, %v1522
  %1670 = vmax.xlane.f32.xlu0 %v1669
  %v1671 = vpop.xlane.xlu0 %1670
  %v1672 = vmax.f32 %v1523, %v1524
  %v1673 = vmax.f32 %v1672, %v1525
  %1674 = vmax.xlane.f32.xlu0 %v1673
  %v1675 = vpop.xlane.xlu0 %1674
  %v1676 = vmax.f32 %v1526, %v1527
  %v1677 = vmax.f32 %v1676, %v1528
  %1678 = vmax.xlane.f32.xlu0 %v1677
  %v1679 = vpop.xlane.xlu0 %1678
  %v1680 = vmax.f32 %v1529, %v1530
  %v1681 = vmax.f32 %v1680, %v1531
  %1682 = vmax.xlane.f32.xlu0 %v1681
  %v1683 = vpop.xlane.xlu0 %1682
  %v1684 = vmax.f32 %v1532, %v1533
  %v1685 = vmax.f32 %v1684, %v1534
  %1686 = vmax.xlane.f32.xlu0 %v1685
  %v1687 = vpop.xlane.xlu0 %1686
  %v1688 = vmax.f32 %v1535, %v1536
  %v1689 = vmax.f32 %v1688, %v1537
  %1690 = vmax.xlane.f32.xlu0 %v1689
  %v1691 = vpop.xlane.xlu0 %1690
  %v1692 = vmax.f32 %v1538, %v1539
  %v1693 = vmax.f32 %v1692, %v1540
  %1694 = vmax.xlane.f32.xlu0 %v1693
  %v1695 = vpop.xlane.xlu0 %1694
  %v1696 = vmax.f32 %v1541, %v1542
  %v1697 = vmax.f32 %v1696, %v1543
  %1698 = vmax.xlane.f32.xlu0 %v1697
  %v1699 = vpop.xlane.xlu0 %1698
  %v1700 = vmax.f32 %v1544, %v1545
  %v1701 = vmax.f32 %v1700, %v1546
  %1702 = vmax.xlane.f32.xlu0 %v1701
  %v1703 = vpop.xlane.xlu0 %1702
  %v1704 = vmax.f32 %v1547, %v1548
  %v1705 = vmax.f32 %v1704, %v1549
  %1706 = vmax.xlane.f32.xlu0 %v1705
  %v1707 = vpop.xlane.xlu0 %1706
  %v1708 = vmax.f32 %v1550, %v1551
  %v1709 = vmax.f32 %v1708, %v1552
  %1710 = vmax.xlane.f32.xlu0 %v1709
  %v1711 = vpop.xlane.xlu0 %1710
  %v1712 = vmax.f32 %v1553, %v1554
  %v1713 = vmax.f32 %v1712, %v1555
  %1714 = vmax.xlane.f32.xlu0 %v1713
  %v1715 = vpop.xlane.xlu0 %1714
  %v1716 = vmax.f32 %v1556, %v1591
  %v1717 = vmax.f32 %v1557, %v1595
  %v1718 = vmax.f32 %v1558, %v1599
  %v1719 = vmax.f32 %v1559, %v1603
  %v1720 = vmax.f32 %v1560, %v1607
  %v1721 = vmax.f32 %v1561, %v1611
  %v1722 = vmax.f32 %v1562, %v1615
  %v1723 = vmax.f32 %v1563, %v1619
  %v1724 = vmax.f32 %v1564, %v1623
  %v1725 = vmax.f32 %v1565, %v1627
  %v1726 = vmax.f32 %v1566, %v1631
  %v1727 = vmax.f32 %v1567, %v1635
  %v1728 = vmax.f32 %v1568, %v1639
  %v1729 = vmax.f32 %v1569, %v1643
  %v1730 = vmax.f32 %v1570, %v1647
  %v1731 = vmax.f32 %v1571, %v1651
  %v1732 = vmax.f32 %v1572, %v1655
  %v1733 = vmax.f32 %v1573, %v1659
  %v1734 = vmax.f32 %v1574, %v1663
  %v1735 = vmax.f32 %v1575, %v1667
  %v1736 = vmax.f32 %v1576, %v1671
  %v1737 = vmax.f32 %v1577, %v1675
  %v1738 = vmax.f32 %v1578, %v1679
  %v1739 = vmax.f32 %v1579, %v1683
  %v1740 = vmax.f32 %v1580, %v1687
  %v1741 = vmax.f32 %v1581, %v1691
  %v1742 = vmax.f32 %v1582, %v1695
  %v1743 = vmax.f32 %v1583, %v1699
  %v1744 = vmax.f32 %v1584, %v1703
  %v1745 = vmax.f32 %v1585, %v1707
  %v1746 = vmax.f32 %v1586, %v1711
  %v1747 = vmax.f32 %v1587, %v1715
  %v1748 = vld [vmem:[#allocation4] sm:$0xff]
  %v1749 = vld [vmem:[#allocation4 + $0x8] sm:$0xff]
  %v1750 = vld [vmem:[#allocation4 + $0x10] sm:$0xff]
  %v1751 = vld [vmem:[#allocation4 + $0x18] sm:$0xff]
  %v1752 = vld [vmem:[#allocation4 + $0x20] sm:$0xff]
  %v1753 = vld [vmem:[#allocation4 + $0x28] sm:$0xff]
  %v1754 = vld [vmem:[#allocation4 + $0x30] sm:$0xff]
  %v1755 = vld [vmem:[#allocation4 + $0x38] sm:$0xff]
  %v1756 = vld [vmem:[#allocation4 + $0x40] sm:$0xff]
  %v1757 = vld [vmem:[#allocation4 + $0x48] sm:$0xff]
  %v1758 = vld [vmem:[#allocation4 + $0x50] sm:$0xff]
  %v1759 = vld [vmem:[#allocation4 + $0x58] sm:$0xff]
  %v1760 = vld [vmem:[#allocation4 + $0x60] sm:$0xff]
  %v1761 = vld [vmem:[#allocation4 + $0x68] sm:$0xff]
  %v1762 = vld [vmem:[#allocation4 + $0x70] sm:$0xff]
  %v1763 = vld [vmem:[#allocation4 + $0x78] sm:$0xff]
  %v1764 = vld [vmem:[#allocation4 + $0x80] sm:$0xff]
  %v1765 = vld [vmem:[#allocation4 + $0x88] sm:$0xff]
  %v1766 = vld [vmem:[#allocation4 + $0x90] sm:$0xff]
  %v1767 = vld [vmem:[#allocation4 + $0x98] sm:$0xff]
  %v1768 = vld [vmem:[#allocation4 + $0xa0] sm:$0xff]
  %v1769 = vld [vmem:[#allocation4 + $0xa8] sm:$0xff]
  %v1770 = vld [vmem:[#allocation4 + $0xb0] sm:$0xff]
  %v1771 = vld [vmem:[#allocation4 + $0xb8] sm:$0xff]
  %v1772 = vld [vmem:[#allocation4 + $0xc0] sm:$0xff]
  %v1773 = vld [vmem:[#allocation4 + $0xc8] sm:$0xff]
  %v1774 = vld [vmem:[#allocation4 + $0xd0] sm:$0xff]
  %v1775 = vld [vmem:[#allocation4 + $0xd8] sm:$0xff]
  %v1776 = vld [vmem:[#allocation4 + $0xe0] sm:$0xff]
  %v1777 = vld [vmem:[#allocation4 + $0xe8] sm:$0xff]
  %v1778 = vld [vmem:[#allocation4 + $0xf0] sm:$0xff]
  %v1779 = vld [vmem:[#allocation4 + $0xf8] sm:$0xff]
  %v1780 = vsub.f32 %v1556, %v1716
  %v1781 = vsub.f32 %v1557, %v1717
  %v1782 = vsub.f32 %v1558, %v1718
  %v1783 = vsub.f32 %v1559, %v1719
  %v1784 = vsub.f32 %v1560, %v1720
  %v1785 = vsub.f32 %v1561, %v1721
  %v1786 = vsub.f32 %v1562, %v1722
  %v1787 = vsub.f32 %v1563, %v1723
  %v1788 = vsub.f32 %v1564, %v1724
  %v1789 = vsub.f32 %v1565, %v1725
  %v1790 = vsub.f32 %v1566, %v1726
  %v1791 = vsub.f32 %v1567, %v1727
  %v1792 = vsub.f32 %v1568, %v1728
  %v1793 = vsub.f32 %v1569, %v1729
  %v1794 = vsub.f32 %v1570, %v1730
  %v1795 = vsub.f32 %v1571, %v1731
  %v1796 = vsub.f32 %v1572, %v1732
  %v1797 = vsub.f32 %v1573, %v1733
  %v1798 = vsub.f32 %v1574, %v1734
  %v1799 = vsub.f32 %v1575, %v1735
  %v1800 = vsub.f32 %v1576, %v1736
  %v1801 = vsub.f32 %v1577, %v1737
  %v1802 = vsub.f32 %v1578, %v1738
  %v1803 = vsub.f32 %v1579, %v1739
  %v1804 = vsub.f32 %v1580, %v1740
  %v1805 = vsub.f32 %v1581, %v1741
  %v1806 = vsub.f32 %v1582, %v1742
  %v1807 = vsub.f32 %v1583, %v1743
  %v1808 = vsub.f32 %v1584, %v1744
  %v1809 = vsub.f32 %v1585, %v1745
  %v1810 = vsub.f32 %v1586, %v1746
  %v1811 = vsub.f32 %v1587, %v1747
  %v1812 = vmul.f32 %v1780, 1.442695
  %v1813 = vpow.pop %v1812
  %v1814 = vmul.f32 %v1781, 1.442695
  %v1815 = vpow.pop %v1814
  %v1816 = vmul.f32 %v1782, 1.442695
  %v1817 = vpow.pop %v1816
  %v1818 = vmul.f32 %v1783, 1.442695
  %v1819 = vpow.pop %v1818
  %v1820 = vmul.f32 %v1784, 1.442695
  %v1821 = vpow.pop %v1820
  %v1822 = vmul.f32 %v1785, 1.442695
  %v1823 = vpow.pop %v1822
  %v1824 = vmul.f32 %v1786, 1.442695
  %v1825 = vpow.pop %v1824
  %v1826 = vmul.f32 %v1787, 1.442695
  %v1827 = vpow.pop %v1826
  %v1828 = vmul.f32 %v1788, 1.442695
  %v1829 = vpow.pop %v1828
  %v1830 = vmul.f32 %v1789, 1.442695
  %v1831 = vpow.pop %v1830
  %v1832 = vmul.f32 %v1790, 1.442695
  %v1833 = vpow.pop %v1832
  %v1834 = vmul.f32 %v1791, 1.442695
  %v1835 = vpow.pop %v1834
  %v1836 = vmul.f32 %v1792, 1.442695
  %v1837 = vpow.pop %v1836
  %v1838 = vmul.f32 %v1793, 1.442695
  %v1839 = vpow.pop %v1838
  %v1840 = vmul.f32 %v1794, 1.442695
  %v1841 = vpow.pop %v1840
  %v1842 = vmul.f32 %v1795, 1.442695
  %v1843 = vpow.pop %v1842
  %v1844 = vmul.f32 %v1796, 1.442695
  %v1845 = vpow.pop %v1844
  %v1846 = vmul.f32 %v1797, 1.442695
  %v1847 = vpow.pop %v1846
  %v1848 = vmul.f32 %v1798, 1.442695
  %v1849 = vpow.pop %v1848
  %v1850 = vmul.f32 %v1799, 1.442695
  %v1851 = vpow.pop %v1850
  %v1852 = vmul.f32 %v1800, 1.442695
  %v1853 = vpow.pop %v1852
  %v1854 = vmul.f32 %v1801, 1.442695
  %v1855 = vpow.pop %v1854
  %v1856 = vmul.f32 %v1802, 1.442695
  %v1857 = vpow.pop %v1856
  %v1858 = vmul.f32 %v1803, 1.442695
  %v1859 = vpow.pop %v1858
  %v1860 = vmul.f32 %v1804, 1.442695
  %v1861 = vpow.pop %v1860
  %v1862 = vmul.f32 %v1805, 1.442695
  %v1863 = vpow.pop %v1862
  %v1864 = vmul.f32 %v1806, 1.442695
  %v1865 = vpow.pop %v1864
  %v1866 = vmul.f32 %v1807, 1.442695
  %v1867 = vpow.pop %v1866
  %v1868 = vmul.f32 %v1808, 1.442695
  %v1869 = vpow.pop %v1868
  %v1870 = vmul.f32 %v1809, 1.442695
  %v1871 = vpow.pop %v1870
  %v1872 = vmul.f32 %v1810, 1.442695
  %v1873 = vpow.pop %v1872
  %v1874 = vmul.f32 %v1811, 1.442695
  %v1875 = vpow.pop %v1874
  %v1876 = vmul.f32 %v1748, %v1813
  %v1877 = vmul.f32 %v1749, %v1815
  %v1878 = vmul.f32 %v1750, %v1817
  %v1879 = vmul.f32 %v1751, %v1819
  %v1880 = vmul.f32 %v1752, %v1821
  %v1881 = vmul.f32 %v1753, %v1823
  %v1882 = vmul.f32 %v1754, %v1825
  %v1883 = vmul.f32 %v1755, %v1827
  %v1884 = vmul.f32 %v1756, %v1829
  %v1885 = vmul.f32 %v1757, %v1831
  %v1886 = vmul.f32 %v1758, %v1833
  %v1887 = vmul.f32 %v1759, %v1835
  %v1888 = vmul.f32 %v1760, %v1837
  %v1889 = vmul.f32 %v1761, %v1839
  %v1890 = vmul.f32 %v1762, %v1841
  %v1891 = vmul.f32 %v1763, %v1843
  %v1892 = vmul.f32 %v1764, %v1845
  %v1893 = vmul.f32 %v1765, %v1847
  %v1894 = vmul.f32 %v1766, %v1849
  %v1895 = vmul.f32 %v1767, %v1851
  %v1896 = vmul.f32 %v1768, %v1853
  %v1897 = vmul.f32 %v1769, %v1855
  %v1898 = vmul.f32 %v1770, %v1857
  %v1899 = vmul.f32 %v1771, %v1859
  %v1900 = vmul.f32 %v1772, %v1861
  %v1901 = vmul.f32 %v1773, %v1863
  %v1902 = vmul.f32 %v1774, %v1865
  %v1903 = vmul.f32 %v1775, %v1867
  %v1904 = vmul.f32 %v1776, %v1869
  %v1905 = vmul.f32 %v1777, %v1871
  %v1906 = vmul.f32 %v1778, %v1873
  %v1907 = vmul.f32 %v1779, %v1875
  %1909 = vset.pattern.permute.xlu0 0
  %1910 = vperm.xlu0 %1909, %v1716
  %v1911 = vpop.permute.xlu0 %1910
  %1914 = vset.pattern.permute.xlu0 0
  %1915 = vperm.xlu0 %1914, %v1717
  %v1916 = vpop.permute.xlu0 %1915
  %1919 = vset.pattern.permute.xlu0 0
  %1920 = vperm.xlu0 %1919, %v1718
  %v1921 = vpop.permute.xlu0 %1920
  %1924 = vset.pattern.permute.xlu0 0
  %1925 = vperm.xlu0 %1924, %v1719
  %v1926 = vpop.permute.xlu0 %1925
  %1929 = vset.pattern.permute.xlu0 0
  %1930 = vperm.xlu0 %1929, %v1720
  %v1931 = vpop.permute.xlu0 %1930
  %1934 = vset.pattern.permute.xlu0 0
  %1935 = vperm.xlu0 %1934, %v1721
  %v1936 = vpop.permute.xlu0 %1935
  %1939 = vset.pattern.permute.xlu0 0
  %1940 = vperm.xlu0 %1939, %v1722
  %v1941 = vpop.permute.xlu0 %1940
  %1944 = vset.pattern.permute.xlu0 0
  %1945 = vperm.xlu0 %1944, %v1723
  %v1946 = vpop.permute.xlu0 %1945
  %1949 = vset.pattern.permute.xlu0 0
  %1950 = vperm.xlu0 %1949, %v1724
  %v1951 = vpop.permute.xlu0 %1950
  %1954 = vset.pattern.permute.xlu0 0
  %1955 = vperm.xlu0 %1954, %v1725
  %v1956 = vpop.permute.xlu0 %1955
  %1959 = vset.pattern.permute.xlu0 0
  %1960 = vperm.xlu0 %1959, %v1726
  %v1961 = vpop.permute.xlu0 %1960
  %1964 = vset.pattern.permute.xlu0 0
  %1965 = vperm.xlu0 %1964, %v1727
  %v1966 = vpop.permute.xlu0 %1965
  %1969 = vset.pattern.permute.xlu0 0
  %1970 = vperm.xlu0 %1969, %v1728
  %v1971 = vpop.permute.xlu0 %1970
  %1974 = vset.pattern.permute.xlu0 0
  %1975 = vperm.xlu0 %1974, %v1729
  %v1976 = vpop.permute.xlu0 %1975
  %1979 = vset.pattern.permute.xlu0 0
  %1980 = vperm.xlu0 %1979, %v1730
  %v1981 = vpop.permute.xlu0 %1980
  %1984 = vset.pattern.permute.xlu0 0
  %1985 = vperm.xlu0 %1984, %v1731
  %v1986 = vpop.permute.xlu0 %1985
  %1989 = vset.pattern.permute.xlu0 0
  %1990 = vperm.xlu0 %1989, %v1732
  %v1991 = vpop.permute.xlu0 %1990
  %1994 = vset.pattern.permute.xlu0 0
  %1995 = vperm.xlu0 %1994, %v1733
  %v1996 = vpop.permute.xlu0 %1995
  %1999 = vset.pattern.permute.xlu0 0
  %2000 = vperm.xlu0 %1999, %v1734
  %v2001 = vpop.permute.xlu0 %2000
  %2004 = vset.pattern.permute.xlu0 0
  %2005 = vperm.xlu0 %2004, %v1735
  %v2006 = vpop.permute.xlu0 %2005
  %2009 = vset.pattern.permute.xlu0 0
  %2010 = vperm.xlu0 %2009, %v1736
  %v2011 = vpop.permute.xlu0 %2010
  %2014 = vset.pattern.permute.xlu0 0
  %2015 = vperm.xlu0 %2014, %v1737
  %v2016 = vpop.permute.xlu0 %2015
  %2019 = vset.pattern.permute.xlu0 0
  %2020 = vperm.xlu0 %2019, %v1738
  %v2021 = vpop.permute.xlu0 %2020
  %2024 = vset.pattern.permute.xlu0 0
  %2025 = vperm.xlu0 %2024, %v1739
  %v2026 = vpop.permute.xlu0 %2025
  %2029 = vset.pattern.permute.xlu0 0
  %2030 = vperm.xlu0 %2029, %v1740
  %v2031 = vpop.permute.xlu0 %2030
  %2034 = vset.pattern.permute.xlu0 0
  %2035 = vperm.xlu0 %2034, %v1741
  %v2036 = vpop.permute.xlu0 %2035
  %2039 = vset.pattern.permute.xlu0 0
  %2040 = vperm.xlu0 %2039, %v1742
  %v2041 = vpop.permute.xlu0 %2040
  %2044 = vset.pattern.permute.xlu0 0
  %2045 = vperm.xlu0 %2044, %v1743
  %v2046 = vpop.permute.xlu0 %2045
  %2049 = vset.pattern.permute.xlu0 0
  %2050 = vperm.xlu0 %2049, %v1744
  %v2051 = vpop.permute.xlu0 %2050
  %2054 = vset.pattern.permute.xlu0 0
  %2055 = vperm.xlu0 %2054, %v1745
  %v2056 = vpop.permute.xlu0 %2055
  %2059 = vset.pattern.permute.xlu0 0
  %2060 = vperm.xlu0 %2059, %v1746
  %v2061 = vpop.permute.xlu0 %2060
  %2064 = vset.pattern.permute.xlu0 0
  %2065 = vperm.xlu0 %2064, %v1747
  %v2066 = vpop.permute.xlu0 %2065
  %v2068 = vsub.f32 %v1460, %v1911
  %v2069 = vsub.f32 %v1461, %v1911
  %v2070 = vsub.f32 %v1462, %v1911
  %v2071 = vsub.f32 %v1463, %v1916
  %v2072 = vsub.f32 %v1464, %v1916
  %v2073 = vsub.f32 %v1465, %v1916
  %v2074 = vsub.f32 %v1466, %v1921
  %v2075 = vsub.f32 %v1467, %v1921
  %v2076 = vsub.f32 %v1468, %v1921
  %v2077 = vsub.f32 %v1469, %v1926
  %v2078 = vsub.f32 %v1470, %v1926
  %v2079 = vsub.f32 %v1471, %v1926
  %v2080 = vsub.f32 %v1472, %v1931
  %v2081 = vsub.f32 %v1473, %v1931
  %v2082 = vsub.f32 %v1474, %v1931
  %v2083 = vsub.f32 %v1475, %v1936
  %v2084 = vsub.f32 %v1476, %v1936
  %v2085 = vsub.f32 %v1477, %v1936
  %v2086 = vsub.f32 %v1478, %v1941
  %v2087 = vsub.f32 %v1479, %v1941
  %v2088 = vsub.f32 %v1480, %v1941
  %v2089 = vsub.f32 %v1481, %v1946
  %v2090 = vsub.f32 %v1482, %v1946
  %v2091 = vsub.f32 %v1483, %v1946
  %v2092 = vsub.f32 %v1484, %v1951
  %v2093 = vsub.f32 %v1485, %v1951
  %v2094 = vsub.f32 %v1486, %v1951
  %v2095 = vsub.f32 %v1487, %v1956
  %v2096 = vsub.f32 %v1488, %v1956
  %v2097 = vsub.f32 %v1489, %v1956
  %v2098 = vsub.f32 %v1490, %v1961
  %v2099 = vsub.f32 %v1491, %v1961
  %v2100 = vsub.f32 %v1492, %v1961
  %v2101 = vsub.f32 %v1493, %v1966
  %v2102 = vsub.f32 %v1494, %v1966
  %v2103 = vsub.f32 %v1495, %v1966
  %v2104 = vsub.f32 %v1496, %v1971
  %v2105 = vsub.f32 %v1497, %v1971
  %v2106 = vsub.f32 %v1498, %v1971
  %v2107 = vsub.f32 %v1499, %v1976
  %v2108 = vsub.f32 %v1500, %v1976
  %v2109 = vsub.f32 %v1501, %v1976
  %v2110 = vsub.f32 %v1502, %v1981
  %v2111 = vsub.f32 %v1503, %v1981
  %v2112 = vsub.f32 %v1504, %v1981
  %v2113 = vsub.f32 %v1505, %v1986
  %v2114 = vsub.f32 %v1506, %v1986
  %v2115 = vsub.f32 %v1507, %v1986
  %v2116 = vsub.f32 %v1508, %v1991
  %v2117 = vsub.f32 %v1509, %v1991
  %v2118 = vsub.f32 %v1510, %v1991
  %v2119 = vsub.f32 %v1511, %v1996
  %v2120 = vsub.f32 %v1512, %v1996
  %v2121 = vsub.f32 %v1513, %v1996
  %v2122 = vsub.f32 %v1514, %v2001
  %v2123 = vsub.f32 %v1515, %v2001
  %v2124 = vsub.f32 %v1516, %v2001
  %v2125 = vsub.f32 %v1517, %v2006
  %v2126 = vsub.f32 %v1518, %v2006
  %v2127 = vsub.f32 %v1519, %v2006
  %v2128 = vsub.f32 %v1520, %v2011
  %v2129 = vsub.f32 %v1521, %v2011
  %v2130 = vsub.f32 %v1522, %v2011
  %v2131 = vsub.f32 %v1523, %v2016
  %v2132 = vsub.f32 %v1524, %v2016
  %v2133 = vsub.f32 %v1525, %v2016
  %v2134 = vsub.f32 %v1526, %v2021
  %v2135 = vsub.f32 %v1527, %v2021
  %v2136 = vsub.f32 %v1528, %v2021
  %v2137 = vsub.f32 %v1529, %v2026
  %v2138 = vsub.f32 %v1530, %v2026
  %v2139 = vsub.f32 %v1531, %v2026
  %v2140 = vsub.f32 %v1532, %v2031
  %v2141 = vsub.f32 %v1533, %v2031
  %v2142 = vsub.f32 %v1534, %v2031
  %v2143 = vsub.f32 %v1535, %v2036
  %v2144 = vsub.f32 %v1536, %v2036
  %v2145 = vsub.f32 %v1537, %v2036
  %v2146 = vsub.f32 %v1538, %v2041
  %v2147 = vsub.f32 %v1539, %v2041
  %v2148 = vsub.f32 %v1540, %v2041
  %v2149 = vsub.f32 %v1541, %v2046
  %v2150 = vsub.f32 %v1542, %v2046
  %v2151 = vsub.f32 %v1543, %v2046
  %v2152 = vsub.f32 %v1544, %v2051
  %v2153 = vsub.f32 %v1545, %v2051
  %v2154 = vsub.f32 %v1546, %v2051
  %v2155 = vsub.f32 %v1547, %v2056
  %v2156 = vsub.f32 %v1548, %v2056
  %v2157 = vsub.f32 %v1549, %v2056
  %v2158 = vsub.f32 %v1550, %v2061
  %v2159 = vsub.f32 %v1551, %v2061
  %v2160 = vsub.f32 %v1552, %v2061
  %v2161 = vsub.f32 %v1553, %v2066
  %v2162 = vsub.f32 %v1554, %v2066
  %v2163 = vsub.f32 %v1555, %v2066
  %v2164 = vmul.f32 %v2068, 1.442695
  %v2165 = vpow.pop %v2164
  %v2166 = vmul.f32 %v2069, 1.442695
  %v2167 = vpow.pop %v2166
  %v2168 = vmul.f32 %v2070, 1.442695
  %v2169 = vpow.pop %v2168
  %v2170 = vmul.f32 %v2071, 1.442695
  %v2171 = vpow.pop %v2170
  %v2172 = vmul.f32 %v2072, 1.442695
  %v2173 = vpow.pop %v2172
  %v2174 = vmul.f32 %v2073, 1.442695
  %v2175 = vpow.pop %v2174
  %v2176 = vmul.f32 %v2074, 1.442695
  %v2177 = vpow.pop %v2176
  %v2178 = vmul.f32 %v2075, 1.442695
  %v2179 = vpow.pop %v2178
  %v2180 = vmul.f32 %v2076, 1.442695
  %v2181 = vpow.pop %v2180
  %v2182 = vmul.f32 %v2077, 1.442695
  %v2183 = vpow.pop %v2182
  %v2184 = vmul.f32 %v2078, 1.442695
  %v2185 = vpow.pop %v2184
  %v2186 = vmul.f32 %v2079, 1.442695
  %v2187 = vpow.pop %v2186
  %v2188 = vmul.f32 %v2080, 1.442695
  %v2189 = vpow.pop %v2188
  %v2190 = vmul.f32 %v2081, 1.442695
  %v2191 = vpow.pop %v2190
  %v2192 = vmul.f32 %v2082, 1.442695
  %v2193 = vpow.pop %v2192
  %v2194 = vmul.f32 %v2083, 1.442695
  %v2195 = vpow.pop %v2194
  %v2196 = vmul.f32 %v2084, 1.442695
  %v2197 = vpow.pop %v2196
  %v2198 = vmul.f32 %v2085, 1.442695
  %v2199 = vpow.pop %v2198
  %v2200 = vmul.f32 %v2086, 1.442695
  %v2201 = vpow.pop %v2200
  %v2202 = vmul.f32 %v2087, 1.442695
  %v2203 = vpow.pop %v2202
  %v2204 = vmul.f32 %v2088, 1.442695
  %v2205 = vpow.pop %v2204
  %v2206 = vmul.f32 %v2089, 1.442695
  %v2207 = vpow.pop %v2206
  %v2208 = vmul.f32 %v2090, 1.442695
  %v2209 = vpow.pop %v2208
  %v2210 = vmul.f32 %v2091, 1.442695
  %v2211 = vpow.pop %v2210
  %v2212 = vmul.f32 %v2092, 1.442695
  %v2213 = vpow.pop %v2212
  %v2214 = vmul.f32 %v2093, 1.442695
  %v2215 = vpow.pop %v2214
  %v2216 = vmul.f32 %v2094, 1.442695
  %v2217 = vpow.pop %v2216
  %v2218 = vmul.f32 %v2095, 1.442695
  %v2219 = vpow.pop %v2218
  %v2220 = vmul.f32 %v2096, 1.442695
  %v2221 = vpow.pop %v2220
  %v2222 = vmul.f32 %v2097, 1.442695
  %v2223 = vpow.pop %v2222
  %v2224 = vmul.f32 %v2098, 1.442695
  %v2225 = vpow.pop %v2224
  %v2226 = vmul.f32 %v2099, 1.442695
  %v2227 = vpow.pop %v2226
  %v2228 = vmul.f32 %v2100, 1.442695
  %v2229 = vpow.pop %v2228
  %v2230 = vmul.f32 %v2101, 1.442695
  %v2231 = vpow.pop %v2230
  %v2232 = vmul.f32 %v2102, 1.442695
  %v2233 = vpow.pop %v2232
  %v2234 = vmul.f32 %v2103, 1.442695
  %v2235 = vpow.pop %v2234
  %v2236 = vmul.f32 %v2104, 1.442695
  %v2237 = vpow.pop %v2236
  %v2238 = vmul.f32 %v2105, 1.442695
  %v2239 = vpow.pop %v2238
  %v2240 = vmul.f32 %v2106, 1.442695
  %v2241 = vpow.pop %v2240
  %v2242 = vmul.f32 %v2107, 1.442695
  %v2243 = vpow.pop %v2242
  %v2244 = vmul.f32 %v2108, 1.442695
  %v2245 = vpow.pop %v2244
  %v2246 = vmul.f32 %v2109, 1.442695
  %v2247 = vpow.pop %v2246
  %v2248 = vmul.f32 %v2110, 1.442695
  %v2249 = vpow.pop %v2248
  %v2250 = vmul.f32 %v2111, 1.442695
  %v2251 = vpow.pop %v2250
  %v2252 = vmul.f32 %v2112, 1.442695
  %v2253 = vpow.pop %v2252
  %v2254 = vmul.f32 %v2113, 1.442695
  %v2255 = vpow.pop %v2254
  %v2256 = vmul.f32 %v2114, 1.442695
  %v2257 = vpow.pop %v2256
  %v2258 = vmul.f32 %v2115, 1.442695
  %v2259 = vpow.pop %v2258
  %v2260 = vmul.f32 %v2116, 1.442695
  %v2261 = vpow.pop %v2260
  %v2262 = vmul.f32 %v2117, 1.442695
  %v2263 = vpow.pop %v2262
  %v2264 = vmul.f32 %v2118, 1.442695
  %v2265 = vpow.pop %v2264
  %v2266 = vmul.f32 %v2119, 1.442695
  %v2267 = vpow.pop %v2266
  %v2268 = vmul.f32 %v2120, 1.442695
  %v2269 = vpow.pop %v2268
  %v2270 = vmul.f32 %v2121, 1.442695
  %v2271 = vpow.pop %v2270
  %v2272 = vmul.f32 %v2122, 1.442695
  %v2273 = vpow.pop %v2272
  %v2274 = vmul.f32 %v2123, 1.442695
  %v2275 = vpow.pop %v2274
  %v2276 = vmul.f32 %v2124, 1.442695
  %v2277 = vpow.pop %v2276
  %v2278 = vmul.f32 %v2125, 1.442695
  %v2279 = vpow.pop %v2278
  %v2280 = vmul.f32 %v2126, 1.442695
  %v2281 = vpow.pop %v2280
  %v2282 = vmul.f32 %v2127, 1.442695
  %v2283 = vpow.pop %v2282
  %v2284 = vmul.f32 %v2128, 1.442695
  %v2285 = vpow.pop %v2284
  %v2286 = vmul.f32 %v2129, 1.442695
  %v2287 = vpow.pop %v2286
  %v2288 = vmul.f32 %v2130, 1.442695
  %v2289 = vpow.pop %v2288
  %v2290 = vmul.f32 %v2131, 1.442695
  %v2291 = vpow.pop %v2290
  %v2292 = vmul.f32 %v2132, 1.442695
  %v2293 = vpow.pop %v2292
  %v2294 = vmul.f32 %v2133, 1.442695
  %v2295 = vpow.pop %v2294
  %v2296 = vmul.f32 %v2134, 1.442695
  %v2297 = vpow.pop %v2296
  %v2298 = vmul.f32 %v2135, 1.442695
  %v2299 = vpow.pop %v2298
  %v2300 = vmul.f32 %v2136, 1.442695
  %v2301 = vpow.pop %v2300
  %v2302 = vmul.f32 %v2137, 1.442695
  %v2303 = vpow.pop %v2302
  %v2304 = vmul.f32 %v2138, 1.442695
  %v2305 = vpow.pop %v2304
  %v2306 = vmul.f32 %v2139, 1.442695
  %v2307 = vpow.pop %v2306
  %v2308 = vmul.f32 %v2140, 1.442695
  %v2309 = vpow.pop %v2308
  %v2310 = vmul.f32 %v2141, 1.442695
  %v2311 = vpow.pop %v2310
  %v2312 = vmul.f32 %v2142, 1.442695
  %v2313 = vpow.pop %v2312
  %v2314 = vmul.f32 %v2143, 1.442695
  %v2315 = vpow.pop %v2314
  %v2316 = vmul.f32 %v2144, 1.442695
  %v2317 = vpow.pop %v2316
  %v2318 = vmul.f32 %v2145, 1.442695
  %v2319 = vpow.pop %v2318
  %v2320 = vmul.f32 %v2146, 1.442695
  %v2321 = vpow.pop %v2320
  %v2322 = vmul.f32 %v2147, 1.442695
  %v2323 = vpow.pop %v2322
  %v2324 = vmul.f32 %v2148, 1.442695
  %v2325 = vpow.pop %v2324
  %v2326 = vmul.f32 %v2149, 1.442695
  %v2327 = vpow.pop %v2326
  %v2328 = vmul.f32 %v2150, 1.442695
  %v2329 = vpow.pop %v2328
  %v2330 = vmul.f32 %v2151, 1.442695
  %v2331 = vpow.pop %v2330
  %v2332 = vmul.f32 %v2152, 1.442695
  %v2333 = vpow.pop %v2332
  %v2334 = vmul.f32 %v2153, 1.442695
  %v2335 = vpow.pop %v2334
  %v2336 = vmul.f32 %v2154, 1.442695
  %v2337 = vpow.pop %v2336
  %v2338 = vmul.f32 %v2155, 1.442695
  %v2339 = vpow.pop %v2338
  %v2340 = vmul.f32 %v2156, 1.442695
  %v2341 = vpow.pop %v2340
  %v2342 = vmul.f32 %v2157, 1.442695
  %v2343 = vpow.pop %v2342
  %v2344 = vmul.f32 %v2158, 1.442695
  %v2345 = vpow.pop %v2344
  %v2346 = vmul.f32 %v2159, 1.442695
  %v2347 = vpow.pop %v2346
  %v2348 = vmul.f32 %v2160, 1.442695
  %v2349 = vpow.pop %v2348
  %v2350 = vmul.f32 %v2161, 1.442695
  %v2351 = vpow.pop %v2350
  %v2352 = vmul.f32 %v2162, 1.442695
  %v2353 = vpow.pop %v2352
  %v2354 = vmul.f32 %v2163, 1.442695
  %v2355 = vpow.pop %v2354
  %v2356 = vadd.f32 %v2165, %v2167
  %v2357 = vadd.f32 %v2356, %v2169
  %2358 = vadd.xlane.f32.xlu0 %v2357
  %v2359 = vpop.xlane.xlu0 %2358
  %v2360 = vadd.f32 %v2171, %v2173
  %v2361 = vadd.f32 %v2360, %v2175
  %2362 = vadd.xlane.f32.xlu0 %v2361
  %v2363 = vpop.xlane.xlu0 %2362
  %v2364 = vadd.f32 %v2177, %v2179
  %v2365 = vadd.f32 %v2364, %v2181
  %2366 = vadd.xlane.f32.xlu0 %v2365
  %v2367 = vpop.xlane.xlu0 %2366
  %v2368 = vadd.f32 %v2183, %v2185
  %v2369 = vadd.f32 %v2368, %v2187
  %2370 = vadd.xlane.f32.xlu0 %v2369
  %v2371 = vpop.xlane.xlu0 %2370
  %v2372 = vadd.f32 %v2189, %v2191
  %v2373 = vadd.f32 %v2372, %v2193
  %2374 = vadd.xlane.f32.xlu0 %v2373
  %v2375 = vpop.xlane.xlu0 %2374
  %v2376 = vadd.f32 %v2195, %v2197
  %v2377 = vadd.f32 %v2376, %v2199
  %2378 = vadd.xlane.f32.xlu0 %v2377
  %v2379 = vpop.xlane.xlu0 %2378
  %v2380 = vadd.f32 %v2201, %v2203
  %v2381 = vadd.f32 %v2380, %v2205
  %2382 = vadd.xlane.f32.xlu0 %v2381
  %v2383 = vpop.xlane.xlu0 %2382
  %v2384 = vadd.f32 %v2207, %v2209
  %v2385 = vadd.f32 %v2384, %v2211
  %2386 = vadd.xlane.f32.xlu0 %v2385
  %v2387 = vpop.xlane.xlu0 %2386
  %v2388 = vadd.f32 %v2213, %v2215
  %v2389 = vadd.f32 %v2388, %v2217
  %2390 = vadd.xlane.f32.xlu0 %v2389
  %v2391 = vpop.xlane.xlu0 %2390
  %v2392 = vadd.f32 %v2219, %v2221
  %v2393 = vadd.f32 %v2392, %v2223
  %2394 = vadd.xlane.f32.xlu0 %v2393
  %v2395 = vpop.xlane.xlu0 %2394
  %v2396 = vadd.f32 %v2225, %v2227
  %v2397 = vadd.f32 %v2396, %v2229
  %2398 = vadd.xlane.f32.xlu0 %v2397
  %v2399 = vpop.xlane.xlu0 %2398
  %v2400 = vadd.f32 %v2231, %v2233
  %v2401 = vadd.f32 %v2400, %v2235
  %2402 = vadd.xlane.f32.xlu0 %v2401
  %v2403 = vpop.xlane.xlu0 %2402
  %v2404 = vadd.f32 %v2237, %v2239
  %v2405 = vadd.f32 %v2404, %v2241
  %2406 = vadd.xlane.f32.xlu0 %v2405
  %v2407 = vpop.xlane.xlu0 %2406
  %v2408 = vadd.f32 %v2243, %v2245
  %v2409 = vadd.f32 %v2408, %v2247
  %2410 = vadd.xlane.f32.xlu0 %v2409
  %v2411 = vpop.xlane.xlu0 %2410
  %v2412 = vadd.f32 %v2249, %v2251
  %v2413 = vadd.f32 %v2412, %v2253
  %2414 = vadd.xlane.f32.xlu0 %v2413
  %v2415 = vpop.xlane.xlu0 %2414
  %v2416 = vadd.f32 %v2255, %v2257
  %v2417 = vadd.f32 %v2416, %v2259
  %2418 = vadd.xlane.f32.xlu0 %v2417
  %v2419 = vpop.xlane.xlu0 %2418
  %v2420 = vadd.f32 %v2261, %v2263
  %v2421 = vadd.f32 %v2420, %v2265
  %2422 = vadd.xlane.f32.xlu0 %v2421
  %v2423 = vpop.xlane.xlu0 %2422
  %v2424 = vadd.f32 %v2267, %v2269
  %v2425 = vadd.f32 %v2424, %v2271
  %2426 = vadd.xlane.f32.xlu0 %v2425
  %v2427 = vpop.xlane.xlu0 %2426
  %v2428 = vadd.f32 %v2273, %v2275
  %v2429 = vadd.f32 %v2428, %v2277
  %2430 = vadd.xlane.f32.xlu0 %v2429
  %v2431 = vpop.xlane.xlu0 %2430
  %v2432 = vadd.f32 %v2279, %v2281
  %v2433 = vadd.f32 %v2432, %v2283
  %2434 = vadd.xlane.f32.xlu0 %v2433
  %v2435 = vpop.xlane.xlu0 %2434
  %v2436 = vadd.f32 %v2285, %v2287
  %v2437 = vadd.f32 %v2436, %v2289
  %2438 = vadd.xlane.f32.xlu0 %v2437
  %v2439 = vpop.xlane.xlu0 %2438
  %v2440 = vadd.f32 %v2291, %v2293
  %v2441 = vadd.f32 %v2440, %v2295
  %2442 = vadd.xlane.f32.xlu0 %v2441
  %v2443 = vpop.xlane.xlu0 %2442
  %v2444 = vadd.f32 %v2297, %v2299
  %v2445 = vadd.f32 %v2444, %v2301
  %2446 = vadd.xlane.f32.xlu0 %v2445
  %v2447 = vpop.xlane.xlu0 %2446
  %v2448 = vadd.f32 %v2303, %v2305
  %v2449 = vadd.f32 %v2448, %v2307
  %2450 = vadd.xlane.f32.xlu0 %v2449
  %v2451 = vpop.xlane.xlu0 %2450
  %v2452 = vadd.f32 %v2309, %v2311
  %v2453 = vadd.f32 %v2452, %v2313
  %2454 = vadd.xlane.f32.xlu0 %v2453
  %v2455 = vpop.xlane.xlu0 %2454
  %v2456 = vadd.f32 %v2315, %v2317
  %v2457 = vadd.f32 %v2456, %v2319
  %2458 = vadd.xlane.f32.xlu0 %v2457
  %v2459 = vpop.xlane.xlu0 %2458
  %v2460 = vadd.f32 %v2321, %v2323
  %v2461 = vadd.f32 %v2460, %v2325
  %2462 = vadd.xlane.f32.xlu0 %v2461
  %v2463 = vpop.xlane.xlu0 %2462
  %v2464 = vadd.f32 %v2327, %v2329
  %v2465 = vadd.f32 %v2464, %v2331
  %2466 = vadd.xlane.f32.xlu0 %v2465
  %v2467 = vpop.xlane.xlu0 %2466
  %v2468 = vadd.f32 %v2333, %v2335
  %v2469 = vadd.f32 %v2468, %v2337
  %2470 = vadd.xlane.f32.xlu0 %v2469
  %v2471 = vpop.xlane.xlu0 %2470
  %v2472 = vadd.f32 %v2339, %v2341
  %v2473 = vadd.f32 %v2472, %v2343
  %2474 = vadd.xlane.f32.xlu0 %v2473
  %v2475 = vpop.xlane.xlu0 %2474
  %v2476 = vadd.f32 %v2345, %v2347
  %v2477 = vadd.f32 %v2476, %v2349
  %2478 = vadd.xlane.f32.xlu0 %v2477
  %v2479 = vpop.xlane.xlu0 %2478
  %v2480 = vadd.f32 %v2351, %v2353
  %v2481 = vadd.f32 %v2480, %v2355
  %2482 = vadd.xlane.f32.xlu0 %v2481
  %v2483 = vpop.xlane.xlu0 %2482
  %v2484 = vadd.f32 %v1876, %v2359
  %v2485 = vadd.f32 %v1877, %v2363
  %v2486 = vadd.f32 %v1878, %v2367
  %v2487 = vadd.f32 %v1879, %v2371
  %v2488 = vadd.f32 %v1880, %v2375
  %v2489 = vadd.f32 %v1881, %v2379
  %v2490 = vadd.f32 %v1882, %v2383
  %v2491 = vadd.f32 %v1883, %v2387
  %v2492 = vadd.f32 %v1884, %v2391
  %v2493 = vadd.f32 %v1885, %v2395
  %v2494 = vadd.f32 %v1886, %v2399
  %v2495 = vadd.f32 %v1887, %v2403
  %v2496 = vadd.f32 %v1888, %v2407
  %v2497 = vadd.f32 %v1889, %v2411
  %v2498 = vadd.f32 %v1890, %v2415
  %v2499 = vadd.f32 %v1891, %v2419
  %v2500 = vadd.f32 %v1892, %v2423
  %v2501 = vadd.f32 %v1893, %v2427
  %v2502 = vadd.f32 %v1894, %v2431
  %v2503 = vadd.f32 %v1895, %v2435
  %v2504 = vadd.f32 %v1896, %v2439
  %v2505 = vadd.f32 %v1897, %v2443
  %v2506 = vadd.f32 %v1898, %v2447
  %v2507 = vadd.f32 %v1899, %v2451
  %v2508 = vadd.f32 %v1900, %v2455
  %v2509 = vadd.f32 %v1901, %v2459
  %v2510 = vadd.f32 %v1902, %v2463
  %v2511 = vadd.f32 %v1903, %v2467
  %v2512 = vadd.f32 %v1904, %v2471
  %v2513 = vadd.f32 %v1905, %v2475
  %v2514 = vadd.f32 %v1906, %v2479
  %v2515 = vadd.f32 %v1907, %v2483
  %vm2516 = vcmask 7168
  %2517 = vst.msk [vmem:[#allocation4] sm:$0xff] %vm2516, %v2484
  %2518 = vst.msk [vmem:[#allocation4 + $0x8] sm:$0xff] %vm2516, %v2485
  %2519 = vst.msk [vmem:[#allocation4 + $0x10] sm:$0xff] %vm2516, %v2486
  %2520 = vst.msk [vmem:[#allocation4 + $0x18] sm:$0xff] %vm2516, %v2487
  %2521 = vst.msk [vmem:[#allocation4 + $0x20] sm:$0xff] %vm2516, %v2488
  %2522 = vst.msk [vmem:[#allocation4 + $0x28] sm:$0xff] %vm2516, %v2489
  %2523 = vst.msk [vmem:[#allocation4 + $0x30] sm:$0xff] %vm2516, %v2490
  %2524 = vst.msk [vmem:[#allocation4 + $0x38] sm:$0xff] %vm2516, %v2491
  %2525 = vst.msk [vmem:[#allocation4 + $0x40] sm:$0xff] %vm2516, %v2492
  %2526 = vst.msk [vmem:[#allocation4 + $0x48] sm:$0xff] %vm2516, %v2493
  %2527 = vst.msk [vmem:[#allocation4 + $0x50] sm:$0xff] %vm2516, %v2494
  %2528 = vst.msk [vmem:[#allocation4 + $0x58] sm:$0xff] %vm2516, %v2495
  %2529 = vst.msk [vmem:[#allocation4 + $0x60] sm:$0xff] %vm2516, %v2496
  %2530 = vst.msk [vmem:[#allocation4 + $0x68] sm:$0xff] %vm2516, %v2497
  %2531 = vst.msk [vmem:[#allocation4 + $0x70] sm:$0xff] %vm2516, %v2498
  %2532 = vst.msk [vmem:[#allocation4 + $0x78] sm:$0xff] %vm2516, %v2499
  %2533 = vst.msk [vmem:[#allocation4 + $0x80] sm:$0xff] %vm2516, %v2500
  %2534 = vst.msk [vmem:[#allocation4 + $0x88] sm:$0xff] %vm2516, %v2501
  %2535 = vst.msk [vmem:[#allocation4 + $0x90] sm:$0xff] %vm2516, %v2502
  %2536 = vst.msk [vmem:[#allocation4 + $0x98] sm:$0xff] %vm2516, %v2503
  %2537 = vst.msk [vmem:[#allocation4 + $0xa0] sm:$0xff] %vm2516, %v2504
  %2538 = vst.msk [vmem:[#allocation4 + $0xa8] sm:$0xff] %vm2516, %v2505
  %2539 = vst.msk [vmem:[#allocation4 + $0xb0] sm:$0xff] %vm2516, %v2506
  %2540 = vst.msk [vmem:[#allocation4 + $0xb8] sm:$0xff] %vm2516, %v2507
  %2541 = vst.msk [vmem:[#allocation4 + $0xc0] sm:$0xff] %vm2516, %v2508
  %2542 = vst.msk [vmem:[#allocation4 + $0xc8] sm:$0xff] %vm2516, %v2509
  %2543 = vst.msk [vmem:[#allocation4 + $0xd0] sm:$0xff] %vm2516, %v2510
  %2544 = vst.msk [vmem:[#allocation4 + $0xd8] sm:$0xff] %vm2516, %v2511
  %2545 = vst.msk [vmem:[#allocation4 + $0xe0] sm:$0xff] %vm2516, %v2512
  %2546 = vst.msk [vmem:[#allocation4 + $0xe8] sm:$0xff] %vm2516, %v2513
  %2547 = vst.msk [vmem:[#allocation4 + $0xf0] sm:$0xff] %vm2516, %v2514
  %2548 = vst.msk [vmem:[#allocation4 + $0xf8] sm:$0xff] %vm2516, %v2515
  %2549 = vst.msk [vmem:[#allocation3] sm:$0xff] %vm2516, %v1716
  %2550 = vst.msk [vmem:[#allocation3 + $0x8] sm:$0xff] %vm2516, %v1717
  %2551 = vst.msk [vmem:[#allocation3 + $0x10] sm:$0xff] %vm2516, %v1718
  %2552 = vst.msk [vmem:[#allocation3 + $0x18] sm:$0xff] %vm2516, %v1719
  %2553 = vst.msk [vmem:[#allocation3 + $0x20] sm:$0xff] %vm2516, %v1720
  %2554 = vst.msk [vmem:[#allocation3 + $0x28] sm:$0xff] %vm2516, %v1721
  %2555 = vst.msk [vmem:[#allocation3 + $0x30] sm:$0xff] %vm2516, %v1722
  %2556 = vst.msk [vmem:[#allocation3 + $0x38] sm:$0xff] %vm2516, %v1723
  %2557 = vst.msk [vmem:[#allocation3 + $0x40] sm:$0xff] %vm2516, %v1724
  %2558 = vst.msk [vmem:[#allocation3 + $0x48] sm:$0xff] %vm2516, %v1725
  %2559 = vst.msk [vmem:[#allocation3 + $0x50] sm:$0xff] %vm2516, %v1726
  %2560 = vst.msk [vmem:[#allocation3 + $0x58] sm:$0xff] %vm2516, %v1727
  %2561 = vst.msk [vmem:[#allocation3 + $0x60] sm:$0xff] %vm2516, %v1728
  %2562 = vst.msk [vmem:[#allocation3 + $0x68] sm:$0xff] %vm2516, %v1729
  %2563 = vst.msk [vmem:[#allocation3 + $0x70] sm:$0xff] %vm2516, %v1730
  %2564 = vst.msk [vmem:[#allocation3 + $0x78] sm:$0xff] %vm2516, %v1731
  %2565 = vst.msk [vmem:[#allocation3 + $0x80] sm:$0xff] %vm2516, %v1732
  %2566 = vst.msk [vmem:[#allocation3 + $0x88] sm:$0xff] %vm2516, %v1733
  %2567 = vst.msk [vmem:[#allocation3 + $0x90] sm:$0xff] %vm2516, %v1734
  %2568 = vst.msk [vmem:[#allocation3 + $0x98] sm:$0xff] %vm2516, %v1735
  %2569 = vst.msk [vmem:[#allocation3 + $0xa0] sm:$0xff] %vm2516, %v1736
  %2570 = vst.msk [vmem:[#allocation3 + $0xa8] sm:$0xff] %vm2516, %v1737
  %2571 = vst.msk [vmem:[#allocation3 + $0xb0] sm:$0xff] %vm2516, %v1738
  %2572 = vst.msk [vmem:[#allocation3 + $0xb8] sm:$0xff] %vm2516, %v1739
  %2573 = vst.msk [vmem:[#allocation3 + $0xc0] sm:$0xff] %vm2516, %v1740
  %2574 = vst.msk [vmem:[#allocation3 + $0xc8] sm:$0xff] %vm2516, %v1741
  %2575 = vst.msk [vmem:[#allocation3 + $0xd0] sm:$0xff] %vm2516, %v1742
  %2576 = vst.msk [vmem:[#allocation3 + $0xd8] sm:$0xff] %vm2516, %v1743
  %2577 = vst.msk [vmem:[#allocation3 + $0xe0] sm:$0xff] %vm2516, %v1744
  %2578 = vst.msk [vmem:[#allocation3 + $0xe8] sm:$0xff] %vm2516, %v1745
  %2579 = vst.msk [vmem:[#allocation3 + $0xf0] sm:$0xff] %vm2516, %v1746
  %2580 = vst.msk [vmem:[#allocation3 + $0xf8] sm:$0xff] %vm2516, %v1747
  %v2581 = vld [vmem:[#allocation5] sm:$0xff]
  %v2582 = vld [vmem:[#allocation5 + $0x8] sm:$0xff]
  %v2583 = vld [vmem:[#allocation5 + $0x10] sm:$0xff]
  %v2584 = vld [vmem:[#allocation5 + $0x18] sm:$0xff]
  %v2585 = vld [vmem:[#allocation5 + $0x20] sm:$0xff]
  %v2586 = vld [vmem:[#allocation5 + $0x28] sm:$0xff]
  %v2587 = vld [vmem:[#allocation5 + $0x30] sm:$0xff]
  %v2588 = vld [vmem:[#allocation5 + $0x38] sm:$0xff]
  %v2589 = vld [vmem:[#allocation5 + $0x40] sm:$0xff]
  %v2590 = vld [vmem:[#allocation5 + $0x48] sm:$0xff]
  %v2591 = vld [vmem:[#allocation5 + $0x50] sm:$0xff]
  %v2592 = vld [vmem:[#allocation5 + $0x58] sm:$0xff]
  %v2593 = vld [vmem:[#allocation5 + $0x60] sm:$0xff]
  %v2594 = vld [vmem:[#allocation5 + $0x68] sm:$0xff]
  %v2595 = vld [vmem:[#allocation5 + $0x70] sm:$0xff]
  %v2596 = vld [vmem:[#allocation5 + $0x78] sm:$0xff]
  %v2597 = vld [vmem:[#allocation5 + $0x80] sm:$0xff]
  %v2598 = vld [vmem:[#allocation5 + $0x88] sm:$0xff]
  %v2599 = vld [vmem:[#allocation5 + $0x90] sm:$0xff]
  %v2600 = vld [vmem:[#allocation5 + $0x98] sm:$0xff]
  %v2601 = vld [vmem:[#allocation5 + $0xa0] sm:$0xff]
  %v2602 = vld [vmem:[#allocation5 + $0xa8] sm:$0xff]
  %v2603 = vld [vmem:[#allocation5 + $0xb0] sm:$0xff]
  %v2604 = vld [vmem:[#allocation5 + $0xb8] sm:$0xff]
  %v2605 = vld [vmem:[#allocation5 + $0xc0] sm:$0xff]
  %v2606 = vld [vmem:[#allocation5 + $0xc8] sm:$0xff]
  %v2607 = vld [vmem:[#allocation5 + $0xd0] sm:$0xff]
  %v2608 = vld [vmem:[#allocation5 + $0xd8] sm:$0xff]
  %v2609 = vld [vmem:[#allocation5 + $0xe0] sm:$0xff]
  %v2610 = vld [vmem:[#allocation5 + $0xe8] sm:$0xff]
  %v2611 = vld [vmem:[#allocation5 + $0xf0] sm:$0xff]
  %v2612 = vld [vmem:[#allocation5 + $0xf8] sm:$0xff]
  %v2613 = vsel %vm543, %v1460, -1e+30
  %v2614 = vsel %vm544, %v1461, -1e+30
  %v2615 = vsel %vm545, %v1462, -1e+30
  %v2616 = vsel %vm546, %v1463, -1e+30
  %v2617 = vsel %vm547, %v1464, -1e+30
  %v2618 = vsel %vm548, %v1465, -1e+30
  %v2619 = vsel %vm549, %v1466, -1e+30
  %v2620 = vsel %vm550, %v1467, -1e+30
  %v2621 = vsel %vm551, %v1468, -1e+30
  %v2622 = vsel %vm552, %v1469, -1e+30
  %v2623 = vsel %vm553, %v1470, -1e+30
  %v2624 = vsel %vm554, %v1471, -1e+30
  %v2625 = vsel %vm555, %v1472, -1e+30
  %v2626 = vsel %vm556, %v1473, -1e+30
  %v2627 = vsel %vm557, %v1474, -1e+30
  %v2628 = vsel %vm558, %v1475, -1e+30
  %v2629 = vsel %vm559, %v1476, -1e+30
  %v2630 = vsel %vm560, %v1477, -1e+30
  %v2631 = vsel %vm561, %v1478, -1e+30
  %v2632 = vsel %vm562, %v1479, -1e+30
  %v2633 = vsel %vm563, %v1480, -1e+30
  %v2634 = vsel %vm564, %v1481, -1e+30
  %v2635 = vsel %vm565, %v1482, -1e+30
  %v2636 = vsel %vm566, %v1483, -1e+30
  %v2637 = vsel %vm567, %v1484, -1e+30
  %v2638 = vsel %vm568, %v1485, -1e+30
  %v2639 = vsel %vm569, %v1486, -1e+30
  %v2640 = vsel %vm570, %v1487, -1e+30
  %v2641 = vsel %vm571, %v1488, -1e+30
  %v2642 = vsel %vm572, %v1489, -1e+30
  %v2643 = vsel %vm573, %v1490, -1e+30
  %v2644 = vsel %vm574, %v1491, -1e+30
  %v2645 = vsel %vm575, %v1492, -1e+30
  %v2646 = vsel %vm576, %v1493, -1e+30
  %v2647 = vsel %vm577, %v1494, -1e+30
  %v2648 = vsel %vm578, %v1495, -1e+30
  %v2649 = vsel %vm579, %v1496, -1e+30
  %v2650 = vsel %vm580, %v1497, -1e+30
  %v2651 = vsel %vm581, %v1498, -1e+30
  %v2652 = vsel %vm582, %v1499, -1e+30
  %v2653 = vsel %vm583, %v1500, -1e+30
  %v2654 = vsel %vm584, %v1501, -1e+30
  %v2655 = vsel %vm585, %v1502, -1e+30
  %v2656 = vsel %vm586, %v1503, -1e+30
  %v2657 = vsel %vm587, %v1504, -1e+30
  %v2658 = vsel %vm588, %v1505, -1e+30
  %v2659 = vsel %vm589, %v1506, -1e+30
  %v2660 = vsel %vm590, %v1507, -1e+30
  %v2661 = vsel %vm591, %v1508, -1e+30
  %v2662 = vsel %vm592, %v1509, -1e+30
  %v2663 = vsel %vm593, %v1510, -1e+30
  %v2664 = vsel %vm594, %v1511, -1e+30
  %v2665 = vsel %vm595, %v1512, -1e+30
  %v2666 = vsel %vm596, %v1513, -1e+30
  %v2667 = vsel %vm597, %v1514, -1e+30
  %v2668 = vsel %vm598, %v1515, -1e+30
  %v2669 = vsel %vm599, %v1516, -1e+30
  %v2670 = vsel %vm600, %v1517, -1e+30
  %v2671 = vsel %vm601, %v1518, -1e+30
  %v2672 = vsel %vm602, %v1519, -1e+30
  %v2673 = vsel %vm603, %v1520, -1e+30
  %v2674 = vsel %vm604, %v1521, -1e+30
  %v2675 = vsel %vm605, %v1522, -1e+30
  %v2676 = vsel %vm606, %v1523, -1e+30
  %v2677 = vsel %vm607, %v1524, -1e+30
  %v2678 = vsel %vm608, %v1525, -1e+30
  %v2679 = vsel %vm609, %v1526, -1e+30
  %v2680 = vsel %vm610, %v1527, -1e+30
  %v2681 = vsel %vm611, %v1528, -1e+30
  %v2682 = vsel %vm612, %v1529, -1e+30
  %v2683 = vsel %vm613, %v1530, -1e+30
  %v2684 = vsel %vm614, %v1531, -1e+30
  %v2685 = vsel %vm615, %v1532, -1e+30
  %v2686 = vsel %vm616, %v1533, -1e+30
  %v2687 = vsel %vm617, %v1534, -1e+30
  %v2688 = vsel %vm618, %v1535, -1e+30
  %v2689 = vsel %vm619, %v1536, -1e+30
  %v2690 = vsel %vm620, %v1537, -1e+30
  %v2691 = vsel %vm621, %v1538, -1e+30
  %v2692 = vsel %vm622, %v1539, -1e+30
  %v2693 = vsel %vm623, %v1540, -1e+30
  %v2694 = vsel %vm624, %v1541, -1e+30
  %v2695 = vsel %vm625, %v1542, -1e+30
  %v2696 = vsel %vm626, %v1543, -1e+30
  %v2697 = vsel %vm627, %v1544, -1e+30
  %v2698 = vsel %vm628, %v1545, -1e+30
  %v2699 = vsel %vm629, %v1546, -1e+30
  %v2700 = vsel %vm630, %v1547, -1e+30
  %v2701 = vsel %vm631, %v1548, -1e+30
  %v2702 = vsel %vm632, %v1549, -1e+30
  %v2703 = vsel %vm633, %v1550, -1e+30
  %v2704 = vsel %vm634, %v1551, -1e+30
  %v2705 = vsel %vm635, %v1552, -1e+30
  %v2706 = vsel %vm636, %v1553, -1e+30
  %v2707 = vsel %vm637, %v1554, -1e+30
  %v2708 = vsel %vm638, %v1555, -1e+30
  %v2709 = vmax.f32 %v2613, %v2614
  %v2710 = vmax.f32 %v2709, %v2615
  %2711 = vmax.xlane.f32.xlu0 %v2710
  %v2712 = vpop.xlane.xlu0 %2711
  %v2713 = vmax.f32 %v2616, %v2617
  %v2714 = vmax.f32 %v2713, %v2618
  %2715 = vmax.xlane.f32.xlu0 %v2714
  %v2716 = vpop.xlane.xlu0 %2715
  %v2717 = vmax.f32 %v2619, %v2620
  %v2718 = vmax.f32 %v2717, %v2621
  %2719 = vmax.xlane.f32.xlu0 %v2718
  %v2720 = vpop.xlane.xlu0 %2719
  %v2721 = vmax.f32 %v2622, %v2623
  %v2722 = vmax.f32 %v2721, %v2624
  %2723 = vmax.xlane.f32.xlu0 %v2722
  %v2724 = vpop.xlane.xlu0 %2723
  %v2725 = vmax.f32 %v2625, %v2626
  %v2726 = vmax.f32 %v2725, %v2627
  %2727 = vmax.xlane.f32.xlu0 %v2726
  %v2728 = vpop.xlane.xlu0 %2727
  %v2729 = vmax.f32 %v2628, %v2629
  %v2730 = vmax.f32 %v2729, %v2630
  %2731 = vmax.xlane.f32.xlu0 %v2730
  %v2732 = vpop.xlane.xlu0 %2731
  %v2733 = vmax.f32 %v2631, %v2632
  %v2734 = vmax.f32 %v2733, %v2633
  %2735 = vmax.xlane.f32.xlu0 %v2734
  %v2736 = vpop.xlane.xlu0 %2735
  %v2737 = vmax.f32 %v2634, %v2635
  %v2738 = vmax.f32 %v2737, %v2636
  %2739 = vmax.xlane.f32.xlu0 %v2738
  %v2740 = vpop.xlane.xlu0 %2739
  %v2741 = vmax.f32 %v2637, %v2638
  %v2742 = vmax.f32 %v2741, %v2639
  %2743 = vmax.xlane.f32.xlu0 %v2742
  %v2744 = vpop.xlane.xlu0 %2743
  %v2745 = vmax.f32 %v2640, %v2641
  %v2746 = vmax.f32 %v2745, %v2642
  %2747 = vmax.xlane.f32.xlu0 %v2746
  %v2748 = vpop.xlane.xlu0 %2747
  %v2749 = vmax.f32 %v2643, %v2644
  %v2750 = vmax.f32 %v2749, %v2645
  %2751 = vmax.xlane.f32.xlu0 %v2750
  %v2752 = vpop.xlane.xlu0 %2751
  %v2753 = vmax.f32 %v2646, %v2647
  %v2754 = vmax.f32 %v2753, %v2648
  %2755 = vmax.xlane.f32.xlu0 %v2754
  %v2756 = vpop.xlane.xlu0 %2755
  %v2757 = vmax.f32 %v2649, %v2650
  %v2758 = vmax.f32 %v2757, %v2651
  %2759 = vmax.xlane.f32.xlu0 %v2758
  %v2760 = vpop.xlane.xlu0 %2759
  %v2761 = vmax.f32 %v2652, %v2653
  %v2762 = vmax.f32 %v2761, %v2654
  %2763 = vmax.xlane.f32.xlu0 %v2762
  %v2764 = vpop.xlane.xlu0 %2763
  %v2765 = vmax.f32 %v2655, %v2656
  %v2766 = vmax.f32 %v2765, %v2657
  %2767 = vmax.xlane.f32.xlu0 %v2766
  %v2768 = vpop.xlane.xlu0 %2767
  %v2769 = vmax.f32 %v2658, %v2659
  %v2770 = vmax.f32 %v2769, %v2660
  %2771 = vmax.xlane.f32.xlu0 %v2770
  %v2772 = vpop.xlane.xlu0 %2771
  %v2773 = vmax.f32 %v2661, %v2662
  %v2774 = vmax.f32 %v2773, %v2663
  %2775 = vmax.xlane.f32.xlu0 %v2774
  %v2776 = vpop.xlane.xlu0 %2775
  %v2777 = vmax.f32 %v2664, %v2665
  %v2778 = vmax.f32 %v2777, %v2666
  %2779 = vmax.xlane.f32.xlu0 %v2778
  %v2780 = vpop.xlane.xlu0 %2779
  %v2781 = vmax.f32 %v2667, %v2668
  %v2782 = vmax.f32 %v2781, %v2669
  %2783 = vmax.xlane.f32.xlu0 %v2782
  %v2784 = vpop.xlane.xlu0 %2783
  %v2785 = vmax.f32 %v2670, %v2671
  %v2786 = vmax.f32 %v2785, %v2672
  %2787 = vmax.xlane.f32.xlu0 %v2786
  %v2788 = vpop.xlane.xlu0 %2787
  %v2789 = vmax.f32 %v2673, %v2674
  %v2790 = vmax.f32 %v2789, %v2675
  %2791 = vmax.xlane.f32.xlu0 %v2790
  %v2792 = vpop.xlane.xlu0 %2791
  %v2793 = vmax.f32 %v2676, %v2677
  %v2794 = vmax.f32 %v2793, %v2678
  %2795 = vmax.xlane.f32.xlu0 %v2794
  %v2796 = vpop.xlane.xlu0 %2795
  %v2797 = vmax.f32 %v2679, %v2680
  %v2798 = vmax.f32 %v2797, %v2681
  %2799 = vmax.xlane.f32.xlu0 %v2798
  %v2800 = vpop.xlane.xlu0 %2799
  %v2801 = vmax.f32 %v2682, %v2683
  %v2802 = vmax.f32 %v2801, %v2684
  %2803 = vmax.xlane.f32.xlu0 %v2802
  %v2804 = vpop.xlane.xlu0 %2803
  %v2805 = vmax.f32 %v2685, %v2686
  %v2806 = vmax.f32 %v2805, %v2687
  %2807 = vmax.xlane.f32.xlu0 %v2806
  %v2808 = vpop.xlane.xlu0 %2807
  %v2809 = vmax.f32 %v2688, %v2689
  %v2810 = vmax.f32 %v2809, %v2690
  %2811 = vmax.xlane.f32.xlu0 %v2810
  %v2812 = vpop.xlane.xlu0 %2811
  %v2813 = vmax.f32 %v2691, %v2692
  %v2814 = vmax.f32 %v2813, %v2693
  %2815 = vmax.xlane.f32.xlu0 %v2814
  %v2816 = vpop.xlane.xlu0 %2815
  %v2817 = vmax.f32 %v2694, %v2695
  %v2818 = vmax.f32 %v2817, %v2696
  %2819 = vmax.xlane.f32.xlu0 %v2818
  %v2820 = vpop.xlane.xlu0 %2819
  %v2821 = vmax.f32 %v2697, %v2698
  %v2822 = vmax.f32 %v2821, %v2699
  %2823 = vmax.xlane.f32.xlu0 %v2822
  %v2824 = vpop.xlane.xlu0 %2823
  %v2825 = vmax.f32 %v2700, %v2701
  %v2826 = vmax.f32 %v2825, %v2702
  %2827 = vmax.xlane.f32.xlu0 %v2826
  %v2828 = vpop.xlane.xlu0 %2827
  %v2829 = vmax.f32 %v2703, %v2704
  %v2830 = vmax.f32 %v2829, %v2705
  %2831 = vmax.xlane.f32.xlu0 %v2830
  %v2832 = vpop.xlane.xlu0 %2831
  %v2833 = vmax.f32 %v2706, %v2707
  %v2834 = vmax.f32 %v2833, %v2708
  %2835 = vmax.xlane.f32.xlu0 %v2834
  %v2836 = vpop.xlane.xlu0 %2835
  %v2837 = vmax.f32 %v2581, %v2712
  %v2838 = vmax.f32 %v2582, %v2716
  %v2839 = vmax.f32 %v2583, %v2720
  %v2840 = vmax.f32 %v2584, %v2724
  %v2841 = vmax.f32 %v2585, %v2728
  %v2842 = vmax.f32 %v2586, %v2732
  %v2843 = vmax.f32 %v2587, %v2736
  %v2844 = vmax.f32 %v2588, %v2740
  %v2845 = vmax.f32 %v2589, %v2744
  %v2846 = vmax.f32 %v2590, %v2748
  %v2847 = vmax.f32 %v2591, %v2752
  %v2848 = vmax.f32 %v2592, %v2756
  %v2849 = vmax.f32 %v2593, %v2760
  %v2850 = vmax.f32 %v2594, %v2764
  %v2851 = vmax.f32 %v2595, %v2768
  %v2852 = vmax.f32 %v2596, %v2772
  %v2853 = vmax.f32 %v2597, %v2776
  %v2854 = vmax.f32 %v2598, %v2780
  %v2855 = vmax.f32 %v2599, %v2784
  %v2856 = vmax.f32 %v2600, %v2788
  %v2857 = vmax.f32 %v2601, %v2792
  %v2858 = vmax.f32 %v2602, %v2796
  %v2859 = vmax.f32 %v2603, %v2800
  %v2860 = vmax.f32 %v2604, %v2804
  %v2861 = vmax.f32 %v2605, %v2808
  %v2862 = vmax.f32 %v2606, %v2812
  %v2863 = vmax.f32 %v2607, %v2816
  %v2864 = vmax.f32 %v2608, %v2820
  %v2865 = vmax.f32 %v2609, %v2824
  %v2866 = vmax.f32 %v2610, %v2828
  %v2867 = vmax.f32 %v2611, %v2832
  %v2868 = vmax.f32 %v2612, %v2836
  %2869 = vst.msk [vmem:[#allocation5] sm:$0xff] %vm2516, %v2837
  %2870 = vst.msk [vmem:[#allocation5 + $0x8] sm:$0xff] %vm2516, %v2838
  %2871 = vst.msk [vmem:[#allocation5 + $0x10] sm:$0xff] %vm2516, %v2839
  %2872 = vst.msk [vmem:[#allocation5 + $0x18] sm:$0xff] %vm2516, %v2840
  %2873 = vst.msk [vmem:[#allocation5 + $0x20] sm:$0xff] %vm2516, %v2841
  %2874 = vst.msk [vmem:[#allocation5 + $0x28] sm:$0xff] %vm2516, %v2842
  %2875 = vst.msk [vmem:[#allocation5 + $0x30] sm:$0xff] %vm2516, %v2843
  %2876 = vst.msk [vmem:[#allocation5 + $0x38] sm:$0xff] %vm2516, %v2844
  %2877 = vst.msk [vmem:[#allocation5 + $0x40] sm:$0xff] %vm2516, %v2845
  %2878 = vst.msk [vmem:[#allocation5 + $0x48] sm:$0xff] %vm2516, %v2846
  %2879 = vst.msk [vmem:[#allocation5 + $0x50] sm:$0xff] %vm2516, %v2847
  %2880 = vst.msk [vmem:[#allocation5 + $0x58] sm:$0xff] %vm2516, %v2848
  %2881 = vst.msk [vmem:[#allocation5 + $0x60] sm:$0xff] %vm2516, %v2849
  %2882 = vst.msk [vmem:[#allocation5 + $0x68] sm:$0xff] %vm2516, %v2850
  %2883 = vst.msk [vmem:[#allocation5 + $0x70] sm:$0xff] %vm2516, %v2851
  %2884 = vst.msk [vmem:[#allocation5 + $0x78] sm:$0xff] %vm2516, %v2852
  %2885 = vst.msk [vmem:[#allocation5 + $0x80] sm:$0xff] %vm2516, %v2853
  %2886 = vst.msk [vmem:[#allocation5 + $0x88] sm:$0xff] %vm2516, %v2854
  %2887 = vst.msk [vmem:[#allocation5 + $0x90] sm:$0xff] %vm2516, %v2855
  %2888 = vst.msk [vmem:[#allocation5 + $0x98] sm:$0xff] %vm2516, %v2856
  %2889 = vst.msk [vmem:[#allocation5 + $0xa0] sm:$0xff] %vm2516, %v2857
  %2890 = vst.msk [vmem:[#allocation5 + $0xa8] sm:$0xff] %vm2516, %v2858
  %2891 = vst.msk [vmem:[#allocation5 + $0xb0] sm:$0xff] %vm2516, %v2859
  %2892 = vst.msk [vmem:[#allocation5 + $0xb8] sm:$0xff] %vm2516, %v2860
  %2893 = vst.msk [vmem:[#allocation5 + $0xc0] sm:$0xff] %vm2516, %v2861
  %2894 = vst.msk [vmem:[#allocation5 + $0xc8] sm:$0xff] %vm2516, %v2862
  %2895 = vst.msk [vmem:[#allocation5 + $0xd0] sm:$0xff] %vm2516, %v2863
  %2896 = vst.msk [vmem:[#allocation5 + $0xd8] sm:$0xff] %vm2516, %v2864
  %2897 = vst.msk [vmem:[#allocation5 + $0xe0] sm:$0xff] %vm2516, %v2865
  %2898 = vst.msk [vmem:[#allocation5 + $0xe8] sm:$0xff] %vm2516, %v2866
  %2899 = vst.msk [vmem:[#allocation5 + $0xf0] sm:$0xff] %vm2516, %v2867
  %2900 = vst.msk [vmem:[#allocation5 + $0xf8] sm:$0xff] %vm2516, %v2868
  // Predicated region
  $region18: #{_am_softmax_padded.1} parent=0 // pred_check
    %p2901 = pneg %p17
  $region19: #{_am_softmax_padded.1} parent=0 // pred_check_branch
    %2903 = sbr.rel (%p2901) target = $region21
  $region20: #{_am_softmax_padded.1} parent=0 // pred_region
    %v2904 = vld [vmem:[#allocation3] sm:$0xff]
    %v2905 = vld [vmem:[#allocation3 + $0x8] sm:$0xff]
    %v2906 = vld [vmem:[#allocation3 + $0x10] sm:$0xff]
    %v2907 = vld [vmem:[#allocation3 + $0x18] sm:$0xff]
    %v2908 = vld [vmem:[#allocation3 + $0x20] sm:$0xff]
    %v2909 = vld [vmem:[#allocation3 + $0x28] sm:$0xff]
    %v2910 = vld [vmem:[#allocation3 + $0x30] sm:$0xff]
    %v2911 = vld [vmem:[#allocation3 + $0x38] sm:$0xff]
    %v2912 = vld [vmem:[#allocation3 + $0x40] sm:$0xff]
    %v2913 = vld [vmem:[#allocation3 + $0x48] sm:$0xff]
    %v2914 = vld [vmem:[#allocation3 + $0x50] sm:$0xff]
    %v2915 = vld [vmem:[#allocation3 + $0x58] sm:$0xff]
    %v2916 = vld [vmem:[#allocation3 + $0x60] sm:$0xff]
    %v2917 = vld [vmem:[#allocation3 + $0x68] sm:$0xff]
    %v2918 = vld [vmem:[#allocation3 + $0x70] sm:$0xff]
    %v2919 = vld [vmem:[#allocation3 + $0x78] sm:$0xff]
    %v2920 = vld [vmem:[#allocation3 + $0x80] sm:$0xff]
    %v2921 = vld [vmem:[#allocation3 + $0x88] sm:$0xff]
    %v2922 = vld [vmem:[#allocation3 + $0x90] sm:$0xff]
    %v2923 = vld [vmem:[#allocation3 + $0x98] sm:$0xff]
    %v2924 = vld [vmem:[#allocation3 + $0xa0] sm:$0xff]
    %v2925 = vld [vmem:[#allocation3 + $0xa8] sm:$0xff]
    %v2926 = vld [vmem:[#allocation3 + $0xb0] sm:$0xff]
    %v2927 = vld [vmem:[#allocation3 + $0xb8] sm:$0xff]
    %v2928 = vld [vmem:[#allocation3 + $0xc0] sm:$0xff]
    %v2929 = vld [vmem:[#allocation3 + $0xc8] sm:$0xff]
    %v2930 = vld [vmem:[#allocation3 + $0xd0] sm:$0xff]
    %v2931 = vld [vmem:[#allocation3 + $0xd8] sm:$0xff]
    %v2932 = vld [vmem:[#allocation3 + $0xe0] sm:$0xff]
    %v2933 = vld [vmem:[#allocation3 + $0xe8] sm:$0xff]
    %v2934 = vld [vmem:[#allocation3 + $0xf0] sm:$0xff]
    %v2935 = vld [vmem:[#allocation3 + $0xf8] sm:$0xff]
    %v2936 = vld [vmem:[#allocation4] sm:$0xff]
    %v2937 = vld [vmem:[#allocation4 + $0x8] sm:$0xff]
    %v2938 = vld [vmem:[#allocation4 + $0x10] sm:$0xff]
    %v2939 = vld [vmem:[#allocation4 + $0x18] sm:$0xff]
    %v2940 = vld [vmem:[#allocation4 + $0x20] sm:$0xff]
    %v2941 = vld [vmem:[#allocation4 + $0x28] sm:$0xff]
    %v2942 = vld [vmem:[#allocation4 + $0x30] sm:$0xff]
    %v2943 = vld [vmem:[#allocation4 + $0x38] sm:$0xff]
    %v2944 = vld [vmem:[#allocation4 + $0x40] sm:$0xff]
    %v2945 = vld [vmem:[#allocation4 + $0x48] sm:$0xff]
    %v2946 = vld [vmem:[#allocation4 + $0x50] sm:$0xff]
    %v2947 = vld [vmem:[#allocation4 + $0x58] sm:$0xff]
    %v2948 = vld [vmem:[#allocation4 + $0x60] sm:$0xff]
    %v2949 = vld [vmem:[#allocation4 + $0x68] sm:$0xff]
    %v2950 = vld [vmem:[#allocation4 + $0x70] sm:$0xff]
    %v2951 = vld [vmem:[#allocation4 + $0x78] sm:$0xff]
    %v2952 = vld [vmem:[#allocation4 + $0x80] sm:$0xff]
    %v2953 = vld [vmem:[#allocation4 + $0x88] sm:$0xff]
    %v2954 = vld [vmem:[#allocation4 + $0x90] sm:$0xff]
    %v2955 = vld [vmem:[#allocation4 + $0x98] sm:$0xff]
    %v2956 = vld [vmem:[#allocation4 + $0xa0] sm:$0xff]
    %v2957 = vld [vmem:[#allocation4 + $0xa8] sm:$0xff]
    %v2958 = vld [vmem:[#allocation4 + $0xb0] sm:$0xff]
    %v2959 = vld [vmem:[#allocation4 + $0xb8] sm:$0xff]
    %v2960 = vld [vmem:[#allocation4 + $0xc0] sm:$0xff]
    %v2961 = vld [vmem:[#allocation4 + $0xc8] sm:$0xff]
    %v2962 = vld [vmem:[#allocation4 + $0xd0] sm:$0xff]
    %v2963 = vld [vmem:[#allocation4 + $0xd8] sm:$0xff]
    %v2964 = vld [vmem:[#allocation4 + $0xe0] sm:$0xff]
    %v2965 = vld [vmem:[#allocation4 + $0xe8] sm:$0xff]
    %v2966 = vld [vmem:[#allocation4 + $0xf0] sm:$0xff]
    %v2967 = vld [vmem:[#allocation4 + $0xf8] sm:$0xff]
    %v2968 = vlog2.pop %v2936
    %v2969 = vmul.f32 %v2968, 0.6931472
    %v2970 = vlog2.pop %v2937
    %v2971 = vmul.f32 %v2970, 0.6931472
    %v2972 = vlog2.pop %v2938
    %v2973 = vmul.f32 %v2972, 0.6931472
    %v2974 = vlog2.pop %v2939
    %v2975 = vmul.f32 %v2974, 0.6931472
    %v2976 = vlog2.pop %v2940
    %v2977 = vmul.f32 %v2976, 0.6931472
    %v2978 = vlog2.pop %v2941
    %v2979 = vmul.f32 %v2978, 0.6931472
    %v2980 = vlog2.pop %v2942
    %v2981 = vmul.f32 %v2980, 0.6931472
    %v2982 = vlog2.pop %v2943
    %v2983 = vmul.f32 %v2982, 0.6931472
    %v2984 = vlog2.pop %v2944
    %v2985 = vmul.f32 %v2984, 0.6931472
    %v2986 = vlog2.pop %v2945
    %v2987 = vmul.f32 %v2986, 0.6931472
    %v2988 = vlog2.pop %v2946
    %v2989 = vmul.f32 %v2988, 0.6931472
    %v2990 = vlog2.pop %v2947
    %v2991 = vmul.f32 %v2990, 0.6931472
    %v2992 = vlog2.pop %v2948
    %v2993 = vmul.f32 %v2992, 0.6931472
    %v2994 = vlog2.pop %v2949
    %v2995 = vmul.f32 %v2994, 0.6931472
    %v2996 = vlog2.pop %v2950
    %v2997 = vmul.f32 %v2996, 0.6931472
    %v2998 = vlog2.pop %v2951
    %v2999 = vmul.f32 %v2998, 0.6931472
    %v3000 = vlog2.pop %v2952
    %v3001 = vmul.f32 %v3000, 0.6931472
    %v3002 = vlog2.pop %v2953
    %v3003 = vmul.f32 %v3002, 0.6931472
    %v3004 = vlog2.pop %v2954
    %v3005 = vmul.f32 %v3004, 0.6931472
    %v3006 = vlog2.pop %v2955
    %v3007 = vmul.f32 %v3006, 0.6931472
    %v3008 = vlog2.pop %v2956
    %v3009 = vmul.f32 %v3008, 0.6931472
    %v3010 = vlog2.pop %v2957
    %v3011 = vmul.f32 %v3010, 0.6931472
    %v3012 = vlog2.pop %v2958
    %v3013 = vmul.f32 %v3012, 0.6931472
    %v3014 = vlog2.pop %v2959
    %v3015 = vmul.f32 %v3014, 0.6931472
    %v3016 = vlog2.pop %v2960
    %v3017 = vmul.f32 %v3016, 0.6931472
    %v3018 = vlog2.pop %v2961
    %v3019 = vmul.f32 %v3018, 0.6931472
    %v3020 = vlog2.pop %v2962
    %v3021 = vmul.f32 %v3020, 0.6931472
    %v3022 = vlog2.pop %v2963
    %v3023 = vmul.f32 %v3022, 0.6931472
    %v3024 = vlog2.pop %v2964
    %v3025 = vmul.f32 %v3024, 0.6931472
    %v3026 = vlog2.pop %v2965
    %v3027 = vmul.f32 %v3026, 0.6931472
    %v3028 = vlog2.pop %v2966
    %v3029 = vmul.f32 %v3028, 0.6931472
    %v3030 = vlog2.pop %v2967
    %v3031 = vmul.f32 %v3030, 0.6931472
    %v3032 = vadd.f32 %v2904, %v2969
    %v3033 = vadd.f32 %v2905, %v2971
    %v3034 = vadd.f32 %v2906, %v2973
    %v3035 = vadd.f32 %v2907, %v2975
    %v3036 = vadd.f32 %v2908, %v2977
    %v3037 = vadd.f32 %v2909, %v2979
    %v3038 = vadd.f32 %v2910, %v2981
    %v3039 = vadd.f32 %v2911, %v2983
    %v3040 = vadd.f32 %v2912, %v2985
    %v3041 = vadd.f32 %v2913, %v2987
    %v3042 = vadd.f32 %v2914, %v2989
    %v3043 = vadd.f32 %v2915, %v2991
    %v3044 = vadd.f32 %v2916, %v2993
    %v3045 = vadd.f32 %v2917, %v2995
    %v3046 = vadd.f32 %v2918, %v2997
    %v3047 = vadd.f32 %v2919, %v2999
    %v3048 = vadd.f32 %v2920, %v3001
    %v3049 = vadd.f32 %v2921, %v3003
    %v3050 = vadd.f32 %v2922, %v3005
    %v3051 = vadd.f32 %v2923, %v3007
    %v3052 = vadd.f32 %v2924, %v3009
    %v3053 = vadd.f32 %v2925, %v3011
    %v3054 = vadd.f32 %v2926, %v3013
    %v3055 = vadd.f32 %v2927, %v3015
    %v3056 = vadd.f32 %v2928, %v3017
    %v3057 = vadd.f32 %v2929, %v3019
    %v3058 = vadd.f32 %v2930, %v3021
    %v3059 = vadd.f32 %v2931, %v3023
    %v3060 = vadd.f32 %v2932, %v3025
    %v3061 = vadd.f32 %v2933, %v3027
    %v3062 = vadd.f32 %v2934, %v3029
    %v3063 = vadd.f32 %v2935, %v3031
    %v3064 = vld [vmem:[#allocation5] sm:$0xff]
    %v3065 = vld [vmem:[#allocation5 + $0x8] sm:$0xff]
    %v3066 = vld [vmem:[#allocation5 + $0x10] sm:$0xff]
    %v3067 = vld [vmem:[#allocation5 + $0x18] sm:$0xff]
    %v3068 = vld [vmem:[#allocation5 + $0x20] sm:$0xff]
    %v3069 = vld [vmem:[#allocation5 + $0x28] sm:$0xff]
    %v3070 = vld [vmem:[#allocation5 + $0x30] sm:$0xff]
    %v3071 = vld [vmem:[#allocation5 + $0x38] sm:$0xff]
    %v3072 = vld [vmem:[#allocation5 + $0x40] sm:$0xff]
    %v3073 = vld [vmem:[#allocation5 + $0x48] sm:$0xff]
    %v3074 = vld [vmem:[#allocation5 + $0x50] sm:$0xff]
    %v3075 = vld [vmem:[#allocation5 + $0x58] sm:$0xff]
    %v3076 = vld [vmem:[#allocation5 + $0x60] sm:$0xff]
    %v3077 = vld [vmem:[#allocation5 + $0x68] sm:$0xff]
    %v3078 = vld [vmem:[#allocation5 + $0x70] sm:$0xff]
    %v3079 = vld [vmem:[#allocation5 + $0x78] sm:$0xff]
    %v3080 = vld [vmem:[#allocation5 + $0x80] sm:$0xff]
    %v3081 = vld [vmem:[#allocation5 + $0x88] sm:$0xff]
    %v3082 = vld [vmem:[#allocation5 + $0x90] sm:$0xff]
    %v3083 = vld [vmem:[#allocation5 + $0x98] sm:$0xff]
    %v3084 = vld [vmem:[#allocation5 + $0xa0] sm:$0xff]
    %v3085 = vld [vmem:[#allocation5 + $0xa8] sm:$0xff]
    %v3086 = vld [vmem:[#allocation5 + $0xb0] sm:$0xff]
    %v3087 = vld [vmem:[#allocation5 + $0xb8] sm:$0xff]
    %v3088 = vld [vmem:[#allocation5 + $0xc0] sm:$0xff]
    %v3089 = vld [vmem:[#allocation5 + $0xc8] sm:$0xff]
    %v3090 = vld [vmem:[#allocation5 + $0xd0] sm:$0xff]
    %v3091 = vld [vmem:[#allocation5 + $0xd8] sm:$0xff]
    %v3092 = vld [vmem:[#allocation5 + $0xe0] sm:$0xff]
    %v3093 = vld [vmem:[#allocation5 + $0xe8] sm:$0xff]
    %v3094 = vld [vmem:[#allocation5 + $0xf0] sm:$0xff]
    %v3095 = vld [vmem:[#allocation5 + $0xf8] sm:$0xff]
    %v3096 = vsub.f32 %v3032, %v3064
    %v3097 = vsub.f32 %v3033, %v3065
    %v3098 = vsub.f32 %v3034, %v3066
    %v3099 = vsub.f32 %v3035, %v3067
    %v3100 = vsub.f32 %v3036, %v3068
    %v3101 = vsub.f32 %v3037, %v3069
    %v3102 = vsub.f32 %v3038, %v3070
    %v3103 = vsub.f32 %v3039, %v3071
    %v3104 = vsub.f32 %v3040, %v3072
    %v3105 = vsub.f32 %v3041, %v3073
    %v3106 = vsub.f32 %v3042, %v3074
    %v3107 = vsub.f32 %v3043, %v3075
    %v3108 = vsub.f32 %v3044, %v3076
    %v3109 = vsub.f32 %v3045, %v3077
    %v3110 = vsub.f32 %v3046, %v3078
    %v3111 = vsub.f32 %v3047, %v3079
    %v3112 = vsub.f32 %v3048, %v3080
    %v3113 = vsub.f32 %v3049, %v3081
    %v3114 = vsub.f32 %v3050, %v3082
    %v3115 = vsub.f32 %v3051, %v3083
    %v3116 = vsub.f32 %v3052, %v3084
    %v3117 = vsub.f32 %v3053, %v3085
    %v3118 = vsub.f32 %v3054, %v3086
    %v3119 = vsub.f32 %v3055, %v3087
    %v3120 = vsub.f32 %v3056, %v3088
    %v3121 = vsub.f32 %v3057, %v3089
    %v3122 = vsub.f32 %v3058, %v3090
    %v3123 = vsub.f32 %v3059, %v3091
    %v3124 = vsub.f32 %v3060, %v3092
    %v3125 = vsub.f32 %v3061, %v3093
    %v3126 = vsub.f32 %v3062, %v3094
    %v3127 = vsub.f32 %v3063, %v3095
    %vm3128 = vcmp.ge.f32.partialorder %v3064, %v2904
    %vm3129 = vcmp.ge.f32.partialorder %v3065, %v2905
    %vm3130 = vcmp.ge.f32.partialorder %v3066, %v2906
    %vm3131 = vcmp.ge.f32.partialorder %v3067, %v2907
    %vm3132 = vcmp.ge.f32.partialorder %v3068, %v2908
    %vm3133 = vcmp.ge.f32.partialorder %v3069, %v2909
    %vm3134 = vcmp.ge.f32.partialorder %v3070, %v2910
    %vm3135 = vcmp.ge.f32.partialorder %v3071, %v2911
    %vm3136 = vcmp.ge.f32.partialorder %v3072, %v2912
    %vm3137 = vcmp.ge.f32.partialorder %v3073, %v2913
    %vm3138 = vcmp.ge.f32.partialorder %v3074, %v2914
    %vm3139 = vcmp.ge.f32.partialorder %v3075, %v2915
    %vm3140 = vcmp.ge.f32.partialorder %v3076, %v2916
    %vm3141 = vcmp.ge.f32.partialorder %v3077, %v2917
    %vm3142 = vcmp.ge.f32.partialorder %v3078, %v2918
    %vm3143 = vcmp.ge.f32.partialorder %v3079, %v2919
    %vm3144 = vcmp.ge.f32.partialorder %v3080, %v2920
    %vm3145 = vcmp.ge.f32.partialorder %v3081, %v2921
    %vm3146 = vcmp.ge.f32.partialorder %v3082, %v2922
    %vm3147 = vcmp.ge.f32.partialorder %v3083, %v2923
    %vm3148 = vcmp.ge.f32.partialorder %v3084, %v2924
    %vm3149 = vcmp.ge.f32.partialorder %v3085, %v2925
    %vm3150 = vcmp.ge.f32.partialorder %v3086, %v2926
    %vm3151 = vcmp.ge.f32.partialorder %v3087, %v2927
    %vm3152 = vcmp.ge.f32.partialorder %v3088, %v2928
    %vm3153 = vcmp.ge.f32.partialorder %v3089, %v2929
    %vm3154 = vcmp.ge.f32.partialorder %v3090, %v2930
    %vm3155 = vcmp.ge.f32.partialorder %v3091, %v2931
    %vm3156 = vcmp.ge.f32.partialorder %v3092, %v2932
    %vm3157 = vcmp.ge.f32.partialorder %v3093, %v2933
    %vm3158 = vcmp.ge.f32.partialorder %v3094, %v2934
    %vm3159 = vcmp.ge.f32.partialorder %v3095, %v2935
    %v3160 = vsel %vm3128, 1, 0
    %v3161 = vsel %vm3129, 1, 0
    %v3162 = vsel %vm3130, 1, 0
    %v3163 = vsel %vm3131, 1, 0
    %v3164 = vsel %vm3132, 1, 0
    %v3165 = vsel %vm3133, 1, 0
    %v3166 = vsel %vm3134, 1, 0
    %v3167 = vsel %vm3135, 1, 0
    %v3168 = vsel %vm3136, 1, 0
    %v3169 = vsel %vm3137, 1, 0
    %v3170 = vsel %vm3138, 1, 0
    %v3171 = vsel %vm3139, 1, 0
    %v3172 = vsel %vm3140, 1, 0
    %v3173 = vsel %vm3141, 1, 0
    %v3174 = vsel %vm3142, 1, 0
    %v3175 = vsel %vm3143, 1, 0
    %v3176 = vsel %vm3144, 1, 0
    %v3177 = vsel %vm3145, 1, 0
    %v3178 = vsel %vm3146, 1, 0
    %v3179 = vsel %vm3147, 1, 0
    %v3180 = vsel %vm3148, 1, 0
    %v3181 = vsel %vm3149, 1, 0
    %v3182 = vsel %vm3150, 1, 0
    %v3183 = vsel %vm3151, 1, 0
    %v3184 = vsel %vm3152, 1, 0
    %v3185 = vsel %vm3153, 1, 0
    %v3186 = vsel %vm3154, 1, 0
    %v3187 = vsel %vm3155, 1, 0
    %v3188 = vsel %vm3156, 1, 0
    %v3189 = vsel %vm3157, 1, 0
    %v3190 = vsel %vm3158, 1, 0
    %v3191 = vsel %vm3159, 1, 0
    %v3192 = vcvt.s32.f32 %v3160
    %v3193 = vcvt.s32.f32 %v3161
    %v3194 = vcvt.s32.f32 %v3162
    %v3195 = vcvt.s32.f32 %v3163
    %v3196 = vcvt.s32.f32 %v3164
    %v3197 = vcvt.s32.f32 %v3165
    %v3198 = vcvt.s32.f32 %v3166
    %v3199 = vcvt.s32.f32 %v3167
    %v3200 = vcvt.s32.f32 %v3168
    %v3201 = vcvt.s32.f32 %v3169
    %v3202 = vcvt.s32.f32 %v3170
    %v3203 = vcvt.s32.f32 %v3171
    %v3204 = vcvt.s32.f32 %v3172
    %v3205 = vcvt.s32.f32 %v3173
    %v3206 = vcvt.s32.f32 %v3174
    %v3207 = vcvt.s32.f32 %v3175
    %v3208 = vcvt.s32.f32 %v3176
    %v3209 = vcvt.s32.f32 %v3177
    %v3210 = vcvt.s32.f32 %v3178
    %v3211 = vcvt.s32.f32 %v3179
    %v3212 = vcvt.s32.f32 %v3180
    %v3213 = vcvt.s32.f32 %v3181
    %v3214 = vcvt.s32.f32 %v3182
    %v3215 = vcvt.s32.f32 %v3183
    %v3216 = vcvt.s32.f32 %v3184
    %v3217 = vcvt.s32.f32 %v3185
    %v3218 = vcvt.s32.f32 %v3186
    %v3219 = vcvt.s32.f32 %v3187
    %v3220 = vcvt.s32.f32 %v3188
    %v3221 = vcvt.s32.f32 %v3189
    %v3222 = vcvt.s32.f32 %v3190
    %v3223 = vcvt.s32.f32 %v3191
    %s3224 = smul.u32 0, 256
    %v3225 = vlaneseq
    %v3226 = vshrl.u32 %v3225, 7
    %v3227 = vadd.s32 %v3226, 8
    %v3228 = vadd.s32 %v3226, 16
    %v3229 = vadd.s32 %v3226, 24
    %v3230 = vadd.s32 %v3226, 32
    %v3231 = vadd.s32 %v3226, 40
    %v3232 = vadd.s32 %v3226, 48
    %v3233 = vadd.s32 %v3226, 56
    %v3234 = vadd.s32 %v3226, 64
    %v3235 = vadd.s32 %v3226, 72
    %v3236 = vadd.s32 %v3226, 80
    %v3237 = vadd.s32 %v3226, 88
    %v3238 = vadd.s32 %v3226, 96
    %v3239 = vadd.s32 %v3226, 104
    %v3240 = vadd.s32 %v3226, 112
    %v3241 = vadd.s32 %v3226, 120
    %v3242 = vadd.s32 %v3226, 128
    %v3243 = vadd.s32 %v3226, 136
    %v3244 = vadd.s32 %v3226, 144
    %v3245 = vadd.s32 %v3226, 152
    %v3246 = vadd.s32 %v3226, 160
    %v3247 = vadd.s32 %v3226, 168
    %v3248 = vadd.s32 %v3226, 176
    %v3249 = vadd.s32 %v3226, 184
    %v3250 = vadd.s32 %v3226, 192
    %v3251 = vadd.s32 %v3226, 200
    %v3252 = vadd.s32 %v3226, 208
    %v3253 = vadd.s32 %v3226, 216
    %v3254 = vadd.s32 %v3226, 224
    %v3255 = vadd.s32 %v3226, 232
    %v3256 = vadd.s32 %v3226, 240
    %v3257 = vadd.s32 %v3226, 248
    %v3258 = vstv %s3224
    %v3259 = vadd.s32 %v3258, %v3226
    %v3260 = vadd.s32 %v3258, %v3227
    %v3261 = vadd.s32 %v3258, %v3228
    %v3262 = vadd.s32 %v3258, %v3229
    %v3263 = vadd.s32 %v3258, %v3230
    %v3264 = vadd.s32 %v3258, %v3231
    %v3265 = vadd.s32 %v3258, %v3232
    %v3266 = vadd.s32 %v3258, %v3233
    %v3267 = vadd.s32 %v3258, %v3234
    %v3268 = vadd.s32 %v3258, %v3235
    %v3269 = vadd.s32 %v3258, %v3236
    %v3270 = vadd.s32 %v3258, %v3237
    %v3271 = vadd.s32 %v3258, %v3238
    %v3272 = vadd.s32 %v3258, %v3239
    %v3273 = vadd.s32 %v3258, %v3240
    %v3274 = vadd.s32 %v3258, %v3241
    %v3275 = vadd.s32 %v3258, %v3242
    %v3276 = vadd.s32 %v3258, %v3243
    %v3277 = vadd.s32 %v3258, %v3244
    %v3278 = vadd.s32 %v3258, %v3245
    %v3279 = vadd.s32 %v3258, %v3246
    %v3280 = vadd.s32 %v3258, %v3247
    %v3281 = vadd.s32 %v3258, %v3248
    %v3282 = vadd.s32 %v3258, %v3249
    %v3283 = vadd.s32 %v3258, %v3250
    %v3284 = vadd.s32 %v3258, %v3251
    %v3285 = vadd.s32 %v3258, %v3252
    %v3286 = vadd.s32 %v3258, %v3253
    %v3287 = vadd.s32 %v3258, %v3254
    %v3288 = vadd.s32 %v3258, %v3255
    %v3289 = vadd.s32 %v3258, %v3256
    %v3290 = vadd.s32 %v3258, %v3257
    %vm3291 = vcmp.lt.s32.totalorder %v3259, 200
    %vm3292 = vcmp.lt.s32.totalorder %v3260, 200
    %vm3293 = vcmp.lt.s32.totalorder %v3261, 200
    %vm3294 = vcmp.lt.s32.totalorder %v3262, 200
    %vm3295 = vcmp.lt.s32.totalorder %v3263, 200
    %vm3296 = vcmp.lt.s32.totalorder %v3264, 200
    %vm3297 = vcmp.lt.s32.totalorder %v3265, 200
    %vm3298 = vcmp.lt.s32.totalorder %v3266, 200
    %vm3299 = vcmp.lt.s32.totalorder %v3267, 200
    %vm3300 = vcmp.lt.s32.totalorder %v3268, 200
    %vm3301 = vcmp.lt.s32.totalorder %v3269, 200
    %vm3302 = vcmp.lt.s32.totalorder %v3270, 200
    %vm3303 = vcmp.lt.s32.totalorder %v3271, 200
    %vm3304 = vcmp.lt.s32.totalorder %v3272, 200
    %vm3305 = vcmp.lt.s32.totalorder %v3273, 200
    %vm3306 = vcmp.lt.s32.totalorder %v3274, 200
    %vm3307 = vcmp.lt.s32.totalorder %v3275, 200
    %vm3308 = vcmp.lt.s32.totalorder %v3276, 200
    %vm3309 = vcmp.lt.s32.totalorder %v3277, 200
    %vm3310 = vcmp.lt.s32.totalorder %v3278, 200
    %vm3311 = vcmp.lt.s32.totalorder %v3279, 200
    %vm3312 = vcmp.lt.s32.totalorder %v3280, 200
    %vm3313 = vcmp.lt.s32.totalorder %v3281, 200
    %vm3314 = vcmp.lt.s32.totalorder %v3282, 200
    %vm3315 = vcmp.lt.s32.totalorder %v3283, 200
    %vm3316 = vcmp.lt.s32.totalorder %v3284, 200
    %vm3317 = vcmp.lt.s32.totalorder %v3285, 200
    %vm3318 = vcmp.lt.s32.totalorder %v3286, 200
    %vm3319 = vcmp.lt.s32.totalorder %v3287, 200
    %vm3320 = vcmp.lt.s32.totalorder %v3288, 200
    %vm3321 = vcmp.lt.s32.totalorder %v3289, 200
    %vm3322 = vcmp.lt.s32.totalorder %v3290, 200
    %v3323 = vsel %vm3291, 1, 0
    %v3324 = vsel %vm3292, 1, 0
    %v3325 = vsel %vm3293, 1, 0
    %v3326 = vsel %vm3294, 1, 0
    %v3327 = vsel %vm3295, 1, 0
    %v3328 = vsel %vm3296, 1, 0
    %v3329 = vsel %vm3297, 1, 0
    %v3330 = vsel %vm3298, 1, 0
    %v3331 = vsel %vm3299, 1, 0
    %v3332 = vsel %vm3300, 1, 0
    %v3333 = vsel %vm3301, 1, 0
    %v3334 = vsel %vm3302, 1, 0
    %v3335 = vsel %vm3303, 1, 0
    %v3336 = vsel %vm3304, 1, 0
    %v3337 = vsel %vm3305, 1, 0
    %v3338 = vsel %vm3306, 1, 0
    %v3339 = vsel %vm3307, 1, 0
    %v3340 = vsel %vm3308, 1, 0
    %v3341 = vsel %vm3309, 1, 0
    %v3342 = vsel %vm3310, 1, 0
    %v3343 = vsel %vm3311, 1, 0
    %v3344 = vsel %vm3312, 1, 0
    %v3345 = vsel %vm3313, 1, 0
    %v3346 = vsel %vm3314, 1, 0
    %v3347 = vsel %vm3315, 1, 0
    %v3348 = vsel %vm3316, 1, 0
    %v3349 = vsel %vm3317, 1, 0
    %v3350 = vsel %vm3318, 1, 0
    %v3351 = vsel %vm3319, 1, 0
    %v3352 = vsel %vm3320, 1, 0
    %v3353 = vsel %vm3321, 1, 0
    %v3354 = vsel %vm3322, 1, 0
    %v3355 = vcvt.s32.f32 %v3323
    %v3356 = vcvt.s32.f32 %v3324
    %v3357 = vcvt.s32.f32 %v3325
    %v3358 = vcvt.s32.f32 %v3326
    %v3359 = vcvt.s32.f32 %v3327
    %v3360 = vcvt.s32.f32 %v3328
    %v3361 = vcvt.s32.f32 %v3329
    %v3362 = vcvt.s32.f32 %v3330
    %v3363 = vcvt.s32.f32 %v3331
    %v3364 = vcvt.s32.f32 %v3332
    %v3365 = vcvt.s32.f32 %v3333
    %v3366 = vcvt.s32.f32 %v3334
    %v3367 = vcvt.s32.f32 %v3335
    %v3368 = vcvt.s32.f32 %v3336
    %v3369 = vcvt.s32.f32 %v3337
    %v3370 = vcvt.s32.f32 %v3338
    %v3371 = vcvt.s32.f32 %v3339
    %v3372 = vcvt.s32.f32 %v3340
    %v3373 = vcvt.s32.f32 %v3341
    %v3374 = vcvt.s32.f32 %v3342
    %v3375 = vcvt.s32.f32 %v3343
    %v3376 = vcvt.s32.f32 %v3344
    %v3377 = vcvt.s32.f32 %v3345
    %v3378 = vcvt.s32.f32 %v3346
    %v3379 = vcvt.s32.f32 %v3347
    %v3380 = vcvt.s32.f32 %v3348
    %v3381 = vcvt.s32.f32 %v3349
    %v3382 = vcvt.s32.f32 %v3350
    %v3383 = vcvt.s32.f32 %v3351
    %v3384 = vcvt.s32.f32 %v3352
    %v3385 = vcvt.s32.f32 %v3353
    %v3386 = vcvt.s32.f32 %v3354
    %v3387 = vmul.f32 %v3096, %v3355
    %v3388 = vmul.f32 %v3097, %v3356
    %v3389 = vmul.f32 %v3098, %v3357
    %v3390 = vmul.f32 %v3099, %v3358
    %v3391 = vmul.f32 %v3100, %v3359
    %v3392 = vmul.f32 %v3101, %v3360
    %v3393 = vmul.f32 %v3102, %v3361
    %v3394 = vmul.f32 %v3103, %v3362
    %v3395 = vmul.f32 %v3104, %v3363
    %v3396 = vmul.f32 %v3105, %v3364
    %v3397 = vmul.f32 %v3106, %v3365
    %v3398 = vmul.f32 %v3107, %v3366
    %v3399 = vmul.f32 %v3108, %v3367
    %v3400 = vmul.f32 %v3109, %v3368
    %v3401 = vmul.f32 %v3110, %v3369
    %v3402 = vmul.f32 %v3111, %v3370
    %v3403 = vmul.f32 %v3112, %v3371
    %v3404 = vmul.f32 %v3113, %v3372
    %v3405 = vmul.f32 %v3114, %v3373
    %v3406 = vmul.f32 %v3115, %v3374
    %v3407 = vmul.f32 %v3116, %v3375
    %v3408 = vmul.f32 %v3117, %v3376
    %v3409 = vmul.f32 %v3118, %v3377
    %v3410 = vmul.f32 %v3119, %v3378
    %v3411 = vmul.f32 %v3120, %v3379
    %v3412 = vmul.f32 %v3121, %v3380
    %v3413 = vmul.f32 %v3122, %v3381
    %v3414 = vmul.f32 %v3123, %v3382
    %v3415 = vmul.f32 %v3124, %v3383
    %v3416 = vmul.f32 %v3125, %v3384
    %v3417 = vmul.f32 %v3126, %v3385
    %v3418 = vmul.f32 %v3127, %v3386
    %v3419 = vmul.f32 %v3192, %v3355
    %v3420 = vmul.f32 %v3193, %v3356
    %v3421 = vmul.f32 %v3194, %v3357
    %v3422 = vmul.f32 %v3195, %v3358
    %v3423 = vmul.f32 %v3196, %v3359
    %v3424 = vmul.f32 %v3197, %v3360
    %v3425 = vmul.f32 %v3198, %v3361
    %v3426 = vmul.f32 %v3199, %v3362
    %v3427 = vmul.f32 %v3200, %v3363
    %v3428 = vmul.f32 %v3201, %v3364
    %v3429 = vmul.f32 %v3202, %v3365
    %v3430 = vmul.f32 %v3203, %v3366
    %v3431 = vmul.f32 %v3204, %v3367
    %v3432 = vmul.f32 %v3205, %v3368
    %v3433 = vmul.f32 %v3206, %v3369
    %v3434 = vmul.f32 %v3207, %v3370
    %v3435 = vmul.f32 %v3208, %v3371
    %v3436 = vmul.f32 %v3209, %v3372
    %v3437 = vmul.f32 %v3210, %v3373
    %v3438 = vmul.f32 %v3211, %v3374
    %v3439 = vmul.f32 %v3212, %v3375
    %v3440 = vmul.f32 %v3213, %v3376
    %v3441 = vmul.f32 %v3214, %v3377
    %v3442 = vmul.f32 %v3215, %v3378
    %v3443 = vmul.f32 %v3216, %v3379
    %v3444 = vmul.f32 %v3217, %v3380
    %v3445 = vmul.f32 %v3218, %v3381
    %v3446 = vmul.f32 %v3219, %v3382
    %v3447 = vmul.f32 %v3220, %v3383
    %v3448 = vmul.f32 %v3221, %v3384
    %v3449 = vmul.f32 %v3222, %v3385
    %v3450 = vmul.f32 %v3223, %v3386
    %v3451 = vsel %vm2516, %v3387, 0.0
    %v3452 = vsel %vm2516, %v3388, 0.0
    %v3453 = vadd.f32 %v3451, %v3452
    %v3454 = vsel %vm2516, %v3389, 0.0
    %v3455 = vadd.f32 %v3453, %v3454
    %v3456 = vsel %vm2516, %v3390, 0.0
    %v3457 = vadd.f32 %v3455, %v3456
    %v3458 = vsel %vm2516, %v3391, 0.0
    %v3459 = vadd.f32 %v3457, %v3458
    %v3460 = vsel %vm2516, %v3392, 0.0
    %v3461 = vadd.f32 %v3459, %v3460
    %v3462 = vsel %vm2516, %v3393, 0.0
    %v3463 = vadd.f32 %v3461, %v3462
    %v3464 = vsel %vm2516, %v3394, 0.0
    %v3465 = vadd.f32 %v3463, %v3464
    %v3466 = vsel %vm2516, %v3395, 0.0
    %v3467 = vadd.f32 %v3465, %v3466
    %v3468 = vsel %vm2516, %v3396, 0.0
    %v3469 = vadd.f32 %v3467, %v3468
    %v3470 = vsel %vm2516, %v3397, 0.0
    %v3471 = vadd.f32 %v3469, %v3470
    %v3472 = vsel %vm2516, %v3398, 0.0
    %v3473 = vadd.f32 %v3471, %v3472
    %v3474 = vsel %vm2516, %v3399, 0.0
    %v3475 = vadd.f32 %v3473, %v3474
    %v3476 = vsel %vm2516, %v3400, 0.0
    %v3477 = vadd.f32 %v3475, %v3476
    %v3478 = vsel %vm2516, %v3401, 0.0
    %v3479 = vadd.f32 %v3477, %v3478
    %v3480 = vsel %vm2516, %v3402, 0.0
    %v3481 = vadd.f32 %v3479, %v3480
    %v3482 = vsel %vm2516, %v3403, 0.0
    %v3483 = vadd.f32 %v3481, %v3482
    %v3484 = vsel %vm2516, %v3404, 0.0
    %v3485 = vadd.f32 %v3483, %v3484
    %v3486 = vsel %vm2516, %v3405, 0.0
    %v3487 = vadd.f32 %v3485, %v3486
    %v3488 = vsel %vm2516, %v3406, 0.0
    %v3489 = vadd.f32 %v3487, %v3488
    %v3490 = vsel %vm2516, %v3407, 0.0
    %v3491 = vadd.f32 %v3489, %v3490
    %v3492 = vsel %vm2516, %v3408, 0.0
    %v3493 = vadd.f32 %v3491, %v3492
    %v3494 = vsel %vm2516, %v3409, 0.0
    %v3495 = vadd.f32 %v3493, %v3494
    %v3496 = vsel %vm2516, %v3410, 0.0
    %v3497 = vadd.f32 %v3495, %v3496
    %v3498 = vsel %vm2516, %v3411, 0.0
    %v3499 = vadd.f32 %v3497, %v3498
    %v3500 = vsel %vm2516, %v3412, 0.0
    %v3501 = vadd.f32 %v3499, %v3500
    %v3502 = vsel %vm2516, %v3413, 0.0
    %v3503 = vadd.f32 %v3501, %v3502
    %v3504 = vsel %vm2516, %v3414, 0.0
    %v3505 = vadd.f32 %v3503, %v3504
    %v3506 = vsel %vm2516, %v3415, 0.0
    %v3507 = vadd.f32 %v3505, %v3506
    %v3508 = vsel %vm2516, %v3416, 0.0
    %v3509 = vadd.f32 %v3507, %v3508
    %v3510 = vsel %vm2516, %v3417, 0.0
    %v3511 = vadd.f32 %v3509, %v3510
    %v3512 = vsel %vm2516, %v3418, 0.0
    %v3513 = vadd.f32 %v3511, %v3512
    %3514 = vadd.xlane.f32.xlu0 %v3513
    %v3515 = vpop.xlane.xlu0 %3514
    %v3516 = vrot.slane %v3515, 4
    %v3517 = vadd.f32 %v3515, %v3516
    %v3518 = vrot.slane %v3517, 2
    %v3519 = vadd.f32 %v3517, %v3518
    %v3520 = vrot.slane %v3519, 1
    %v3521 = vadd.f32 %v3519, %v3520
    %s3522 = vtos %v3521
    %v3523 = vstv %s3522
    %3524 = vst [vmem:[%s3] sm:$0xff] %v3523
    %v3525 = vsel %vm2516, %v3419, 0.0
    %v3526 = vsel %vm2516, %v3420, 0.0
    %v3527 = vadd.f32 %v3525, %v3526
    %v3528 = vsel %vm2516, %v3421, 0.0
    %v3529 = vadd.f32 %v3527, %v3528
    %v3530 = vsel %vm2516, %v3422, 0.0
    %v3531 = vadd.f32 %v3529, %v3530
    %v3532 = vsel %vm2516, %v3423, 0.0
    %v3533 = vadd.f32 %v3531, %v3532
    %v3534 = vsel %vm2516, %v3424, 0.0
    %v3535 = vadd.f32 %v3533, %v3534
    %v3536 = vsel %vm2516, %v3425, 0.0
    %v3537 = vadd.f32 %v3535, %v3536
    %v3538 = vsel %vm2516, %v3426, 0.0
    %v3539 = vadd.f32 %v3537, %v3538
    %v3540 = vsel %vm2516, %v3427, 0.0
    %v3541 = vadd.f32 %v3539, %v3540
    %v3542 = vsel %vm2516, %v3428, 0.0
    %v3543 = vadd.f32 %v3541, %v3542
    %v3544 = vsel %vm2516, %v3429, 0.0
    %v3545 = vadd.f32 %v3543, %v3544
    %v3546 = vsel %vm2516, %v3430, 0.0
    %v3547 = vadd.f32 %v3545, %v3546
    %v3548 = vsel %vm2516, %v3431, 0.0
    %v3549 = vadd.f32 %v3547, %v3548
    %v3550 = vsel %vm2516, %v3432, 0.0
    %v3551 = vadd.f32 %v3549, %v3550
    %v3552 = vsel %vm2516, %v3433, 0.0
    %v3553 = vadd.f32 %v3551, %v3552
    %v3554 = vsel %vm2516, %v3434, 0.0
    %v3555 = vadd.f32 %v3553, %v3554
    %v3556 = vsel %vm2516, %v3435, 0.0
    %v3557 = vadd.f32 %v3555, %v3556
    %v3558 = vsel %vm2516, %v3436, 0.0
    %v3559 = vadd.f32 %v3557, %v3558
    %v3560 = vsel %vm2516, %v3437, 0.0
    %v3561 = vadd.f32 %v3559, %v3560
    %v3562 = vsel %vm2516, %v3438, 0.0
    %v3563 = vadd.f32 %v3561, %v3562
    %v3564 = vsel %vm2516, %v3439, 0.0
    %v3565 = vadd.f32 %v3563, %v3564
    %v3566 = vsel %vm2516, %v3440, 0.0
    %v3567 = vadd.f32 %v3565, %v3566
    %v3568 = vsel %vm2516, %v3441, 0.0
    %v3569 = vadd.f32 %v3567, %v3568
    %v3570 = vsel %vm2516, %v3442, 0.0
    %v3571 = vadd.f32 %v3569, %v3570
    %v3572 = vsel %vm2516, %v3443, 0.0
    %v3573 = vadd.f32 %v3571, %v3572
    %v3574 = vsel %vm2516, %v3444, 0.0
    %v3575 = vadd.f32 %v3573, %v3574
    %v3576 = vsel %vm2516, %v3445, 0.0
    %v3577 = vadd.f32 %v3575, %v3576
    %v3578 = vsel %vm2516, %v3446, 0.0
    %v3579 = vadd.f32 %v3577, %v3578
    %v3580 = vsel %vm2516, %v3447, 0.0
    %v3581 = vadd.f32 %v3579, %v3580
    %v3582 = vsel %vm2516, %v3448, 0.0
    %v3583 = vadd.f32 %v3581, %v3582
    %v3584 = vsel %vm2516, %v3449, 0.0
    %v3585 = vadd.f32 %v3583, %v3584
    %v3586 = vsel %vm2516, %v3450, 0.0
    %v3587 = vadd.f32 %v3585, %v3586
    %3588 = vadd.xlane.f32.xlu0 %v3587
    %v3589 = vpop.xlane.xlu0 %3588
    %v3590 = vrot.slane %v3589, 4
    %v3591 = vadd.f32 %v3589, %v3590
    %v3592 = vrot.slane %v3591, 2
    %v3593 = vadd.f32 %v3591, %v3592
    %v3594 = vrot.slane %v3593, 1
    %v3595 = vadd.f32 %v3593, %v3594
    %s3596 = vtos %v3595
    %v3597 = vstv %s3596
    %3598 = vst [vmem:[%s4] sm:$0xff] %v3597
  $region21: #{_am_softmax_padded.1} parent=0 // pred_fallthru
    _
  // Predicated region
  $region22: #{_am_softmax_padded.1} parent=0 // pred_check
    _
  $region23: #{_am_softmax_padded.1} parent=0 // pred_check_branch
    %3600 = sbr.rel (0) target = $region25
  $region24: #{_am_softmax_padded.1} parent=0 // pred_region
    _
  $region25: #{_am_softmax_padded.1} parent=0 // pred_fallthru
    _
  // Predicated region
  $region26: #{_am_softmax_padded.1} parent=0 // pred_check
    _
  $region27: #{_am_softmax_padded.1} parent=0 // pred_check_branch
    %3602 = sbr.rel (0) target = $region29
  $region28: #{_am_softmax_padded.1} parent=0 // pred_region
    _
  $region29: #{_am_softmax_padded.1} parent=0 // pred_fallthru
    _
  // Predicated region
  $region30: #{_am_softmax_padded.1} parent=0 // pred_check
    _
  $region31: #{_am_softmax_padded.1} parent=0 // pred_check_branch
    %3604 = sbr.rel (0) target = $region33
  $region32: #{_am_softmax_padded.1} parent=0 // pred_region
    _
  $region33: #{_am_softmax_padded.1} parent=0 // pred_fallthru
    _
  // Predicated region
  $region34: #{_am_softmax_padded.1} parent=0 // pred_check
    _
  $region35: #{_am_softmax_padded.1} parent=0 // pred_check_branch
    %3606 = sbr.rel (0) target = $region37
  $region36: #{_am_softmax_padded.1} parent=0 // pred_region
    _
  $region37: #{_am_softmax_padded.1} parent=0 // pred_fallthru
    _

</llo_original>
